<compile_context>
chip_gen: v5e
topology: v5e:2x2
jax: 0.10.0
libtpu: 0.0.40
codegen_flags: <defaults>
</compile_context>

<pallas_src>
import functools
import numpy as np
import jax
import jax.numpy as jnp
from jax.experimental import pallas as pl
from jax.experimental.pallas import tpu as pltpu

EPS = 1e-5
TOPOLOGY = np.array([[0, 1], [1, 1], [1, 0], [1, -1],
                     [0, -1], [-1, -1], [-1, 0], [-1, 1]])

TAPS3 = [(i, j) for i in range(3) for j in range(3)]
TAPS2 = [(i, j) for i in range(2) for j in range(2)]


# -------------------- generation-aware VMEM budget / tiling -------------------

def _vmem_capacity_bytes():
    try:
        return int(pltpu.get_tpu_info().vmem_capacity_bytes)
    except Exception:
        return 128 * 1024 * 1024


_VMEM_CAP = _vmem_capacity_bytes()
# scoped-VMEM budget: half of physical, capped (v7x: 32 MiB of 64; v5e/v6e: 48 of 128)
_VMEM_LIMIT = int(min(_VMEM_CAP // 2, 48 * 1024 * 1024))
# lane-tile cap for the M-streamed compenv kernel (smaller on 64 MiB-VMEM chips)
MAX_TILE_M = 2048 if _VMEM_CAP <= 64 * 1024 * 1024 else 4096

_CPARAMS = pltpu.CompilerParams(dimension_semantics=("parallel",),
                                vmem_limit_bytes=_VMEM_LIMIT)


def _round_up(n, m):
    return ((n + m - 1) // m) * m


def _choose_tile(M, max_tile=None):
    """Lane tile (multiple of 128) + padded M; force >=2 grid steps when possible."""
    if max_tile is None:
        max_tile = MAX_TILE_M
    Mp = _round_up(M, 128)
    n = -(-Mp // max_tile)
    if n < 2 and Mp >= 256:
        n = 2                                # >=2 "parallel" steps (v7x: 2 TensorCores)
    tile = _round_up(-(-Mp // n), 128)
    n = -(-Mp // tile)
    return tile, tile * n


def _flat_len(h_out, w_out, pitch):
    """Flat length of an (h_out, w_out) map embedded row-major at `pitch`."""
    return (h_out - 1) * pitch + w_out


# ------------------------------ Pallas kernels --------------------------------

def _compenv_kernel(x_ref, w1_ref, sh_ref, w2_ref, o_ref):
    # 1x1 conv (BN scale folded into w1) -> +shift -> tanh -> 1x1 conv
    h = jnp.tanh(jnp.dot(w1_ref[...], x_ref[...],
                         preferred_element_type=jnp.float32) + sh_ref[...])
    o_ref[...] = jnp.dot(w2_ref[...], h, preferred_element_type=jnp.float32)


def compenv_pallas(xT, w1s, shift, w2):
    """xT: (D, M) -> (1, M); lane-dense, M-tiled, weights VMEM-resident."""
    D, M = xT.shape
    nc = w1s.shape[0]
    tile, Mpad = _choose_tile(M)
    if Mpad != M:
        xT = jnp.pad(xT, ((0, 0), (0, Mpad - M)))
    out = pl.pallas_call(
        _compenv_kernel,
        out_shape=jax.ShapeDtypeStruct((1, Mpad), jnp.float32),
        grid=(Mpad // tile,),
        in_specs=[pl.BlockSpec((D, tile), lambda i: (0, i)),
                  pl.BlockSpec((nc, D), lambda i: (0, 0)),
                  pl.BlockSpec((nc, 1), lambda i: (0, 0)),
                  pl.BlockSpec((1, nc), lambda i: (0, 0))],
        out_specs=pl.BlockSpec((1, tile), lambda i: (0, i)),
        compiler_params=_CPARAMS,
    )(xT, w1s, shift, w2)
    return out[:, :M]


def _conv_acc(x, w, cin, taps, pitch, out_len):
    """kh x kw conv on a flattened padded map: accumulate per-tap lane-shifted dots.

    (On v5e/v6e a single K=kh*kw*cin dot of a concatenated operand would also
    work; the accumulating form is MRB-free on v7x and simplest to lower.)
    """
    acc = None
    for t, (i, j) in enumerate(taps):
        d = i * pitch + j
        term = jnp.dot(w[:, t * cin:(t + 1) * cin], x[:, d:d + out_len],
                       preferred_element_type=jnp.float32)
        acc = term if acc is None else acc + term
    return acc


def _md_chain_kernel(te_ref, wt_ref, w2_ref, sc_ref, sh_ref, w3_ref, o_ref,
                     *, nc, Wp, H, W):
    """merge_change_determinant, one batch image, all intermediates in VMEM."""
    te = te_ref[0]                                        # (10, (H+4)*(W+4))
    L1 = _flat_len(H + 2, W + 2, Wp)
    L2 = _flat_len(H, W, Wp)
    L3 = _flat_len(H - 1, W - 1, Wp)
    # ConvTranspose2d(10,nc,3) == flipped 3x3 conv on the 2-zero-padded input; tanh
    h1 = jnp.tanh(_conv_acc(te, wt_ref[...], 10, TAPS3, Wp, L1))
    # Conv2d(nc,nc,3) -> tanh -> BN affine -> tanh   (scale kept: tanh in between)
    h2 = _conv_acc(h1, w2_ref[...], nc, TAPS3, Wp, L2)
    h2 = jnp.tanh(jnp.tanh(h2) * sc_ref[...] + sh_ref[...])
    # Conv2d(nc,1,2,stride=2): dense 2x2 here; stride-2 subsample happens outside
    h3 = _conv_acc(h2, w3_ref[...], nc, TAPS2, Wp, L3)
    o_ref[0] = jax.nn.sigmoid(h3)


def md_chain_pallas(te_p, p, *, H, W, nc):
    B, C0, L0 = te_p.shape
    Wp = W + 4
    L3 = _flat_len(H - 1, W - 1, Wp)
    kernel = functools.partial(_md_chain_kernel, nc=nc, Wp=Wp, H=H, W=W)
    full = lambda a: pl.BlockSpec(a.shape, lambda b: (0, 0))
    return pl.pallas_call(
        kernel,
        out_shape=jax.ShapeDtypeStruct((B, 1, L3), jnp.float32),
        grid=(B,),                                        # >=2 parallel steps (B=2)
        in_specs=[pl.BlockSpec((1, C0, L0), lambda b: (b, 0, 0)),
                  full(p["md_wt"]), full(p["md_w2"]),
                  full(p["md_scale"]), full(p["md_shift"]), full(p["md_w3"])],
        out_specs=pl.BlockSpec((1, 1, L3), lambda b: (b, 0, 0)),
        compiler_params=_CPARAMS,
    )(te_p, p["md_wt"], p["md_w2"], p["md_scale"], p["md_shift"], p["md_w3"])


def _growth_kernel(xs_ref, ch_ref, mask_ref, w1_ref, sh1_ref, wt_ref, w2_ref,
                   bw1_ref, bsh_ref, bw2_ref, o_ref, *, D, nc, Wp, Ho, Wo):
    """cell_merge + born + combine + partial sigmoid, one batch image."""
    xs = xs_ref[0]                                        # (4D, (Ho+4)*(Wo+4))
    M1 = _flat_len(Ho + 2, Wo + 2, Wp)
    M2 = _flat_len(Ho, Wo, Wp)
    # stage 1: stride-2 2x2 grouped conv as space-to-depth pointwise matmul
    #          (BN scale folded into w1) -> +shift -> tanh -> re-zero padding
    m = jnp.dot(w1_ref[...], xs, preferred_element_type=jnp.float32)
    m = jnp.tanh(m + sh1_ref[...]) * mask_ref[...]
    # stage 2: ConvTranspose2d(nc,nc,3,groups=3) as flipped 3x3 conv; tanh
    h1 = jnp.tanh(_conv_acc(m, wt_ref[...], nc, TAPS3, Wp, M1))
    # stage 3: Conv2d(nc,D,3,groups=3); tanh
    xm = jnp.tanh(_conv_acc(h1, w2_ref[...], nc, TAPS3, Wp, M2))
    # born: 1x1 (BN scale folded) -> +shift -> tanh -> 1x1
    hb = jnp.tanh(jnp.dot(bw1_ref[...], xm,
                          preferred_element_type=jnp.float32) + bsh_ref[...])
    born = jnp.dot(bw2_ref[...], hb, preferred_element_type=jnp.float32)
    # combine with CHANGE; partial sigmoid via two row-sliced stores (no iota/where)
    c = ch_ref[0][:, :M2]                                 # (1, M2) broadcast over D
    y = xm * (1.0 - c) + c * born
    o_ref[0, :3, :] = jax.nn.sigmoid(y[:3, :])
    if D > 3:
        o_ref[0, 3:, :] = y[3:, :]


def growth_pallas(xs_p, ch_p, mask, p, *, D, nc, Ho, Wo):
    B = xs_p.shape[0]
    Wp = Wo + 4
    M0 = xs_p.shape[2]
    M2 = _flat_len(Ho, Wo, Wp)
    kernel = functools.partial(_growth_kernel, D=D, nc=nc, Wp=Wp, Ho=Ho, Wo=Wo)
    full = lambda a: pl.BlockSpec(a.shape, lambda b: (0, 0))
    return pl.pallas_call(
        kernel,
        out_shape=jax.ShapeDtypeStruct((B, D, M2), jnp.float32),
        grid=(B,),
        in_specs=[pl.BlockSpec((1, 4 * D, M0), lambda b: (b, 0, 0)),
                  pl.BlockSpec((1, 1, ch_p.shape[2]), lambda b: (b, 0, 0)),
                  full(mask),
                  full(p["cm_w1s"]), full(p["cm_shift"]),
                  full(p["cm_wt"]), full(p["cm_w2"]),
                  full(p["bo_w1s"]), full(p["bo_shift"]), full(p["bo_w2"])],
        out_specs=pl.BlockSpec((1, D, M2), lambda b: (b, 0, 0)),
        compiler_params=_CPARAMS,
    )(xs_p, ch_p, mask, p["cm_w1s"], p["cm_shift"], p["cm_wt"], p["cm_w2"],
      p["bo_w1s"], p["bo_shift"], p["bo_w2"])


# ---------------------------- weight preparation ------------------------------

def conv_w_to_taps(w, groups):
    """Grouped Conv2d weight (O, Cin/g, kh, kw) -> (O, kh*kw*Cin) tap-major matrix
    (column index = (i*kw + j)*Cin + c), block-diagonal across groups."""
    O, cin_g, kh, kw = w.shape
    cin = cin_g * groups
    o_g = O // groups
    full = np.zeros((O, cin, kh, kw), dtype=np.float32)
    for g in range(groups):
        full[g * o_g:(g + 1) * o_g, g * cin_g:(g + 1) * cin_g] = w[g * o_g:(g + 1) * o_g]
    return full.transpose(0, 2, 3, 1).reshape(O, kh * kw * cin)


def deconv_to_conv_w(wt, groups):
    """ConvTranspose2d weight (Cin, O/g, kh, kw), stride=1, pad=0 -> equivalent
    grouped Conv2d weight (O, Cin/g, kh, kw) applied to a (kh-1)-zero-padded input."""
    cin, o_g, kh, kw = wt.shape
    cin_g = cin // groups
    O = o_g * groups
    w = np.zeros((O, cin_g, kh, kw), dtype=np.float32)
    for g in range(groups):
        for og in range(o_g):
            o = g * o_g + og
            for cg in range(cin_g):
                c = g * cin_g + cg
                w[o, cg] = wt[c, og, ::-1, ::-1]
    return w


def _bn_fold(rng, n):
    gamma = 1.0 + 0.1 * rng.randn(n).astype(np.float32)
    beta = 0.1 * rng.randn(n).astype(np.float32)
    mean = 0.1 * rng.randn(n).astype(np.float32)
    var = 0.5 + 0.1 * np.abs(rng.randn(n)).astype(np.float32)
    scale = (gamma / np.sqrt(var + EPS)).astype(np.float32)
    shift = (beta - mean * scale).astype(np.float32)
    return scale, shift


def init_params(D, nc, seed=0):
    rng = np.random.RandomState(seed)
    w = lambda *s: (0.1 * rng.randn(*s)).astype(np.float32)
    p = {}

    # compenv_conv: Conv2d(D,nc,1) -> BN -> tanh -> Conv2d(nc,1,1)   (scale folded)
    ce_w1 = w(nc, D, 1, 1).reshape(nc, D)
    ce_sc, ce_sh = _bn_fold(rng, nc)
    p["ce_w1s"] = jnp.asarray(ce_w1 * ce_sc[:, None])
    p["ce_shift"] = jnp.asarray(ce_sh.reshape(nc, 1))
    p["ce_w2"] = jnp.asarray(w(1, nc, 1, 1).reshape(1, nc))

    # cell_merge: Conv2d(D,nc,2,s2,g3) -> BN -> tanh -> ConvT(nc,nc,3,g3) -> tanh
    #             -> Conv(nc,D,3,g3) -> tanh                        (scale folded)
    cm_w1 = conv_w_to_taps(w(nc, D // 3, 2, 2), 3)                   # (nc, 4D)
    cm_sc, cm_sh = _bn_fold(rng, nc)
    p["cm_w1s"] = jnp.asarray(cm_w1 * cm_sc[:, None])
    p["cm_shift"] = jnp.asarray(cm_sh.reshape(nc, 1))
    p["cm_wt"] = jnp.asarray(conv_w_to_taps(deconv_to_conv_w(w(nc, nc // 3, 3, 3), 3), 3))
    p["cm_w2"] = jnp.asarray(conv_w_to_taps(w(D, nc // 3, 3, 3), 3))

    # born: Conv2d(D,nc,1) -> BN -> tanh -> Conv2d(nc,D,1)           (scale folded)
    bo_w1 = w(nc, D, 1, 1).reshape(nc, D)
    bo_sc, bo_sh = _bn_fold(rng, nc)
    p["bo_w1s"] = jnp.asarray(bo_w1 * bo_sc[:, None])
    p["bo_shift"] = jnp.asarray(bo_sh.reshape(nc, 1))
    p["bo_w2"] = jnp.asarray(w(D, nc, 1, 1).reshape(D, nc))

    # merge_change_determinant: ConvT(10,nc,3) -> tanh -> Conv(nc,nc,3) -> tanh
    #             -> BN -> tanh -> Conv(nc,1,2,s2) -> sigmoid  (scale NOT folded)
    p["md_wt"] = jnp.asarray(conv_w_to_taps(deconv_to_conv_w(w(10, nc, 3, 3), 1), 1))
    p["md_w2"] = jnp.asarray(conv_w_to_taps(w(nc, nc, 3, 3), 1))
    md_sc, md_sh = _bn_fold(rng, nc)
    p["md_scale"] = jnp.asarray(md_sc.reshape(nc, 1))
    p["md_shift"] = jnp.asarray(md_sh.reshape(nc, 1))
    p["md_w3"] = jnp.asarray(conv_w_to_taps(w(1, nc, 2, 2), 1))
    return p


# ------------------------------ forward pass ----------------------------------

def pattern_encode_forward(params, x_nchw, D, nc):
    B, _, H, W = x_nchw.shape
    assert H % 2 == 0 and W % 2 == 0
    Ho, Wo = H // 2, W // 2
    Wp1, Wp2 = W + 4, Wo + 4
    x = x_nchw.astype(jnp.float32)

    # ---- compenv: pointwise chain once per pixel; 8 neighbour maps = wrap-rolls
    xT = jnp.transpose(x, (1, 0, 2, 3)).reshape(D, B * H * W)
    env = compenv_pallas(xT, params["ce_w1s"], params["ce_shift"], params["ce_w2"])
    env = env.reshape(B, 1, H, W)
    rolled = [jnp.roll(env, (int(-TOPOLOGY[k, 1]), int(TOPOLOGY[k, 0])), axis=(2, 3))
              for k in range(8)]
    te = jnp.concatenate([x[:, :2]] + rolled, axis=1)                 # (B, 10, H, W)
    te_p = jnp.pad(te, ((0, 0), (0, 0), (2, 2), (2, 2)))
    te_p = te_p.reshape(B, 10, (H + 4) * Wp1)

    # ---- merge_change_determinant: one fused per-image kernel -> dense 2x2 map
    dense = md_chain_pallas(te_p, params, H=H, W=W, nc=nc)            # (B, 1, L3)
    L3 = _flat_len(H - 1, W - 1, Wp1)
    dense = jnp.pad(dense, ((0, 0), (0, 0), (0, (H - 1) * Wp1 - L3)))
    dense = dense.reshape(B, 1, H - 1, Wp1)
    change = dense[:, :, 0::2, 0::2][:, :, :Ho, :Wo]                  # (B, 1, Ho, Wo)

    # ---- cell_merge + born + combine + partial sigmoid: one fused per-image kernel
    phases = [x[:, :, i::2, j::2] for i in range(2) for j in range(2)]
    xs = jnp.concatenate(phases, axis=1)                              # (B, 4D, Ho, Wo)
    xs_p = jnp.pad(xs, ((0, 0), (0, 0), (2, 2), (2, 2)))
    xs_p = xs_p.reshape(B, 4 * D, (Ho + 4) * Wp2)
    mask_np = np.zeros((1, Ho + 4, Wo + 4), np.float32)
    mask_np[:, 2:2 + Ho, 2:2 + Wo] = 1.0
    mask = jnp.asarray(mask_np.reshape(1, (Ho + 4) * Wp2))
    ch_p = jnp.pad(change, ((0, 0), (0, 0), (0, 0), (0, Wp2 - Wo)))
    ch_p = ch_p.reshape(B, 1, Ho * Wp2)

    y = growth_pallas(xs_p, ch_p, mask, params, D=D, nc=nc, Ho=Ho, Wo=Wo)  # (B, D, M2)
    M2 = _flat_len(Ho, Wo, Wp2)
    y = jnp.pad(y, ((0, 0), (0, 0), (0, Ho * Wp2 - M2))).reshape(B, D, Ho, Wp2)
    return y[:, :, :, :Wo]                                            # (B, D, Ho, Wo)


# ---------------------------------- main --------------------------------------

if __name__ == "__main__":
    D, NC = 6, 12                  # D and n_channel must be divisible by 3 (groups=3)
    B, H, W = 2, 16, 16
    params = init_params(D, NC, seed=0)

    x = jax.random.normal(jax.random.PRNGKey(0), (B, D, H, W), jnp.float32)

    fwd = jax.jit(functools.partial(pattern_encode_forward, D=D, nc=NC))
    y = fwd(params, x)
    jax.block_until_ready(y)
    assert y.shape == (B, D, H // 2, W // 2), y.shape
    assert bool(jnp.all(jnp.isfinite(y)))
    print("KERNEL_OK")
</pallas_src>

<mosaic_0001>
module attributes {stable_mosaic.version = 11 : i64} {
  func.func @_compenv_kernel(%arg0: i32, %arg1: memref<6x256xf32, #tpu.memory_space<vmem>>, %arg2: memref<12x6xf32, #tpu.memory_space<vmem>>, %arg3: memref<12x1xf32, #tpu.memory_space<vmem>>, %arg4: memref<1x12xf32, #tpu.memory_space<vmem>>, %arg5: memref<1x256xf32, #tpu.memory_space<vmem>>) attributes {dimension_semantics = [#tpu.dimension_semantics<parallel>], iteration_bounds = array<i64: 2>, scalar_prefetch = 0 : i64, scratch_operands = 0 : i64, tpu.core_type = #tpu.core_type<tc>, window_params = [{transform_indices = @transform_0, window_bounds = array<i64: 6, 256>}, {pipeline_mode = #tpu.pipeline_mode<synchronous>, transform_indices = @transform_1, window_bounds = array<i64: 12, 6>}, {pipeline_mode = #tpu.pipeline_mode<synchronous>, transform_indices = @transform_2, window_bounds = array<i64: 12, 1>}, {pipeline_mode = #tpu.pipeline_mode<synchronous>, transform_indices = @transform_3, window_bounds = array<i64: 1, 12>}, {transform_indices = @transform_4, window_bounds = array<i64: 1, 256>}]} {
    %c0 = arith.constant 0 : index
    %c0_0 = arith.constant 0 : index
    %0 = vector.load %arg2[%c0, %c0_0] : memref<12x6xf32, #tpu.memory_space<vmem>>, vector<12x6xf32>
    %c0_1 = arith.constant 0 : index
    %c0_2 = arith.constant 0 : index
    %1 = vector.load %arg1[%c0_1, %c0_2] : memref<6x256xf32, #tpu.memory_space<vmem>>, vector<6x256xf32>
    %cst = arith.constant dense<0.000000e+00> : vector<12x256xf32>
    %2 = tpu.matmul %0, %1, %cst {dimension_numbers = #tpu.dot_dimension_numbers<[1], [0], [0], [1], [0, 0, 1, 1], [], []>} : vector<12x6xf32>, vector<6x256xf32>, vector<12x256xf32> -> vector<12x256xf32>
    %c0_3 = arith.constant 0 : index
    %c0_4 = arith.constant 0 : index
    %3 = vector.load %arg3[%c0_3, %c0_4] : memref<12x1xf32, #tpu.memory_space<vmem>>, vector<12x1xf32>
    %4 = vector.broadcast %3 : vector<12x1xf32> to vector<12x256xf32>
    %5 = arith.addf %2, %4 : vector<12x256xf32>
    %6 = math.tanh %5 : vector<12x256xf32>
    %c0_5 = arith.constant 0 : index
    %c0_6 = arith.constant 0 : index
    %7 = vector.load %arg4[%c0_5, %c0_6] : memref<1x12xf32, #tpu.memory_space<vmem>>, vector<1x12xf32>
    %cst_7 = arith.constant dense<0.000000e+00> : vector<1x256xf32>
    %8 = tpu.matmul %7, %6, %cst_7 {dimension_numbers = #tpu.dot_dimension_numbers<[1], [0], [0], [1], [0, 0, 1, 1], [], []>} : vector<1x12xf32>, vector<12x256xf32>, vector<1x256xf32> -> vector<1x256xf32>
    %c0_8 = arith.constant 0 : index
    %c0_9 = arith.constant 0 : index
    %9 = vector.load %arg5[%c0_8, %c0_9] : memref<1x256xf32, #tpu.memory_space<vmem>>, vector<1x256xf32>
    tpu.vector_store %arg5[%c0_8, %c0_9], %8 {strides = array<i32>} : memref<1x256xf32, #tpu.memory_space<vmem>>, vector<1x256xf32>,
    return
  }
  func.func @transform_0(%arg0: i32) -> (i32, i32) {
    %c0_i32 = arith.constant 0 : i32
    %c0_i32_0 = arith.constant 0 : i32
    return %c0_i32, %arg0 : i32, i32
  }
  func.func @transform_1(%arg0: i32) -> (i32, i32) {
    %c0_i32 = arith.constant 0 : i32
    %c0_i32_0 = arith.constant 0 : i32
    %c0_i32_1 = arith.constant 0 : i32
    return %c0_i32, %c0_i32_0 : i32, i32
  }
  func.func @transform_2(%arg0: i32) -> (i32, i32) {
    %c0_i32 = arith.constant 0 : i32
    %c0_i32_0 = arith.constant 0 : i32
    %c0_i32_1 = arith.constant 0 : i32
    return %c0_i32, %c0_i32_0 : i32, i32
  }
  func.func @transform_3(%arg0: i32) -> (i32, i32) {
    %c0_i32 = arith.constant 0 : i32
    %c0_i32_0 = arith.constant 0 : i32
    %c0_i32_1 = arith.constant 0 : i32
    return %c0_i32, %c0_i32_0 : i32, i32
  }
  func.func @transform_4(%arg0: i32) -> (i32, i32) {
    %c0_i32 = arith.constant 0 : i32
    %c0_i32_0 = arith.constant 0 : i32
    return %c0_i32, %arg0 : i32, i32
  }
}

module attributes {stable_mosaic.version = 11 : i64} {
  func.func @_md_chain_kernel(%arg0: i32, %arg1: memref<1x10x400xf32, #tpu.memory_space<vmem>>, %arg2: memref<12x90xf32, #tpu.memory_space<vmem>>, %arg3: memref<12x108xf32, #tpu.memory_space<vmem>>, %arg4: memref<12x1xf32, #tpu.memory_space<vmem>>, %arg5: memref<12x1xf32, #tpu.memory_space<vmem>>, %arg6: memref<1x48xf32, #tpu.memory_space<vmem>>, %arg7: memref<1x1x295xf32, #tpu.memory_space<vmem>>) attributes {dimension_semantics = [#tpu.dimension_semantics<parallel>], iteration_bounds = array<i64: 2>, scalar_prefetch = 0 : i64, scratch_operands = 0 : i64, tpu.core_type = #tpu.core_type<tc>, window_params = [{transform_indices = @transform_0, window_bounds = array<i64: 1, 10, 400>}, {pipeline_mode = #tpu.pipeline_mode<synchronous>, transform_indices = @transform_1, window_bounds = array<i64: 12, 90>}, {pipeline_mode = #tpu.pipeline_mode<synchronous>, transform_indices = @transform_2, window_bounds = array<i64: 12, 108>}, {pipeline_mode = #tpu.pipeline_mode<synchronous>, transform_indices = @transform_3, window_bounds = array<i64: 12, 1>}, {pipeline_mode = #tpu.pipeline_mode<synchronous>, transform_indices = @transform_4, window_bounds = array<i64: 12, 1>}, {pipeline_mode = #tpu.pipeline_mode<synchronous>, transform_indices = @transform_5, window_bounds = array<i64: 1, 48>}, {transform_indices = @transform_6, window_bounds = array<i64: 1, 1, 295>}]} {
    %c0 = arith.constant 0 : index
    %c0_0 = arith.constant 0 : index
    %c0_1 = arith.constant 0 : index
    %0 = vector.load %arg1[%c0, %c0_0, %c0_1] : memref<1x10x400xf32, #tpu.memory_space<vmem>>, vector<1x10x400xf32>
    %1 = vector.shape_cast %0 : vector<1x10x400xf32> to vector<10x400xf32>
    %c0_2 = arith.constant 0 : index
    %c0_3 = arith.constant 0 : index
    %2 = vector.load %arg2[%c0_2, %c0_3] : memref<12x90xf32, #tpu.memory_space<vmem>>, vector<12x90xf32>
    %3 = vector.extract_strided_slice %2 {offsets = [0, 0], sizes = [12, 10], strides = [1, 1]} : vector<12x90xf32> to vector<12x10xf32>
    %4 = vector.extract_strided_slice %1 {offsets = [0, 0], sizes = [10, 358], strides = [1, 1]} : vector<10x400xf32> to vector<10x358xf32>
    %cst = arith.constant dense<0.000000e+00> : vector<12x358xf32>
    %5 = tpu.matmul %3, %4, %cst {dimension_numbers = #tpu.dot_dimension_numbers<[1], [0], [0], [1], [0, 0, 1, 1], [], []>} : vector<12x10xf32>, vector<10x358xf32>, vector<12x358xf32> -> vector<12x358xf32>
    %6 = vector.extract_strided_slice %2 {offsets = [0, 10], sizes = [12, 10], strides = [1, 1]} : vector<12x90xf32> to vector<12x10xf32>
    %7 = vector.extract_strided_slice %1 {offsets = [0, 1], sizes = [10, 358], strides = [1, 1]} : vector<10x400xf32> to vector<10x358xf32>
    %cst_4 = arith.constant dense<0.000000e+00> : vector<12x358xf32>
    %8 = tpu.matmul %6, %7, %cst_4 {dimension_numbers = #tpu.dot_dimension_numbers<[1], [0], [0], [1], [0, 0, 1, 1], [], []>} : vector<12x10xf32>, vector<10x358xf32>, vector<12x358xf32> -> vector<12x358xf32>
    %9 = arith.addf %5, %8 : vector<12x358xf32>
    %10 = vector.extract_strided_slice %2 {offsets = [0, 20], sizes = [12, 10], strides = [1, 1]} : vector<12x90xf32> to vector<12x10xf32>
    %11 = vector.extract_strided_slice %1 {offsets = [0, 2], sizes = [10, 358], strides = [1, 1]} : vector<10x400xf32> to vector<10x358xf32>
    %cst_5 = arith.constant dense<0.000000e+00> : vector<12x358xf32>
    %12 = tpu.matmul %10, %11, %cst_5 {dimension_numbers = #tpu.dot_dimension_numbers<[1], [0], [0], [1], [0, 0, 1, 1], [], []>} : vector<12x10xf32>, vector<10x358xf32>, vector<12x358xf32> -> vector<12x358xf32>
    %13 = arith.addf %9, %12 : vector<12x358xf32>
    %14 = vector.extract_strided_slice %2 {offsets = [0, 30], sizes = [12, 10], strides = [1, 1]} : vector<12x90xf32> to vector<12x10xf32>
    %15 = vector.extract_strided_slice %1 {offsets = [0, 20], sizes = [10, 358], strides = [1, 1]} : vector<10x400xf32> to vector<10x358xf32>
    %cst_6 = arith.constant dense<0.000000e+00> : vector<12x358xf32>
    %16 = tpu.matmul %14, %15, %cst_6 {dimension_numbers = #tpu.dot_dimension_numbers<[1], [0], [0], [1], [0, 0, 1, 1], [], []>} : vector<12x10xf32>, vector<10x358xf32>, vector<12x358xf32> -> vector<12x358xf32>
    %17 = arith.addf %13, %16 : vector<12x358xf32>
    %18 = vector.extract_strided_slice %2 {offsets = [0, 40], sizes = [12, 10], strides = [1, 1]} : vector<12x90xf32> to vector<12x10xf32>
    %19 = vector.extract_strided_slice %1 {offsets = [0, 21], sizes = [10, 358], strides = [1, 1]} : vector<10x400xf32> to vector<10x358xf32>
    %cst_7 = arith.constant dense<0.000000e+00> : vector<12x358xf32>
    %20 = tpu.matmul %18, %19, %cst_7 {dimension_numbers = #tpu.dot_dimension_numbers<[1], [0], [0], [1], [0, 0, 1, 1], [], []>} : vector<12x10xf32>, vector<10x358xf32>, vector<12x358xf32> -> vector<12x358xf32>
    %21 = arith.addf %17, %20 : vector<12x358xf32>
    %22 = vector.extract_strided_slice %2 {offsets = [0, 50], sizes = [12, 10], strides = [1, 1]} : vector<12x90xf32> to vector<12x10xf32>
    %23 = vector.extract_strided_slice %1 {offsets = [0, 22], sizes = [10, 358], strides = [1, 1]} : vector<10x400xf32> to vector<10x358xf32>
    %cst_8 = arith.constant dense<0.000000e+00> : vector<12x358xf32>
    %24 = tpu.matmul %22, %23, %cst_8 {dimension_numbers = #tpu.dot_dimension_numbers<[1], [0], [0], [1], [0, 0, 1, 1], [], []>} : vector<12x10xf32>, vector<10x358xf32>, vector<12x358xf32> -> vector<12x358xf32>
    %25 = arith.addf %21, %24 : vector<12x358xf32>
    %26 = vector.extract_strided_slice %2 {offsets = [0, 60], sizes = [12, 10], strides = [1, 1]} : vector<12x90xf32> to vector<12x10xf32>
    %27 = vector.extract_strided_slice %1 {offsets = [0, 40], sizes = [10, 358], strides = [1, 1]} : vector<10x400xf32> to vector<10x358xf32>
    %cst_9 = arith.constant dense<0.000000e+00> : vector<12x358xf32>
    %28 = tpu.matmul %26, %27, %cst_9 {dimension_numbers = #tpu.dot_dimension_numbers<[1], [0], [0], [1], [0, 0, 1, 1], [], []>} : vector<12x10xf32>, vector<10x358xf32>, vector<12x358xf32> -> vector<12x358xf32>
    %29 = arith.addf %25, %28 : vector<12x358xf32>
    %30 = vector.extract_strided_slice %2 {offsets = [0, 70], sizes = [12, 10], strides = [1, 1]} : vector<12x90xf32> to vector<12x10xf32>
    %31 = vector.extract_strided_slice %1 {offsets = [0, 41], sizes = [10, 358], strides = [1, 1]} : vector<10x400xf32> to vector<10x358xf32>
    %cst_10 = arith.constant dense<0.000000e+00> : vector<12x358xf32>
    %32 = tpu.matmul %30, %31, %cst_10 {dimension_numbers = #tpu.dot_dimension_numbers<[1], [0], [0], [1], [0, 0, 1, 1], [], []>} : vector<12x10xf32>, vector<10x358xf32>, vector<12x358xf32> -> vector<12x358xf32>
    %33 = arith.addf %29, %32 : vector<12x358xf32>
    %34 = vector.extract_strided_slice %2 {offsets = [0, 80], sizes = [12, 10], strides = [1, 1]} : vector<12x90xf32> to vector<12x10xf32>
    %35 = vector.extract_strided_slice %1 {offsets = [0, 42], sizes = [10, 358], strides = [1, 1]} : vector<10x400xf32> to vector<10x358xf32>
    %cst_11 = arith.constant dense<0.000000e+00> : vector<12x358xf32>
    %36 = tpu.matmul %34, %35, %cst_11 {dimension_numbers = #tpu.dot_dimension_numbers<[1], [0], [0], [1], [0, 0, 1, 1], [], []>} : vector<12x10xf32>, vector<10x358xf32>, vector<12x358xf32> -> vector<12x358xf32>
    %37 = arith.addf %33, %36 : vector<12x358xf32>
    %38 = math.tanh %37 : vector<12x358xf32>
    %c0_12 = arith.constant 0 : index
    %c0_13 = arith.constant 0 : index
    %39 = vector.load %arg3[%c0_12, %c0_13] : memref<12x108xf32, #tpu.memory_space<vmem>>, vector<12x108xf32>
    %40 = vector.extract_strided_slice %39 {offsets = [0, 0], sizes = [12, 12], strides = [1, 1]} : vector<12x108xf32> to vector<12x12xf32>
    %41 = vector.extract_strided_slice %38 {offsets = [0, 0], sizes = [12, 316], strides = [1, 1]} : vector<12x358xf32> to vector<12x316xf32>
    %cst_14 = arith.constant dense<0.000000e+00> : vector<12x316xf32>
    %42 = tpu.matmul %40, %41, %cst_14 {dimension_numbers = #tpu.dot_dimension_numbers<[1], [0], [0], [1], [0, 0, 1, 1], [], []>} : vector<12x12xf32>, vector<12x316xf32>, vector<12x316xf32> -> vector<12x316xf32>
    %43 = vector.extract_strided_slice %39 {offsets = [0, 12], sizes = [12, 12], strides = [1, 1]} : vector<12x108xf32> to vector<12x12xf32>
    %44 = vector.extract_strided_slice %38 {offsets = [0, 1], sizes = [12, 316], strides = [1, 1]} : vector<12x358xf32> to vector<12x316xf32>
    %cst_15 = arith.constant dense<0.000000e+00> : vector<12x316xf32>
    %45 = tpu.matmul %43, %44, %cst_15 {dimension_numbers = #tpu.dot_dimension_numbers<[1], [0], [0], [1], [0, 0, 1, 1], [], []>} : vector<12x12xf32>, vector<12x316xf32>, vector<12x316xf32> -> vector<12x316xf32>
    %46 = arith.addf %42, %45 : vector<12x316xf32>
    %47 = vector.extract_strided_slice %39 {offsets = [0, 24], sizes = [12, 12], strides = [1, 1]} : vector<12x108xf32> to vector<12x12xf32>
    %48 = vector.extract_strided_slice %38 {offsets = [0, 2], sizes = [12, 316], strides = [1, 1]} : vector<12x358xf32> to vector<12x316xf32>
    %cst_16 = arith.constant dense<0.000000e+00> : vector<12x316xf32>
    %49 = tpu.matmul %47, %48, %cst_16 {dimension_numbers = #tpu.dot_dimension_numbers<[1], [0], [0], [1], [0, 0, 1, 1], [], []>} : vector<12x12xf32>, vector<12x316xf32>, vector<12x316xf32> -> vector<12x316xf32>
    %50 = arith.addf %46, %49 : vector<12x316xf32>
    %51 = vector.extract_strided_slice %39 {offsets = [0, 36], sizes = [12, 12], strides = [1, 1]} : vector<12x108xf32> to vector<12x12xf32>
    %52 = vector.extract_strided_slice %38 {offsets = [0, 20], sizes = [12, 316], strides = [1, 1]} : vector<12x358xf32> to vector<12x316xf32>
    %cst_17 = arith.constant dense<0.000000e+00> : vector<12x316xf32>
    %53 = tpu.matmul %51, %52, %cst_17 {dimension_numbers = #tpu.dot_dimension_numbers<[1], [0], [0], [1], [0, 0, 1, 1], [], []>} : vector<12x12xf32>, vector<12x316xf32>, vector<12x316xf32> -> vector<12x316xf32>
    %54 = arith.addf %50, %53 : vector<12x316xf32>
    %55 = vector.extract_strided_slice %39 {offsets = [0, 48], sizes = [12, 12], strides = [1, 1]} : vector<12x108xf32> to vector<12x12xf32>
    %56 = vector.extract_strided_slice %38 {offsets = [0, 21], sizes = [12, 316], strides = [1, 1]} : vector<12x358xf32> to vector<12x316xf32>
    %cst_18 = arith.constant dense<0.000000e+00> : vector<12x316xf32>
    %57 = tpu.matmul %55, %56, %cst_18 {dimension_numbers = #tpu.dot_dimension_numbers<[1], [0], [0], [1], [0, 0, 1, 1], [], []>} : vector<12x12xf32>, vector<12x316xf32>, vector<12x316xf32> -> vector<12x316xf32>
    %58 = arith.addf %54, %57 : vector<12x316xf32>
    %59 = vector.extract_strided_slice %39 {offsets = [0, 60], sizes = [12, 12], strides = [1, 1]} : vector<12x108xf32> to vector<12x12xf32>
    %60 = vector.extract_strided_slice %38 {offsets = [0, 22], sizes = [12, 316], strides = [1, 1]} : vector<12x358xf32> to vector<12x316xf32>
    %cst_19 = arith.constant dense<0.000000e+00> : vector<12x316xf32>
    %61 = tpu.matmul %59, %60, %cst_19 {dimension_numbers = #tpu.dot_dimension_numbers<[1], [0], [0], [1], [0, 0, 1, 1], [], []>} : vector<12x12xf32>, vector<12x316xf32>, vector<12x316xf32> -> vector<12x316xf32>
    %62 = arith.addf %58, %61 : vector<12x316xf32>
    %63 = vector.extract_strided_slice %39 {offsets = [0, 72], sizes = [12, 12], strides = [1, 1]} : vector<12x108xf32> to vector<12x12xf32>
    %64 = vector.extract_strided_slice %38 {offsets = [0, 40], sizes = [12, 316], strides = [1, 1]} : vector<12x358xf32> to vector<12x316xf32>
    %cst_20 = arith.constant dense<0.000000e+00> : vector<12x316xf32>
    %65 = tpu.matmul %63, %64, %cst_20 {dimension_numbers = #tpu.dot_dimension_numbers<[1], [0], [0], [1], [0, 0, 1, 1], [], []>} : vector<12x12xf32>, vector<12x316xf32>, vector<12x316xf32> -> vector<12x316xf32>
    %66 = arith.addf %62, %65 : vector<12x316xf32>
    %67 = vector.extract_strided_slice %39 {offsets = [0, 84], sizes = [12, 12], strides = [1, 1]} : vector<12x108xf32> to vector<12x12xf32>
    %68 = vector.extract_strided_slice %38 {offsets = [0, 41], sizes = [12, 316], strides = [1, 1]} : vector<12x358xf32> to vector<12x316xf32>
    %cst_21 = arith.constant dense<0.000000e+00> : vector<12x316xf32>
    %69 = tpu.matmul %67, %68, %cst_21 {dimension_numbers = #tpu.dot_dimension_numbers<[1], [0], [0], [1], [0, 0, 1, 1], [], []>} : vector<12x12xf32>, vector<12x316xf32>, vector<12x316xf32> -> vector<12x316xf32>
    %70 = arith.addf %66, %69 : vector<12x316xf32>
    %71 = vector.extract_strided_slice %39 {offsets = [0, 96], sizes = [12, 12], strides = [1, 1]} : vector<12x108xf32> to vector<12x12xf32>
    %72 = vector.extract_strided_slice %38 {offsets = [0, 42], sizes = [12, 316], strides = [1, 1]} : vector<12x358xf32> to vector<12x316xf32>
    %cst_22 = arith.constant dense<0.000000e+00> : vector<12x316xf32>
    %73 = tpu.matmul %71, %72, %cst_22 {dimension_numbers = #tpu.dot_dimension_numbers<[1], [0], [0], [1], [0, 0, 1, 1], [], []>} : vector<12x12xf32>, vector<12x316xf32>, vector<12x316xf32> -> vector<12x316xf32>
    %74 = arith.addf %70, %73 : vector<12x316xf32>
    %75 = math.tanh %74 : vector<12x316xf32>
    %c0_23 = arith.constant 0 : index
    %c0_24 = arith.constant 0 : index
    %76 = vector.load %arg4[%c0_23, %c0_24] : memref<12x1xf32, #tpu.memory_space<vmem>>, vector<12x1xf32>
    %77 = vector.broadcast %76 : vector<12x1xf32> to vector<12x316xf32>
    %78 = arith.mulf %75, %77 : vector<12x316xf32>
    %c0_25 = arith.constant 0 : index
    %c0_26 = arith.constant 0 : index
    %79 = vector.load %arg5[%c0_25, %c0_26] : memref<12x1xf32, #tpu.memory_space<vmem>>, vector<12x1xf32>
    %80 = vector.broadcast %79 : vector<12x1xf32> to vector<12x316xf32>
    %81 = arith.addf %78, %80 : vector<12x316xf32>
    %82 = math.tanh %81 : vector<12x316xf32>
    %c0_27 = arith.constant 0 : index
    %c0_28 = arith.constant 0 : index
    %83 = vector.load %arg6[%c0_27, %c0_28] : memref<1x48xf32, #tpu.memory_space<vmem>>, vector<1x48xf32>
    %84 = vector.extract_strided_slice %83 {offsets = [0, 0], sizes = [1, 12], strides = [1, 1]} : vector<1x48xf32> to vector<1x12xf32>
    %85 = vector.extract_strided_slice %82 {offsets = [0, 0], sizes = [12, 295], strides = [1, 1]} : vector<12x316xf32> to vector<12x295xf32>
    %cst_29 = arith.constant dense<0.000000e+00> : vector<1x295xf32>
    %86 = tpu.matmul %84, %85, %cst_29 {dimension_numbers = #tpu.dot_dimension_numbers<[1], [0], [0], [1], [0, 0, 1, 1], [], []>} : vector<1x12xf32>, vector<12x295xf32>, vector<1x295xf32> -> vector<1x295xf32>
    %87 = vector.extract_strided_slice %83 {offsets = [0, 12], sizes = [1, 12], strides = [1, 1]} : vector<1x48xf32> to vector<1x12xf32>
    %88 = vector.extract_strided_slice %82 {offsets = [0, 1], sizes = [12, 295], strides = [1, 1]} : vector<12x316xf32> to vector<12x295xf32>
    %cst_30 = arith.constant dense<0.000000e+00> : vector<1x295xf32>
    %89 = tpu.matmul %87, %88, %cst_30 {dimension_numbers = #tpu.dot_dimension_numbers<[1], [0], [0], [1], [0, 0, 1, 1], [], []>} : vector<1x12xf32>, vector<12x295xf32>, vector<1x295xf32> -> vector<1x295xf32>
    %90 = arith.addf %86, %89 : vector<1x295xf32>
    %91 = vector.extract_strided_slice %83 {offsets = [0, 24], sizes = [1, 12], strides = [1, 1]} : vector<1x48xf32> to vector<1x12xf32>
    %92 = vector.extract_strided_slice %82 {offsets = [0, 20], sizes = [12, 295], strides = [1, 1]} : vector<12x316xf32> to vector<12x295xf32>
    %cst_31 = arith.constant dense<0.000000e+00> : vector<1x295xf32>
    %93 = tpu.matmul %91, %92, %cst_31 {dimension_numbers = #tpu.dot_dimension_numbers<[1], [0], [0], [1], [0, 0, 1, 1], [], []>} : vector<1x12xf32>, vector<12x295xf32>, vector<1x295xf32> -> vector<1x295xf32>
    %94 = arith.addf %90, %93 : vector<1x295xf32>
    %95 = vector.extract_strided_slice %83 {offsets = [0, 36], sizes = [1, 12], strides = [1, 1]} : vector<1x48xf32> to vector<1x12xf32>
    %96 = vector.extract_strided_slice %82 {offsets = [0, 21], sizes = [12, 295], strides = [1, 1]} : vector<12x316xf32> to vector<12x295xf32>
    %cst_32 = arith.constant dense<0.000000e+00> : vector<1x295xf32>
    %97 = tpu.matmul %95, %96, %cst_32 {dimension_numbers = #tpu.dot_dimension_numbers<[1], [0], [0], [1], [0, 0, 1, 1], [], []>} : vector<1x12xf32>, vector<12x295xf32>, vector<1x295xf32> -> vector<1x295xf32>
    %98 = arith.addf %94, %97 : vector<1x295xf32>
    %99 = arith.negf %98 : vector<1x295xf32>
    %100 = math.exp %99 : vector<1x295xf32>
    %cst_33 = arith.constant 1.000000e+00 : f32
    %101 = vector.broadcast %cst_33 : f32 to vector<1x295xf32>
    %102 = arith.addf %101, %100 : vector<1x295xf32>
    %103 = arith.divf %101, %102 : vector<1x295xf32>
    %c0_34 = arith.constant 0 : index
    %c0_35 = arith.constant 0 : index
    %c0_36 = arith.constant 0 : index
    %104 = vector.load %arg7[%c0_34, %c0_35, %c0_36] : memref<1x1x295xf32, #tpu.memory_space<vmem>>, vector<1x1x295xf32>
    %105 = vector.shape_cast %104 : vector<1x1x295xf32> to vector<1x295xf32>
    %106 = vector.shape_cast %103 : vector<1x295xf32> to vector<1x1x295xf32>
    tpu.vector_store %arg7[%c0_34, %c0_35, %c0_36], %106 {strides = array<i32>} : memref<1x1x295xf32, #tpu.memory_space<vmem>>, vector<1x1x295xf32>,
    return
  }
  func.func @transform_0(%arg0: i32) -> (i32, i32, i32) {
    %c0_i32 = arith.constant 0 : i32
    %c0_i32_0 = arith.constant 0 : i32
    %c0_i32_1 = arith.constant 0 : i32
    return %arg0, %c0_i32, %c0_i32_0 : i32, i32, i32
  }
  func.func @transform_1(%arg0: i32) -> (i32, i32) {
    %c0_i32 = arith.constant 0 : i32
    %c0_i32_0 = arith.constant 0 : i32
    %c0_i32_1 = arith.constant 0 : i32
    return %c0_i32, %c0_i32_0 : i32, i32
  }
  func.func @transform_2(%arg0: i32) -> (i32, i32) {
    %c0_i32 = arith.constant 0 : i32
    %c0_i32_0 = arith.constant 0 : i32
    %c0_i32_1 = arith.constant 0 : i32
    return %c0_i32, %c0_i32_0 : i32, i32
  }
  func.func @transform_3(%arg0: i32) -> (i32, i32) {
    %c0_i32 = arith.constant 0 : i32
    %c0_i32_0 = arith.constant 0 : i32
    %c0_i32_1 = arith.constant 0 : i32
    return %c0_i32, %c0_i32_0 : i32, i32
  }
  func.func @transform_4(%arg0: i32) -> (i32, i32) {
    %c0_i32 = arith.constant 0 : i32
    %c0_i32_0 = arith.constant 0 : i32
    %c0_i32_1 = arith.constant 0 : i32
    return %c0_i32, %c0_i32_0 : i32, i32
  }
  func.func @transform_5(%arg0: i32) -> (i32, i32) {
    %c0_i32 = arith.constant 0 : i32
    %c0_i32_0 = arith.constant 0 : i32
    %c0_i32_1 = arith.constant 0 : i32
    return %c0_i32, %c0_i32_0 : i32, i32
  }
  func.func @transform_6(%arg0: i32) -> (i32, i32, i32) {
    %c0_i32 = arith.constant 0 : i32
    %c0_i32_0 = arith.constant 0 : i32
    %c0_i32_1 = arith.constant 0 : i32
    return %arg0, %c0_i32, %c0_i32_0 : i32, i32, i32
  }
}

module attributes {stable_mosaic.version = 11 : i64} {
  func.func @_growth_kernel(%arg0: i32, %arg1: memref<1x24x144xf32, #tpu.memory_space<vmem>>, %arg2: memref<1x1x96xf32, #tpu.memory_space<vmem>>, %arg3: memref<1x144xf32, #tpu.memory_space<vmem>>, %arg4: memref<12x24xf32, #tpu.memory_space<vmem>>, %arg5: memref<12x1xf32, #tpu.memory_space<vmem>>, %arg6: memref<12x108xf32, #tpu.memory_space<vmem>>, %arg7: memref<6x108xf32, #tpu.memory_space<vmem>>, %arg8: memref<12x6xf32, #tpu.memory_space<vmem>>, %arg9: memref<12x1xf32, #tpu.memory_space<vmem>>, %arg10: memref<6x12xf32, #tpu.memory_space<vmem>>, %arg11: memref<1x6x92xf32, #tpu.memory_space<vmem>>) attributes {dimension_semantics = [#tpu.dimension_semantics<parallel>], iteration_bounds = array<i64: 2>, scalar_prefetch = 0 : i64, scratch_operands = 0 : i64, tpu.core_type = #tpu.core_type<tc>, window_params = [{transform_indices = @transform_0, window_bounds = array<i64: 1, 24, 144>}, {transform_indices = @transform_1, window_bounds = array<i64: 1, 1, 96>}, {pipeline_mode = #tpu.pipeline_mode<synchronous>, transform_indices = @transform_2, window_bounds = array<i64: 1, 144>}, {pipeline_mode = #tpu.pipeline_mode<synchronous>, transform_indices = @transform_3, window_bounds = array<i64: 12, 24>}, {pipeline_mode = #tpu.pipeline_mode<synchronous>, transform_indices = @transform_4, window_bounds = array<i64: 12, 1>}, {pipeline_mode = #tpu.pipeline_mode<synchronous>, transform_indices = @transform_5, window_bounds = array<i64: 12, 108>}, {pipeline_mode = #tpu.pipeline_mode<synchronous>, transform_indices = @transform_6, window_bounds = array<i64: 6, 108>}, {pipeline_mode = #tpu.pipeline_mode<synchronous>, transform_indices = @transform_7, window_bounds = array<i64: 12, 6>}, {pipeline_mode = #tpu.pipeline_mode<synchronous>, transform_indices = @transform_8, window_bounds = array<i64: 12, 1>}, {pipeline_mode = #tpu.pipeline_mode<synchronous>, transform_indices = @transform_9, window_bounds = array<i64: 6, 12>}, {transform_indices = @transform_10, window_bounds = array<i64: 1, 6, 92>}]} {
    %c0 = arith.constant 0 : index
    %c0_0 = arith.constant 0 : index
    %c0_1 = arith.constant 0 : index
    %0 = vector.load %arg1[%c0, %c0_0, %c0_1] : memref<1x24x144xf32, #tpu.memory_space<vmem>>, vector<1x24x144xf32>
    %1 = vector.shape_cast %0 : vector<1x24x144xf32> to vector<24x144xf32>
    %c0_2 = arith.constant 0 : index
    %c0_3 = arith.constant 0 : index
    %2 = vector.load %arg4[%c0_2, %c0_3] : memref<12x24xf32, #tpu.memory_space<vmem>>, vector<12x24xf32>
    %cst = arith.constant dense<0.000000e+00> : vector<12x144xf32>
    %3 = tpu.matmul %2, %1, %cst {dimension_numbers = #tpu.dot_dimension_numbers<[1], [0], [0], [1], [0, 0, 1, 1], [], []>} : vector<12x24xf32>, vector<24x144xf32>, vector<12x144xf32> -> vector<12x144xf32>
    %c0_4 = arith.constant 0 : index
    %c0_5 = arith.constant 0 : index
    %4 = vector.load %arg5[%c0_4, %c0_5] : memref<12x1xf32, #tpu.memory_space<vmem>>, vector<12x1xf32>
    %5 = vector.broadcast %4 : vector<12x1xf32> to vector<12x144xf32>
    %6 = arith.addf %3, %5 : vector<12x144xf32>
    %7 = math.tanh %6 : vector<12x144xf32>
    %c0_6 = arith.constant 0 : index
    %c0_7 = arith.constant 0 : index
    %8 = vector.load %arg3[%c0_6, %c0_7] : memref<1x144xf32, #tpu.memory_space<vmem>>, vector<1x144xf32>
    %9 = vector.broadcast %8 : vector<1x144xf32> to vector<12x144xf32>
    %10 = arith.mulf %7, %9 : vector<12x144xf32>
    %c0_8 = arith.constant 0 : index
    %c0_9 = arith.constant 0 : index
    %11 = vector.load %arg6[%c0_8, %c0_9] : memref<12x108xf32, #tpu.memory_space<vmem>>, vector<12x108xf32>
    %12 = vector.extract_strided_slice %11 {offsets = [0, 0], sizes = [12, 12], strides = [1, 1]} : vector<12x108xf32> to vector<12x12xf32>
    %13 = vector.extract_strided_slice %10 {offsets = [0, 0], sizes = [12, 118], strides = [1, 1]} : vector<12x144xf32> to vector<12x118xf32>
    %cst_10 = arith.constant dense<0.000000e+00> : vector<12x118xf32>
    %14 = tpu.matmul %12, %13, %cst_10 {dimension_numbers = #tpu.dot_dimension_numbers<[1], [0], [0], [1], [0, 0, 1, 1], [], []>} : vector<12x12xf32>, vector<12x118xf32>, vector<12x118xf32> -> vector<12x118xf32>
    %15 = vector.extract_strided_slice %11 {offsets = [0, 12], sizes = [12, 12], strides = [1, 1]} : vector<12x108xf32> to vector<12x12xf32>
    %16 = vector.extract_strided_slice %10 {offsets = [0, 1], sizes = [12, 118], strides = [1, 1]} : vector<12x144xf32> to vector<12x118xf32>
    %cst_11 = arith.constant dense<0.000000e+00> : vector<12x118xf32>
    %17 = tpu.matmul %15, %16, %cst_11 {dimension_numbers = #tpu.dot_dimension_numbers<[1], [0], [0], [1], [0, 0, 1, 1], [], []>} : vector<12x12xf32>, vector<12x118xf32>, vector<12x118xf32> -> vector<12x118xf32>
    %18 = arith.addf %14, %17 : vector<12x118xf32>
    %19 = vector.extract_strided_slice %11 {offsets = [0, 24], sizes = [12, 12], strides = [1, 1]} : vector<12x108xf32> to vector<12x12xf32>
    %20 = vector.extract_strided_slice %10 {offsets = [0, 2], sizes = [12, 118], strides = [1, 1]} : vector<12x144xf32> to vector<12x118xf32>
    %cst_12 = arith.constant dense<0.000000e+00> : vector<12x118xf32>
    %21 = tpu.matmul %19, %20, %cst_12 {dimension_numbers = #tpu.dot_dimension_numbers<[1], [0], [0], [1], [0, 0, 1, 1], [], []>} : vector<12x12xf32>, vector<12x118xf32>, vector<12x118xf32> -> vector<12x118xf32>
    %22 = arith.addf %18, %21 : vector<12x118xf32>
    %23 = vector.extract_strided_slice %11 {offsets = [0, 36], sizes = [12, 12], strides = [1, 1]} : vector<12x108xf32> to vector<12x12xf32>
    %24 = vector.extract_strided_slice %10 {offsets = [0, 12], sizes = [12, 118], strides = [1, 1]} : vector<12x144xf32> to vector<12x118xf32>
    %cst_13 = arith.constant dense<0.000000e+00> : vector<12x118xf32>
    %25 = tpu.matmul %23, %24, %cst_13 {dimension_numbers = #tpu.dot_dimension_numbers<[1], [0], [0], [1], [0, 0, 1, 1], [], []>} : vector<12x12xf32>, vector<12x118xf32>, vector<12x118xf32> -> vector<12x118xf32>
    %26 = arith.addf %22, %25 : vector<12x118xf32>
    %27 = vector.extract_strided_slice %11 {offsets = [0, 48], sizes = [12, 12], strides = [1, 1]} : vector<12x108xf32> to vector<12x12xf32>
    %28 = vector.extract_strided_slice %10 {offsets = [0, 13], sizes = [12, 118], strides = [1, 1]} : vector<12x144xf32> to vector<12x118xf32>
    %cst_14 = arith.constant dense<0.000000e+00> : vector<12x118xf32>
    %29 = tpu.matmul %27, %28, %cst_14 {dimension_numbers = #tpu.dot_dimension_numbers<[1], [0], [0], [1], [0, 0, 1, 1], [], []>} : vector<12x12xf32>, vector<12x118xf32>, vector<12x118xf32> -> vector<12x118xf32>
    %30 = arith.addf %26, %29 : vector<12x118xf32>
    %31 = vector.extract_strided_slice %11 {offsets = [0, 60], sizes = [12, 12], strides = [1, 1]} : vector<12x108xf32> to vector<12x12xf32>
    %32 = vector.extract_strided_slice %10 {offsets = [0, 14], sizes = [12, 118], strides = [1, 1]} : vector<12x144xf32> to vector<12x118xf32>
    %cst_15 = arith.constant dense<0.000000e+00> : vector<12x118xf32>
    %33 = tpu.matmul %31, %32, %cst_15 {dimension_numbers = #tpu.dot_dimension_numbers<[1], [0], [0], [1], [0, 0, 1, 1], [], []>} : vector<12x12xf32>, vector<12x118xf32>, vector<12x118xf32> -> vector<12x118xf32>
    %34 = arith.addf %30, %33 : vector<12x118xf32>
    %35 = vector.extract_strided_slice %11 {offsets = [0, 72], sizes = [12, 12], strides = [1, 1]} : vector<12x108xf32> to vector<12x12xf32>
    %36 = vector.extract_strided_slice %10 {offsets = [0, 24], sizes = [12, 118], strides = [1, 1]} : vector<12x144xf32> to vector<12x118xf32>
    %cst_16 = arith.constant dense<0.000000e+00> : vector<12x118xf32>
    %37 = tpu.matmul %35, %36, %cst_16 {dimension_numbers = #tpu.dot_dimension_numbers<[1], [0], [0], [1], [0, 0, 1, 1], [], []>} : vector<12x12xf32>, vector<12x118xf32>, vector<12x118xf32> -> vector<12x118xf32>
    %38 = arith.addf %34, %37 : vector<12x118xf32>
    %39 = vector.extract_strided_slice %11 {offsets = [0, 84], sizes = [12, 12], strides = [1, 1]} : vector<12x108xf32> to vector<12x12xf32>
    %40 = vector.extract_strided_slice %10 {offsets = [0, 25], sizes = [12, 118], strides = [1, 1]} : vector<12x144xf32> to vector<12x118xf32>
    %cst_17 = arith.constant dense<0.000000e+00> : vector<12x118xf32>
    %41 = tpu.matmul %39, %40, %cst_17 {dimension_numbers = #tpu.dot_dimension_numbers<[1], [0], [0], [1], [0, 0, 1, 1], [], []>} : vector<12x12xf32>, vector<12x118xf32>, vector<12x118xf32> -> vector<12x118xf32>
    %42 = arith.addf %38, %41 : vector<12x118xf32>
    %43 = vector.extract_strided_slice %11 {offsets = [0, 96], sizes = [12, 12], strides = [1, 1]} : vector<12x108xf32> to vector<12x12xf32>
    %44 = vector.extract_strided_slice %10 {offsets = [0, 26], sizes = [12, 118], strides = [1, 1]} : vector<12x144xf32> to vector<12x118xf32>
    %cst_18 = arith.constant dense<0.000000e+00> : vector<12x118xf32>
    %45 = tpu.matmul %43, %44, %cst_18 {dimension_numbers = #tpu.dot_dimension_numbers<[1], [0], [0], [1], [0, 0, 1, 1], [], []>} : vector<12x12xf32>, vector<12x118xf32>, vector<12x118xf32> -> vector<12x118xf32>
    %46 = arith.addf %42, %45 : vector<12x118xf32>
    %47 = math.tanh %46 : vector<12x118xf32>
    %c0_19 = arith.constant 0 : index
    %c0_20 = arith.constant 0 : index
    %48 = vector.load %arg7[%c0_19, %c0_20] : memref<6x108xf32, #tpu.memory_space<vmem>>, vector<6x108xf32>
    %49 = vector.extract_strided_slice %48 {offsets = [0, 0], sizes = [6, 12], strides = [1, 1]} : vector<6x108xf32> to vector<6x12xf32>
    %50 = vector.extract_strided_slice %47 {offsets = [0, 0], sizes = [12, 92], strides = [1, 1]} : vector<12x118xf32> to vector<12x92xf32>
    %cst_21 = arith.constant dense<0.000000e+00> : vector<6x92xf32>
    %51 = tpu.matmul %49, %50, %cst_21 {dimension_numbers = #tpu.dot_dimension_numbers<[1], [0], [0], [1], [0, 0, 1, 1], [], []>} : vector<6x12xf32>, vector<12x92xf32>, vector<6x92xf32> -> vector<6x92xf32>
    %52 = vector.extract_strided_slice %48 {offsets = [0, 12], sizes = [6, 12], strides = [1, 1]} : vector<6x108xf32> to vector<6x12xf32>
    %53 = vector.extract_strided_slice %47 {offsets = [0, 1], sizes = [12, 92], strides = [1, 1]} : vector<12x118xf32> to vector<12x92xf32>
    %cst_22 = arith.constant dense<0.000000e+00> : vector<6x92xf32>
    %54 = tpu.matmul %52, %53, %cst_22 {dimension_numbers = #tpu.dot_dimension_numbers<[1], [0], [0], [1], [0, 0, 1, 1], [], []>} : vector<6x12xf32>, vector<12x92xf32>, vector<6x92xf32> -> vector<6x92xf32>
    %55 = arith.addf %51, %54 : vector<6x92xf32>
    %56 = vector.extract_strided_slice %48 {offsets = [0, 24], sizes = [6, 12], strides = [1, 1]} : vector<6x108xf32> to vector<6x12xf32>
    %57 = vector.extract_strided_slice %47 {offsets = [0, 2], sizes = [12, 92], strides = [1, 1]} : vector<12x118xf32> to vector<12x92xf32>
    %cst_23 = arith.constant dense<0.000000e+00> : vector<6x92xf32>
    %58 = tpu.matmul %56, %57, %cst_23 {dimension_numbers = #tpu.dot_dimension_numbers<[1], [0], [0], [1], [0, 0, 1, 1], [], []>} : vector<6x12xf32>, vector<12x92xf32>, vector<6x92xf32> -> vector<6x92xf32>
    %59 = arith.addf %55, %58 : vector<6x92xf32>
    %60 = vector.extract_strided_slice %48 {offsets = [0, 36], sizes = [6, 12], strides = [1, 1]} : vector<6x108xf32> to vector<6x12xf32>
    %61 = vector.extract_strided_slice %47 {offsets = [0, 12], sizes = [12, 92], strides = [1, 1]} : vector<12x118xf32> to vector<12x92xf32>
    %cst_24 = arith.constant dense<0.000000e+00> : vector<6x92xf32>
    %62 = tpu.matmul %60, %61, %cst_24 {dimension_numbers = #tpu.dot_dimension_numbers<[1], [0], [0], [1], [0, 0, 1, 1], [], []>} : vector<6x12xf32>, vector<12x92xf32>, vector<6x92xf32> -> vector<6x92xf32>
    %63 = arith.addf %59, %62 : vector<6x92xf32>
    %64 = vector.extract_strided_slice %48 {offsets = [0, 48], sizes = [6, 12], strides = [1, 1]} : vector<6x108xf32> to vector<6x12xf32>
    %65 = vector.extract_strided_slice %47 {offsets = [0, 13], sizes = [12, 92], strides = [1, 1]} : vector<12x118xf32> to vector<12x92xf32>
    %cst_25 = arith.constant dense<0.000000e+00> : vector<6x92xf32>
    %66 = tpu.matmul %64, %65, %cst_25 {dimension_numbers = #tpu.dot_dimension_numbers<[1], [0], [0], [1], [0, 0, 1, 1], [], []>} : vector<6x12xf32>, vector<12x92xf32>, vector<6x92xf32> -> vector<6x92xf32>
    %67 = arith.addf %63, %66 : vector<6x92xf32>
    %68 = vector.extract_strided_slice %48 {offsets = [0, 60], sizes = [6, 12], strides = [1, 1]} : vector<6x108xf32> to vector<6x12xf32>
    %69 = vector.extract_strided_slice %47 {offsets = [0, 14], sizes = [12, 92], strides = [1, 1]} : vector<12x118xf32> to vector<12x92xf32>
    %cst_26 = arith.constant dense<0.000000e+00> : vector<6x92xf32>
    %70 = tpu.matmul %68, %69, %cst_26 {dimension_numbers = #tpu.dot_dimension_numbers<[1], [0], [0], [1], [0, 0, 1, 1], [], []>} : vector<6x12xf32>, vector<12x92xf32>, vector<6x92xf32> -> vector<6x92xf32>
    %71 = arith.addf %67, %70 : vector<6x92xf32>
    %72 = vector.extract_strided_slice %48 {offsets = [0, 72], sizes = [6, 12], strides = [1, 1]} : vector<6x108xf32> to vector<6x12xf32>
    %73 = vector.extract_strided_slice %47 {offsets = [0, 24], sizes = [12, 92], strides = [1, 1]} : vector<12x118xf32> to vector<12x92xf32>
    %cst_27 = arith.constant dense<0.000000e+00> : vector<6x92xf32>
    %74 = tpu.matmul %72, %73, %cst_27 {dimension_numbers = #tpu.dot_dimension_numbers<[1], [0], [0], [1], [0, 0, 1, 1], [], []>} : vector<6x12xf32>, vector<12x92xf32>, vector<6x92xf32> -> vector<6x92xf32>
    %75 = arith.addf %71, %74 : vector<6x92xf32>
    %76 = vector.extract_strided_slice %48 {offsets = [0, 84], sizes = [6, 12], strides = [1, 1]} : vector<6x108xf32> to vector<6x12xf32>
    %77 = vector.extract_strided_slice %47 {offsets = [0, 25], sizes = [12, 92], strides = [1, 1]} : vector<12x118xf32> to vector<12x92xf32>
    %cst_28 = arith.constant dense<0.000000e+00> : vector<6x92xf32>
    %78 = tpu.matmul %76, %77, %cst_28 {dimension_numbers = #tpu.dot_dimension_numbers<[1], [0], [0], [1], [0, 0, 1, 1], [], []>} : vector<6x12xf32>, vector<12x92xf32>, vector<6x92xf32> -> vector<6x92xf32>
    %79 = arith.addf %75, %78 : vector<6x92xf32>
    %80 = vector.extract_strided_slice %48 {offsets = [0, 96], sizes = [6, 12], strides = [1, 1]} : vector<6x108xf32> to vector<6x12xf32>
    %81 = vector.extract_strided_slice %47 {offsets = [0, 26], sizes = [12, 92], strides = [1, 1]} : vector<12x118xf32> to vector<12x92xf32>
    %cst_29 = arith.constant dense<0.000000e+00> : vector<6x92xf32>
    %82 = tpu.matmul %80, %81, %cst_29 {dimension_numbers = #tpu.dot_dimension_numbers<[1], [0], [0], [1], [0, 0, 1, 1], [], []>} : vector<6x12xf32>, vector<12x92xf32>, vector<6x92xf32> -> vector<6x92xf32>
    %83 = arith.addf %79, %82 : vector<6x92xf32>
    %84 = math.tanh %83 : vector<6x92xf32>
    %c0_30 = arith.constant 0 : index
    %c0_31 = arith.constant 0 : index
    %85 = vector.load %arg8[%c0_30, %c0_31] : memref<12x6xf32, #tpu.memory_space<vmem>>, vector<12x6xf32>
    %cst_32 = arith.constant dense<0.000000e+00> : vector<12x92xf32>
    %86 = tpu.matmul %85, %84, %cst_32 {dimension_numbers = #tpu.dot_dimension_numbers<[1], [0], [0], [1], [0, 0, 1, 1], [], []>} : vector<12x6xf32>, vector<6x92xf32>, vector<12x92xf32> -> vector<12x92xf32>
    %c0_33 = arith.constant 0 : index
    %c0_34 = arith.constant 0 : index
    %87 = vector.load %arg9[%c0_33, %c0_34] : memref<12x1xf32, #tpu.memory_space<vmem>>, vector<12x1xf32>
    %88 = vector.broadcast %87 : vector<12x1xf32> to vector<12x92xf32>
    %89 = arith.addf %86, %88 : vector<12x92xf32>
    %90 = math.tanh %89 : vector<12x92xf32>
    %c0_35 = arith.constant 0 : index
    %c0_36 = arith.constant 0 : index
    %91 = vector.load %arg10[%c0_35, %c0_36] : memref<6x12xf32, #tpu.memory_space<vmem>>, vector<6x12xf32>
    %cst_37 = arith.constant dense<0.000000e+00> : vector<6x92xf32>
    %92 = tpu.matmul %91, %90, %cst_37 {dimension_numbers = #tpu.dot_dimension_numbers<[1], [0], [0], [1], [0, 0, 1, 1], [], []>} : vector<6x12xf32>, vector<12x92xf32>, vector<6x92xf32> -> vector<6x92xf32>
    %c0_38 = arith.constant 0 : index
    %c0_39 = arith.constant 0 : index
    %c0_40 = arith.constant 0 : index
    %93 = vector.load %arg2[%c0_38, %c0_39, %c0_40] : memref<1x1x96xf32, #tpu.memory_space<vmem>>, vector<1x1x96xf32>
    %94 = vector.shape_cast %93 : vector<1x1x96xf32> to vector<1x96xf32>
    %95 = vector.extract_strided_slice %94 {offsets = [0, 0], sizes = [1, 92], strides = [1, 1]} : vector<1x96xf32> to vector<1x92xf32>
    %cst_41 = arith.constant 1.000000e+00 : f32
    %96 = vector.broadcast %cst_41 : f32 to vector<1x92xf32>
    %97 = arith.subf %96, %95 : vector<1x92xf32>
    %98 = vector.broadcast %97 : vector<1x92xf32> to vector<6x92xf32>
    %99 = arith.mulf %84, %98 : vector<6x92xf32>
    %100 = vector.broadcast %95 : vector<1x92xf32> to vector<6x92xf32>
    %101 = arith.mulf %100, %92 : vector<6x92xf32>
    %102 = arith.addf %99, %101 : vector<6x92xf32>
    %103 = vector.extract_strided_slice %102 {offsets = [0, 0], sizes = [3, 92], strides = [1, 1]} : vector<6x92xf32> to vector<3x92xf32>
    %104 = arith.negf %103 : vector<3x92xf32>
    %105 = math.exp %104 : vector<3x92xf32>
    %cst_42 = arith.constant 1.000000e+00 : f32
    %106 = vector.broadcast %cst_42 : f32 to vector<3x92xf32>
    %107 = arith.addf %106, %105 : vector<3x92xf32>
    %108 = arith.divf %106, %107 : vector<3x92xf32>
    %c0_43 = arith.constant 0 : index
    %c0_44 = arith.constant 0 : index
    %c0_45 = arith.constant 0 : index
    %109 = vector.load %arg11[%c0_43, %c0_44, %c0_45] : memref<1x6x92xf32, #tpu.memory_space<vmem>>, vector<1x3x92xf32>
    %110 = vector.shape_cast %109 : vector<1x3x92xf32> to vector<3x92xf32>
    %111 = vector.shape_cast %108 : vector<3x92xf32> to vector<1x3x92xf32>
    tpu.vector_store %arg11[%c0_43, %c0_44, %c0_45], %111 {strides = array<i32>} : memref<1x6x92xf32, #tpu.memory_space<vmem>>, vector<1x3x92xf32>,
    %112 = vector.extract_strided_slice %102 {offsets = [3, 0], sizes = [3, 92], strides = [1, 1]} : vector<6x92xf32> to vector<3x92xf32>
    %c0_46 = arith.constant 0 : index
    %c3 = arith.constant 3 : index
    %c0_47 = arith.constant 0 : index
    %113 = vector.load %arg11[%c0_46, %c3, %c0_47] : memref<1x6x92xf32, #tpu.memory_space<vmem>>, vector<1x3x92xf32>
    %114 = vector.shape_cast %113 : vector<1x3x92xf32> to vector<3x92xf32>
    %115 = vector.shape_cast %112 : vector<3x92xf32> to vector<1x3x92xf32>
    tpu.vector_store %arg11[%c0_46, %c3, %c0_47], %115 {strides = array<i32>} : memref<1x6x92xf32, #tpu.memory_space<vmem>>, vector<1x3x92xf32>,
    return
  }
  func.func @transform_0(%arg0: i32) -> (i32, i32, i32) {
    %c0_i32 = arith.constant 0 : i32
    %c0_i32_0 = arith.constant 0 : i32
    %c0_i32_1 = arith.constant 0 : i32
    return %arg0, %c0_i32, %c0_i32_0 : i32, i32, i32
  }
  func.func @transform_1(%arg0: i32) -> (i32, i32, i32) {
    %c0_i32 = arith.constant 0 : i32
    %c0_i32_0 = arith.constant 0 : i32
    %c0_i32_1 = arith.constant 0 : i32
    return %arg0, %c0_i32, %c0_i32_0 : i32, i32, i32
  }
  func.func @transform_2(%arg0: i32) -> (i32, i32) {
    %c0_i32 = arith.constant 0 : i32
    %c0_i32_0 = arith.constant 0 : i32
    %c0_i32_1 = arith.constant 0 : i32
    return %c0_i32, %c0_i32_0 : i32, i32
  }
  func.func @transform_3(%arg0: i32) -> (i32, i32) {
    %c0_i32 = arith.constant 0 : i32
    %c0_i32_0 = arith.constant 0 : i32
    %c0_i32_1 = arith.constant 0 : i32
    return %c0_i32, %c0_i32_0 : i32, i32
  }
  func.func @transform_4(%arg0: i32) -> (i32, i32) {
    %c0_i32 = arith.constant 0 : i32
    %c0_i32_0 = arith.constant 0 : i32
    %c0_i32_1 = arith.constant 0 : i32
    return %c0_i32, %c0_i32_0 : i32, i32
  }
  func.func @transform_5(%arg0: i32) -> (i32, i32) {
    %c0_i32 = arith.constant 0 : i32
    %c0_i32_0 = arith.constant 0 : i32
    %c0_i32_1 = arith.constant 0 : i32
    return %c0_i32, %c0_i32_0 : i32, i32
  }
  func.func @transform_6(%arg0: i32) -> (i32, i32) {
    %c0_i32 = arith.constant 0 : i32
    %c0_i32_0 = arith.constant 0 : i32
    %c0_i32_1 = arith.constant 0 : i32
    return %c0_i32, %c0_i32_0 : i32, i32
  }
  func.func @transform_7(%arg0: i32) -> (i32, i32) {
    %c0_i32 = arith.constant 0 : i32
    %c0_i32_0 = arith.constant 0 : i32
    %c0_i32_1 = arith.constant 0 : i32
    return %c0_i32, %c0_i32_0 : i32, i32
  }
  func.func @transform_8(%arg0: i32) -> (i32, i32) {
    %c0_i32 = arith.constant 0 : i32
    %c0_i32_0 = arith.constant 0 : i32
    %c0_i32_1 = arith.constant 0 : i32
    return %c0_i32, %c0_i32_0 : i32, i32
  }
  func.func @transform_9(%arg0: i32) -> (i32, i32) {
    %c0_i32 = arith.constant 0 : i32
    %c0_i32_0 = arith.constant 0 : i32
    %c0_i32_1 = arith.constant 0 : i32
    return %c0_i32, %c0_i32_0 : i32, i32
  }
  func.func @transform_10(%arg0: i32) -> (i32, i32, i32) {
    %c0_i32 = arith.constant 0 : i32
    %c0_i32_0 = arith.constant 0 : i32
    %c0_i32_1 = arith.constant 0 : i32
    return %arg0, %c0_i32, %c0_i32_0 : i32, i32, i32
  }
}

</mosaic_0001>

<llo_original>
// kernel: pattern_encode_forward.3
$region0: #{pattern_encode_forward.3}
  #allocation0 [shape = 'u32[]', space=smem, size = 0x4, offset = 0x4, fixed_abs, tag = 'smem constant byte address 0x4 - core index']
  #allocation1 [shape = 'u32[72,128]{1,0:T(1,128)}', space=vmem, size = 0x9000, scoped, tag = 'internal scratch']
  %s0 = inlined_call_operand.vmem [shape: f32[6,512], index: 0, kind: input, shape index: {}]
  %s1 = inlined_call_operand.vmem [shape: f32[12,6], index: 1, kind: input, shape index: {}]
  %s2 = inlined_call_operand.vmem [shape: f32[12,1], index: 2, kind: input, shape index: {}]
  %s3 = inlined_call_operand.vmem [shape: f32[1,12], index: 3, kind: input, shape index: {}]
  %s4 = inlined_call_operand.vmem [shape: f32[1,512], index: 4, kind: output, shape index: {}]
  %s5 = sld [smem:[#allocation0]]
  $region49: #{pattern_encode_forward.3} parent=0
    _
  %s7 = ssub.s32 1, %s5
  %s8 = scalar_select 0, %s7, %s5
  loop: start=0, step=1, limit=4
  $region2: #{pattern_encode_forward.3} parent=0 // loop_pre_header
    _
  $region3: #{pattern_encode_forward.3} parent=0 // loop_header
    %s10 = sphi 0, %s14
    %p11 = scmp.ge.s32.totalorder %s10, 4
    %s20 = sphi 0, %s22
    %s23 = sphi 0, %s20
    %s24 = sphi 0, %s23
    %s40 = sphi 0, %s24
    %s44 = sphi 0, %s44
    %s46 = sphi 0, %s44
    %s47 = sphi 0, %s46
    %s61 = sphi 0, %s47
    %s65 = sphi 0, %s65
    %s67 = sphi 0, %s65
    %s68 = sphi 0, %s67
    %s82 = sphi 0, %s68
    %s86 = sphi 0, %s86
    %s88 = sphi 0, %s86
    %s89 = sphi 0, %s88
    %s103 = sphi 0, %s89
    %s109 = sphi 0, %s111
    %s112 = sphi 0, %s109
    %s113 = sphi 0, %s112
    %s129 = sphi 0, %s113
  $region4: #{pattern_encode_forward.3} parent=0 // loop_header_branch
    %13 = sbr.rel (%p11) target = $region8
  $region5: #{pattern_encode_forward.3} parent=0 // loop_body
    %s15 = ssub.s32 %s10, 1
    %s16 = ssub.s32 %s10, 2
    %s17 = sadd.s32 %s10, 1
    %s18 = ssub.s32 %s10, %s17
    %p19 = scmp.eq.s32.totalorder %s18, 0
    %s21 = sadd.s32 %s20, 1
    %s22 = scalar_select %p19, %s20, %s21
    %p25 = pneg %p19
    %p26 = scmp.eq.s32.totalorder %s10, 1
    %p27 = por %p25, %p26
    %p28 = scmp.ne.s32.totalorder %s20, %s23
    %p29 = scmp.eq.s32.totalorder %s10, 0
    %p30 = por %p28, %p29
    %p31 = scmp.ne.s32.totalorder %s20, %s23
    %p32 = scmp.eq.s32.totalorder %s15, 1
    %p33 = por %p31, %p32
    %p34 = scmp.ne.s32.totalorder %s23, %s24
    %p35 = scmp.eq.s32.totalorder %s15, 0
    %p36 = por %p34, %p35
    %p37 = scmp.ne.s32.totalorder %s23, %s24
    %p38 = scmp.eq.s32.totalorder %s16, 1
    %p39 = por %p37, %p38
    %p41 = scmp.ne.s32.totalorder %s24, %s40
    %p42 = scmp.eq.s32.totalorder %s16, 0
    %p43 = por %p41, %p42
    %s45 = sadd.s32 %s44, 1
    %p48 = scmp.eq.s32.totalorder %s10, 1
    %p49 = scmp.ne.s32.totalorder %s44, %s46
    %p50 = scmp.eq.s32.totalorder %s10, 0
    %p51 = por %p49, %p50
    %p52 = scmp.ne.s32.totalorder %s44, %s46
    %p53 = scmp.eq.s32.totalorder %s15, 1
    %p54 = por %p52, %p53
    %p55 = scmp.ne.s32.totalorder %s46, %s47
    %p56 = scmp.eq.s32.totalorder %s15, 0
    %p57 = por %p55, %p56
    %p58 = scmp.ne.s32.totalorder %s46, %s47
    %p59 = scmp.eq.s32.totalorder %s16, 1
    %p60 = por %p58, %p59
    %p62 = scmp.ne.s32.totalorder %s47, %s61
    %p63 = scmp.eq.s32.totalorder %s16, 0
    %p64 = por %p62, %p63
    %s66 = sadd.s32 %s65, 1
    %p69 = scmp.eq.s32.totalorder %s10, 1
    %p70 = scmp.ne.s32.totalorder %s65, %s67
    %p71 = scmp.eq.s32.totalorder %s10, 0
    %p72 = por %p70, %p71
    %p73 = scmp.ne.s32.totalorder %s65, %s67
    %p74 = scmp.eq.s32.totalorder %s15, 1
    %p75 = por %p73, %p74
    %p76 = scmp.ne.s32.totalorder %s67, %s68
    %p77 = scmp.eq.s32.totalorder %s15, 0
    %p78 = por %p76, %p77
    %p79 = scmp.ne.s32.totalorder %s67, %s68
    %p80 = scmp.eq.s32.totalorder %s16, 1
    %p81 = por %p79, %p80
    %p83 = scmp.ne.s32.totalorder %s68, %s82
    %p84 = scmp.eq.s32.totalorder %s16, 0
    %p85 = por %p83, %p84
    %s87 = sadd.s32 %s86, 1
    %p90 = scmp.eq.s32.totalorder %s10, 1
    %p91 = scmp.ne.s32.totalorder %s86, %s88
    %p92 = scmp.eq.s32.totalorder %s10, 0
    %p93 = por %p91, %p92
    %p94 = scmp.ne.s32.totalorder %s86, %s88
    %p95 = scmp.eq.s32.totalorder %s15, 1
    %p96 = por %p94, %p95
    %p97 = scmp.ne.s32.totalorder %s88, %s89
    %p98 = scmp.eq.s32.totalorder %s15, 0
    %p99 = por %p97, %p98
    %p100 = scmp.ne.s32.totalorder %s88, %s89
    %p101 = scmp.eq.s32.totalorder %s16, 1
    %p102 = por %p100, %p101
    %p104 = scmp.ne.s32.totalorder %s89, %s103
    %p105 = scmp.eq.s32.totalorder %s16, 0
    %p106 = por %p104, %p105
    %s107 = ssub.s32 %s10, %s17
    %p108 = scmp.eq.s32.totalorder %s107, 0
    %s110 = sadd.s32 %s109, 1
    %s111 = scalar_select %p108, %s109, %s110
    %p114 = pneg %p108
    %p115 = scmp.eq.s32.totalorder %s10, 1
    %p116 = por %p114, %p115
    %p117 = scmp.ne.s32.totalorder %s109, %s112
    %p118 = scmp.eq.s32.totalorder %s10, 0
    %p119 = por %p117, %p118
    %p120 = scmp.ne.s32.totalorder %s109, %s112
    %p121 = scmp.eq.s32.totalorder %s15, 1
    %p122 = por %p120, %p121
    %p123 = scmp.ne.s32.totalorder %s112, %s113
    %p124 = scmp.eq.s32.totalorder %s15, 0
    %p125 = por %p123, %p124
    %p126 = scmp.ne.s32.totalorder %s112, %s113
    %p127 = scmp.eq.s32.totalorder %s16, 1
    %p128 = por %p126, %p127
    %p130 = scmp.ne.s32.totalorder %s113, %s129
    %p131 = scmp.eq.s32.totalorder %s16, 0
    %p132 = por %p130, %p131
    %p133 = scmp.le.s32.totalorder 1, %s10
    %p134 = scmp.lt.s32.totalorder %s10, 3
    %p135 = pnand %p133, %p134
    %p136 = pneg %p135
    // Predicated region
    $region9: #{pattern_encode_forward.3} parent=5 // pred_check
      _
    $region10: #{pattern_encode_forward.3} parent=5 // pred_check_branch
      %138 = sbr.rel (%p135) target = $region12
    $region11: #{pattern_encode_forward.3} parent=5 // pred_region
      %s139 = ssub.s32 %s10, 1
      // Predicated region
      $region13: #{pattern_encode_forward.3} parent=11 // pred_check
        %p140 = pneg %p57
      $region14: #{pattern_encode_forward.3} parent=11 // pred_check_branch
        %142 = sbr.rel (%p140) target = $region16
      $region15: #{pattern_encode_forward.3} parent=11 // pred_region
        _
      $region16: #{pattern_encode_forward.3} parent=11 // pred_fallthru
        _
      // Predicated region
      $region17: #{pattern_encode_forward.3} parent=11 // pred_check
        %p143 = pneg %p78
      $region18: #{pattern_encode_forward.3} parent=11 // pred_check_branch
        %145 = sbr.rel (%p143) target = $region20
      $region19: #{pattern_encode_forward.3} parent=11 // pred_region
        _
      $region20: #{pattern_encode_forward.3} parent=11 // pred_fallthru
        _
      // Predicated region
      $region21: #{pattern_encode_forward.3} parent=11 // pred_check
        %p146 = pneg %p99
      $region22: #{pattern_encode_forward.3} parent=11 // pred_check_branch
        %148 = sbr.rel (%p146) target = $region24
      $region23: #{pattern_encode_forward.3} parent=11 // pred_region
        _
      $region24: #{pattern_encode_forward.3} parent=11 // pred_fallthru
        _
    $region12: #{pattern_encode_forward.3} parent=5 // pred_fallthru
      _
    %p149 = scmp.lt.s32.totalorder %s10, 2
    // Predicated region
    $region25: #{pattern_encode_forward.3} parent=5 // pred_check
      %p150 = pneg %p149
    $region26: #{pattern_encode_forward.3} parent=5 // pred_check_branch
      %152 = sbr.rel (%p150) target = $region28
    $region27: #{pattern_encode_forward.3} parent=5 // pred_region
      // Predicated region
      $region29: #{pattern_encode_forward.3} parent=27 // pred_check
        %p153 = pneg %p30
      $region30: #{pattern_encode_forward.3} parent=27 // pred_check_branch
        %155 = sbr.rel (%p153) target = $region32
      $region31: #{pattern_encode_forward.3} parent=27 // pred_region
        %s156 = smul.u32 2, %s10
        %p157 = scmp.lt.s32.totalorder %s156, 3
        %s158 = scalar_select %p157, %s156, 3
        %s159 = smul.addr %s158, 8
        %s160 = scalar_lea.vmem %s0, %s159
        %s161 = smul.u32 2, %s10
      $region32: #{pattern_encode_forward.3} parent=27 // pred_fallthru
        _
    $region28: #{pattern_encode_forward.3} parent=5 // pred_fallthru
      _
    %p162 = scmp.le.s32.totalorder 1, %s10
    %p163 = scmp.lt.s32.totalorder %s10, 3
    %p164 = pnand %p162, %p163
    %p165 = pneg %p164
    // Predicated region
    $region33: #{pattern_encode_forward.3} parent=5 // pred_check
      _
    $region34: #{pattern_encode_forward.3} parent=5 // pred_check_branch
      %167 = sbr.rel (%p164) target = $region36
    $region35: #{pattern_encode_forward.3} parent=5 // pred_region
      %s168 = ssub.s32 %s10, 1
      %s169 = smul.u32 2, %s15
      %p170 = scmp.lt.s32.totalorder %s169, 3
      %s171 = scalar_select %p170, %s169, 3
      %s172 = smul.addr %s171, 8
      %s173 = scalar_lea.vmem %s0, %s172
      %p174 = pneg %p36
      %p175 = pneg %p33
      %p176 = pneg %p57
      %p177 = pneg %p54
      %p178 = pneg %p78
      %p179 = pneg %p75
      %p180 = pneg %p99
      %p181 = pneg %p96
      %p182 = pneg %p125
      %p183 = pneg %p122
      %s184 = smul.u32 2, %s15
      %p185 = scmp.lt.s32.totalorder %s184, 3
      %s186 = scalar_select %p185, %s184, 3
      %s187 = scalar_lea.vmem %s4, %s186
      %s188 = smul.u32 2, %s15
      %p189 = scmp.lt.s32.totalorder %s188, 3
      %s190 = scalar_select %p189, %s188, 3
      %s191 = smul.addr %s190, 8
      %s192 = scalar_lea.vmem %s0, %s191
      %s193 = smul.u32 2, %s15
      %s194 = smul.u32 2, %s15
      %p195 = scmp.lt.s32.totalorder %s194, 3
      %s196 = scalar_select %p195, %s194, 3
      %s197 = scalar_lea.vmem %s4, %s196
      %s198 = smul.u32 2, %s15
      %v199 = vld [vmem:[%s1] sm:$0xff]
      %v200 = vld [vmem:[%s1 + $0x8] sm:$0xf]
      %v201 = vld [vmem:[%s192] sm:$0x3f]
      %v202 = vld [vmem:[%s192 + $0x8] sm:$0x3f]
      %v203 = vld [vmem:[%s2] sm:$0xff]
      %v204 = vld [vmem:[%s2 + $0x8] sm:$0xf]
      %206 = vset.pattern.permute.xlu0 0
      %207 = vperm.xlu0 %206, %v203
      %v208 = vpop.permute.xlu0 %207
      %211 = vset.pattern.permute.xlu0 0
      %212 = vperm.xlu0 %211, %v204
      %v213 = vpop.permute.xlu0 %212
      %vm215 = vcmask 48128
      %v217 = vsel %vm215, %v199, 0
      %v220 = vsel %vm215, %v200, 0
      %vm222 = vcmask 1045504
      %v224 = vsel %vm222, %v201, 0
      %v227 = vsel %vm222, %v202, 0
      %229 = vmatpush.msra.mxu0 0.0
      %230 = vmatpush.msra.mxu0 0.0
      %231 = vmatpush.msra.mxu0 0.0
      %232 = vmatpush.msra.mxu0 0.0
      %233 = vmatpush.msra.mxu0 0.0
      %234 = vmatpush.msra.mxu0 0.0
      %235 = vmatpush.msra.mxu0 0.0
      %236 = vmatpush.msra.mxu0 0.0
      %237 = vmatpush.msra.mxu0 0.0
      %238 = vmatpush.msra.mxu0 0.0
      %239 = vmatpush.msra.mxu0 0.0
      %240 = vmatpush.msra.mxu0 0.0
      %241 = vmatpush.msra.mxu0 0.0
      %242 = vmatpush.msra.mxu0 0.0
      %243 = vmatpush.msra.mxu0 0.0
      %244 = vmatpush.msra.mxu0 %v224
      %245 = vmatmul.f32.gmra.mxu0 %v217
      %v246 = vpop.f32.mrf.mxu0
      %v247 = vadd.f32 %v208, %v246
      %248 = vmatmul.f32.gmra.mxu0 %v220
      %v249 = vpop.f32.mrf.mxu0
      %v250 = vadd.f32 %v213, %v249
      %251 = vdwg.mxu0
      %252 = vmatpush.msra.mxu0 0.0
      %253 = vmatpush.msra.mxu0 0.0
      %254 = vmatpush.msra.mxu0 0.0
      %255 = vmatpush.msra.mxu0 0.0
      %256 = vmatpush.msra.mxu0 0.0
      %257 = vmatpush.msra.mxu0 0.0
      %258 = vmatpush.msra.mxu0 0.0
      %259 = vmatpush.msra.mxu0 0.0
      %260 = vmatpush.msra.mxu0 0.0
      %261 = vmatpush.msra.mxu0 0.0
      %262 = vmatpush.msra.mxu0 0.0
      %263 = vmatpush.msra.mxu0 0.0
      %264 = vmatpush.msra.mxu0 0.0
      %265 = vmatpush.msra.mxu0 0.0
      %266 = vmatpush.msra.mxu0 0.0
      %267 = vmatpush.msra.mxu0 %v227
      %268 = vmatmul.f32.gmra.mxu0 %v217
      %v269 = vpop.f32.mrf.mxu0
      %v270 = vadd.f32 %v208, %v269
      %271 = vmatmul.f32.gmra.mxu0 %v220
      %v272 = vpop.f32.mrf.mxu0
      %v273 = vadd.f32 %v213, %v272
      %274 = vdwg.mxu0
      %v275 = vtanh.pop %v247
      %v276 = vtanh.pop %v270
      %v277 = vtanh.pop %v250
      %v278 = vtanh.pop %v273
      %v279 = vld [vmem:[%s3] sm:$0x1]
      %vm280 = vcmask 97280
      %v282 = vsel %vm280, %v279, 0
      %vm284 = vcmask 1043456
      %v286 = vsel %vm284, %v277, 0
      %v289 = vsel %vm284, %v278, 0
      %291 = vmatpush.msra.mxu0 0.0
      %292 = vmatpush.msra.mxu0 0.0
      %293 = vmatpush.msra.mxu0 0.0
      %294 = vmatpush.msra.mxu0 0.0
      %295 = vmatpush.msra.mxu0 0.0
      %296 = vmatpush.msra.mxu0 0.0
      %297 = vmatpush.msra.mxu0 0.0
      %298 = vmatpush.msra.mxu0 0.0
      %299 = vmatpush.msra.mxu0 0.0
      %300 = vmatpush.msra.mxu0 0.0
      %301 = vmatpush.msra.mxu0 0.0
      %302 = vmatpush.msra.mxu0 0.0
      %303 = vmatpush.msra.mxu0 0.0
      %304 = vmatpush.msra.mxu0 0.0
      %305 = vmatpush.msra.mxu0 %v286
      %306 = vmatpush.msra.mxu0 %v275
      %307 = vmatmul.f32.gmra.mxu0 %v282
      %v308 = vpop.f32.mrf.mxu0
      %v309 = vadd.f32 0.0, %v308
      %310 = vdwg.mxu0
      %311 = vmatpush.msra.mxu0 0.0
      %312 = vmatpush.msra.mxu0 0.0
      %313 = vmatpush.msra.mxu0 0.0
      %314 = vmatpush.msra.mxu0 0.0
      %315 = vmatpush.msra.mxu0 0.0
      %316 = vmatpush.msra.mxu0 0.0
      %317 = vmatpush.msra.mxu0 0.0
      %318 = vmatpush.msra.mxu0 0.0
      %319 = vmatpush.msra.mxu0 0.0
      %320 = vmatpush.msra.mxu0 0.0
      %321 = vmatpush.msra.mxu0 0.0
      %322 = vmatpush.msra.mxu0 0.0
      %323 = vmatpush.msra.mxu0 0.0
      %324 = vmatpush.msra.mxu0 0.0
      %325 = vmatpush.msra.mxu0 %v289
      %326 = vmatpush.msra.mxu0 %v276
      %327 = vmatmul.f32.gmra.mxu0 %v282
      %v328 = vpop.f32.mrf.mxu0
      %v329 = vadd.f32 0.0, %v328
      %330 = vdwg.mxu0
      %v333 = vrot.slane %v329, 7
      %vm334 = vcmask 1040384
      %v335 = vsel %vm334, %v309, %v333
      %v337 = vlaneseq
      %vm338 = vcmp.ge.s32.totalorder %v337, 0
      %vm339 = vcmp.lt.s32.totalorder %v337, 256
      %vm340 = vmand %vm338, %vm339
      %341 = vst.msk [vmem:[%s197] sm:$0x3] %vm340, %v335
      %s342 = smul.u32 2, %s15
      %p343 = scmp.lt.s32.totalorder %s342, 3
      %s344 = scalar_select %p343, %s342, 3
      %s345 = scalar_lea.vmem %s4, %s344
      // Predicated region
      $region37: #{pattern_encode_forward.3} parent=35 // pred_check
        %p346 = pneg %p122
      $region38: #{pattern_encode_forward.3} parent=35 // pred_check_branch
        %348 = sbr.rel (%p346) target = $region40
      $region39: #{pattern_encode_forward.3} parent=35 // pred_region
        %s349 = smul.u32 2, %s15
      $region40: #{pattern_encode_forward.3} parent=35 // pred_fallthru
        _
    $region36: #{pattern_encode_forward.3} parent=5 // pred_fallthru
      _
    %p350 = scmp.le.s32.totalorder 2, %s10
    // Predicated region
    $region41: #{pattern_encode_forward.3} parent=5 // pred_check
      %p351 = pneg %p350
    $region42: #{pattern_encode_forward.3} parent=5 // pred_check_branch
      %353 = sbr.rel (%p351) target = $region44
    $region43: #{pattern_encode_forward.3} parent=5 // pred_region
      %s354 = ssub.s32 %s10, 2
      // Predicated region
      $region45: #{pattern_encode_forward.3} parent=43 // pred_check
        %p355 = pneg %p128
      $region46: #{pattern_encode_forward.3} parent=43 // pred_check_branch
        %357 = sbr.rel (%p355) target = $region48
      $region47: #{pattern_encode_forward.3} parent=43 // pred_region
        %s358 = smul.u32 2, %s16
        %p359 = scmp.lt.s32.totalorder %s358, 3
        %s360 = scalar_select %p359, %s358, 3
        %s361 = scalar_lea.vmem %s4, %s360
      $region48: #{pattern_encode_forward.3} parent=43 // pred_fallthru
        _
    $region44: #{pattern_encode_forward.3} parent=5 // pred_fallthru
      _
  $region6: #{pattern_encode_forward.3} parent=0 // loop_footer
    %s14 = sadd.s32 1, %s10
  $region7: #{pattern_encode_forward.3} parent=0 // loop_footer_branch
    %9 = sbr.rel target = $region3
  $region8: #{pattern_encode_forward.3} parent=0 // loop_exit
    _

// kernel: pattern_encode_forward.4
$region0: #{pattern_encode_forward.4}
  #allocation0 [shape = 'u32[]', space=smem, size = 0x4, offset = 0x4, fixed_abs, tag = 'smem constant byte address 0x4 - core index']
  #allocation1 [shape = 'u32[72,128]{1,0:T(1,128)}', space=vmem, size = 0x9000, scoped, tag = 'internal scratch']
  %s0 = inlined_call_operand.vmem [shape: f32[2,10,400], index: 0, kind: input, shape index: {}]
  %s1 = inlined_call_operand.vmem [shape: f32[12,90], index: 1, kind: input, shape index: {}]
  %s2 = inlined_call_operand.vmem [shape: f32[12,108], index: 2, kind: input, shape index: {}]
  %s3 = inlined_call_operand.vmem [shape: f32[12,1], index: 3, kind: input, shape index: {}]
  %s4 = inlined_call_operand.vmem [shape: f32[12,1], index: 4, kind: input, shape index: {}]
  %s5 = inlined_call_operand.vmem [shape: f32[1,48], index: 5, kind: input, shape index: {}]
  %s6 = inlined_call_operand.vmem [shape: f32[2,1,295], index: 6, kind: output, shape index: {}]
  %s7 = sld [smem:[#allocation0]]
  $region57: #{pattern_encode_forward.4} parent=0
    _
  %s9 = ssub.s32 1, %s7
  %s10 = scalar_select 0, %s9, %s7
  loop: start=0, step=1, limit=4
  $region2: #{pattern_encode_forward.4} parent=0 // loop_pre_header
    _
  $region3: #{pattern_encode_forward.4} parent=0 // loop_header
    %s12 = sphi 0, %s16
    %p13 = scmp.ge.s32.totalorder %s12, 4
    %s22 = sphi 0, %s24
    %s25 = sphi 0, %s22
    %s26 = sphi 0, %s25
    %s42 = sphi 0, %s26
    %s46 = sphi 0, %s46
    %s48 = sphi 0, %s46
    %s49 = sphi 0, %s48
    %s63 = sphi 0, %s49
    %s67 = sphi 0, %s67
    %s69 = sphi 0, %s67
    %s70 = sphi 0, %s69
    %s84 = sphi 0, %s70
    %s88 = sphi 0, %s88
    %s90 = sphi 0, %s88
    %s91 = sphi 0, %s90
    %s105 = sphi 0, %s91
    %s109 = sphi 0, %s109
    %s111 = sphi 0, %s109
    %s112 = sphi 0, %s111
    %s126 = sphi 0, %s112
    %s130 = sphi 0, %s130
    %s132 = sphi 0, %s130
    %s133 = sphi 0, %s132
    %s147 = sphi 0, %s133
    %s153 = sphi 0, %s155
    %s156 = sphi 0, %s153
    %s157 = sphi 0, %s156
    %s173 = sphi 0, %s157
  $region4: #{pattern_encode_forward.4} parent=0 // loop_header_branch
    %15 = sbr.rel (%p13) target = $region8
  $region5: #{pattern_encode_forward.4} parent=0 // loop_body
    %s17 = ssub.s32 %s12, 1
    %s18 = ssub.s32 %s12, 2
    %s19 = sadd.s32 %s12, 1
    %s20 = ssub.s32 %s12, %s19
    %p21 = scmp.eq.s32.totalorder %s20, 0
    %s23 = sadd.s32 %s22, 1
    %s24 = scalar_select %p21, %s22, %s23
    %p27 = pneg %p21
    %p28 = scmp.eq.s32.totalorder %s12, 1
    %p29 = por %p27, %p28
    %p30 = scmp.ne.s32.totalorder %s22, %s25
    %p31 = scmp.eq.s32.totalorder %s12, 0
    %p32 = por %p30, %p31
    %p33 = scmp.ne.s32.totalorder %s22, %s25
    %p34 = scmp.eq.s32.totalorder %s17, 1
    %p35 = por %p33, %p34
    %p36 = scmp.ne.s32.totalorder %s25, %s26
    %p37 = scmp.eq.s32.totalorder %s17, 0
    %p38 = por %p36, %p37
    %p39 = scmp.ne.s32.totalorder %s25, %s26
    %p40 = scmp.eq.s32.totalorder %s18, 1
    %p41 = por %p39, %p40
    %p43 = scmp.ne.s32.totalorder %s26, %s42
    %p44 = scmp.eq.s32.totalorder %s18, 0
    %p45 = por %p43, %p44
    %s47 = sadd.s32 %s46, 1
    %p50 = scmp.eq.s32.totalorder %s12, 1
    %p51 = scmp.ne.s32.totalorder %s46, %s48
    %p52 = scmp.eq.s32.totalorder %s12, 0
    %p53 = por %p51, %p52
    %p54 = scmp.ne.s32.totalorder %s46, %s48
    %p55 = scmp.eq.s32.totalorder %s17, 1
    %p56 = por %p54, %p55
    %p57 = scmp.ne.s32.totalorder %s48, %s49
    %p58 = scmp.eq.s32.totalorder %s17, 0
    %p59 = por %p57, %p58
    %p60 = scmp.ne.s32.totalorder %s48, %s49
    %p61 = scmp.eq.s32.totalorder %s18, 1
    %p62 = por %p60, %p61
    %p64 = scmp.ne.s32.totalorder %s49, %s63
    %p65 = scmp.eq.s32.totalorder %s18, 0
    %p66 = por %p64, %p65
    %s68 = sadd.s32 %s67, 1
    %p71 = scmp.eq.s32.totalorder %s12, 1
    %p72 = scmp.ne.s32.totalorder %s67, %s69
    %p73 = scmp.eq.s32.totalorder %s12, 0
    %p74 = por %p72, %p73
    %p75 = scmp.ne.s32.totalorder %s67, %s69
    %p76 = scmp.eq.s32.totalorder %s17, 1
    %p77 = por %p75, %p76
    %p78 = scmp.ne.s32.totalorder %s69, %s70
    %p79 = scmp.eq.s32.totalorder %s17, 0
    %p80 = por %p78, %p79
    %p81 = scmp.ne.s32.totalorder %s69, %s70
    %p82 = scmp.eq.s32.totalorder %s18, 1
    %p83 = por %p81, %p82
    %p85 = scmp.ne.s32.totalorder %s70, %s84
    %p86 = scmp.eq.s32.totalorder %s18, 0
    %p87 = por %p85, %p86
    %s89 = sadd.s32 %s88, 1
    %p92 = scmp.eq.s32.totalorder %s12, 1
    %p93 = scmp.ne.s32.totalorder %s88, %s90
    %p94 = scmp.eq.s32.totalorder %s12, 0
    %p95 = por %p93, %p94
    %p96 = scmp.ne.s32.totalorder %s88, %s90
    %p97 = scmp.eq.s32.totalorder %s17, 1
    %p98 = por %p96, %p97
    %p99 = scmp.ne.s32.totalorder %s90, %s91
    %p100 = scmp.eq.s32.totalorder %s17, 0
    %p101 = por %p99, %p100
    %p102 = scmp.ne.s32.totalorder %s90, %s91
    %p103 = scmp.eq.s32.totalorder %s18, 1
    %p104 = por %p102, %p103
    %p106 = scmp.ne.s32.totalorder %s91, %s105
    %p107 = scmp.eq.s32.totalorder %s18, 0
    %p108 = por %p106, %p107
    %s110 = sadd.s32 %s109, 1
    %p113 = scmp.eq.s32.totalorder %s12, 1
    %p114 = scmp.ne.s32.totalorder %s109, %s111
    %p115 = scmp.eq.s32.totalorder %s12, 0
    %p116 = por %p114, %p115
    %p117 = scmp.ne.s32.totalorder %s109, %s111
    %p118 = scmp.eq.s32.totalorder %s17, 1
    %p119 = por %p117, %p118
    %p120 = scmp.ne.s32.totalorder %s111, %s112
    %p121 = scmp.eq.s32.totalorder %s17, 0
    %p122 = por %p120, %p121
    %p123 = scmp.ne.s32.totalorder %s111, %s112
    %p124 = scmp.eq.s32.totalorder %s18, 1
    %p125 = por %p123, %p124
    %p127 = scmp.ne.s32.totalorder %s112, %s126
    %p128 = scmp.eq.s32.totalorder %s18, 0
    %p129 = por %p127, %p128
    %s131 = sadd.s32 %s130, 1
    %p134 = scmp.eq.s32.totalorder %s12, 1
    %p135 = scmp.ne.s32.totalorder %s130, %s132
    %p136 = scmp.eq.s32.totalorder %s12, 0
    %p137 = por %p135, %p136
    %p138 = scmp.ne.s32.totalorder %s130, %s132
    %p139 = scmp.eq.s32.totalorder %s17, 1
    %p140 = por %p138, %p139
    %p141 = scmp.ne.s32.totalorder %s132, %s133
    %p142 = scmp.eq.s32.totalorder %s17, 0
    %p143 = por %p141, %p142
    %p144 = scmp.ne.s32.totalorder %s132, %s133
    %p145 = scmp.eq.s32.totalorder %s18, 1
    %p146 = por %p144, %p145
    %p148 = scmp.ne.s32.totalorder %s133, %s147
    %p149 = scmp.eq.s32.totalorder %s18, 0
    %p150 = por %p148, %p149
    %s151 = ssub.s32 %s12, %s19
    %p152 = scmp.eq.s32.totalorder %s151, 0
    %s154 = sadd.s32 %s153, 1
    %s155 = scalar_select %p152, %s153, %s154
    %p158 = pneg %p152
    %p159 = scmp.eq.s32.totalorder %s12, 1
    %p160 = por %p158, %p159
    %p161 = scmp.ne.s32.totalorder %s153, %s156
    %p162 = scmp.eq.s32.totalorder %s12, 0
    %p163 = por %p161, %p162
    %p164 = scmp.ne.s32.totalorder %s153, %s156
    %p165 = scmp.eq.s32.totalorder %s17, 1
    %p166 = por %p164, %p165
    %p167 = scmp.ne.s32.totalorder %s156, %s157
    %p168 = scmp.eq.s32.totalorder %s17, 0
    %p169 = por %p167, %p168
    %p170 = scmp.ne.s32.totalorder %s156, %s157
    %p171 = scmp.eq.s32.totalorder %s18, 1
    %p172 = por %p170, %p171
    %p174 = scmp.ne.s32.totalorder %s157, %s173
    %p175 = scmp.eq.s32.totalorder %s18, 0
    %p176 = por %p174, %p175
    %p177 = scmp.le.s32.totalorder 1, %s12
    %p178 = scmp.lt.s32.totalorder %s12, 3
    %p179 = pnand %p177, %p178
    %p180 = pneg %p179
    // Predicated region
    $region9: #{pattern_encode_forward.4} parent=5 // pred_check
      _
    $region10: #{pattern_encode_forward.4} parent=5 // pred_check_branch
      %182 = sbr.rel (%p179) target = $region12
    $region11: #{pattern_encode_forward.4} parent=5 // pred_region
      %s183 = ssub.s32 %s12, 1
      // Predicated region
      $region13: #{pattern_encode_forward.4} parent=11 // pred_check
        %p184 = pneg %p59
      $region14: #{pattern_encode_forward.4} parent=11 // pred_check_branch
        %186 = sbr.rel (%p184) target = $region16
      $region15: #{pattern_encode_forward.4} parent=11 // pred_region
        _
      $region16: #{pattern_encode_forward.4} parent=11 // pred_fallthru
        _
      // Predicated region
      $region17: #{pattern_encode_forward.4} parent=11 // pred_check
        %p187 = pneg %p80
      $region18: #{pattern_encode_forward.4} parent=11 // pred_check_branch
        %189 = sbr.rel (%p187) target = $region20
      $region19: #{pattern_encode_forward.4} parent=11 // pred_region
        _
      $region20: #{pattern_encode_forward.4} parent=11 // pred_fallthru
        _
      // Predicated region
      $region21: #{pattern_encode_forward.4} parent=11 // pred_check
        %p190 = pneg %p101
      $region22: #{pattern_encode_forward.4} parent=11 // pred_check_branch
        %192 = sbr.rel (%p190) target = $region24
      $region23: #{pattern_encode_forward.4} parent=11 // pred_region
        _
      $region24: #{pattern_encode_forward.4} parent=11 // pred_fallthru
        _
      // Predicated region
      $region25: #{pattern_encode_forward.4} parent=11 // pred_check
        %p193 = pneg %p122
      $region26: #{pattern_encode_forward.4} parent=11 // pred_check_branch
        %195 = sbr.rel (%p193) target = $region28
      $region27: #{pattern_encode_forward.4} parent=11 // pred_region
        _
      $region28: #{pattern_encode_forward.4} parent=11 // pred_fallthru
        _
      // Predicated region
      $region29: #{pattern_encode_forward.4} parent=11 // pred_check
        %p196 = pneg %p143
      $region30: #{pattern_encode_forward.4} parent=11 // pred_check_branch
        %198 = sbr.rel (%p196) target = $region32
      $region31: #{pattern_encode_forward.4} parent=11 // pred_region
        _
      $region32: #{pattern_encode_forward.4} parent=11 // pred_fallthru
        _
    $region12: #{pattern_encode_forward.4} parent=5 // pred_fallthru
      _
    %p199 = scmp.lt.s32.totalorder %s12, 2
    // Predicated region
    $region33: #{pattern_encode_forward.4} parent=5 // pred_check
      %p200 = pneg %p199
    $region34: #{pattern_encode_forward.4} parent=5 // pred_check_branch
      %202 = sbr.rel (%p200) target = $region36
    $region35: #{pattern_encode_forward.4} parent=5 // pred_region
      // Predicated region
      $region37: #{pattern_encode_forward.4} parent=35 // pred_check
        %p203 = pneg %p32
      $region38: #{pattern_encode_forward.4} parent=35 // pred_check_branch
        %205 = sbr.rel (%p203) target = $region40
      $region39: #{pattern_encode_forward.4} parent=35 // pred_region
        %p206 = scmp.lt.s32.totalorder %s12, 1
        %s207 = scalar_select %p206, %s12, 1
        %s208 = smul.addr %s207, 8
        %s209 = smul.addr %s208, 8
        %s210 = scalar_lea.vmem %s0, %s209
      $region40: #{pattern_encode_forward.4} parent=35 // pred_fallthru
        _
    $region36: #{pattern_encode_forward.4} parent=5 // pred_fallthru
      _
    %p211 = scmp.le.s32.totalorder 1, %s12
    %p212 = scmp.lt.s32.totalorder %s12, 3
    %p213 = pnand %p211, %p212
    %p214 = pneg %p213
    // Predicated region
    $region41: #{pattern_encode_forward.4} parent=5 // pred_check
      _
    $region42: #{pattern_encode_forward.4} parent=5 // pred_check_branch
      %216 = sbr.rel (%p213) target = $region44
    $region43: #{pattern_encode_forward.4} parent=5 // pred_region
      %s217 = ssub.s32 %s12, 1
      %p218 = scmp.lt.s32.totalorder %s17, 1
      %s219 = scalar_select %p218, %s17, 1
      %s220 = smul.addr %s219, 8
      %s221 = smul.addr %s220, 8
      %s222 = scalar_lea.vmem %s0, %s221
      %p223 = pneg %p38
      %p224 = pneg %p35
      %p225 = pneg %p59
      %p226 = pneg %p56
      %p227 = pneg %p80
      %p228 = pneg %p77
      %p229 = pneg %p101
      %p230 = pneg %p98
      %p231 = pneg %p122
      %p232 = pneg %p119
      %p233 = pneg %p143
      %p234 = pneg %p140
      %p235 = pneg %p169
      %p236 = pneg %p166
      %p237 = scmp.lt.s32.totalorder %s17, 1
      %s238 = scalar_select %p237, %s17, 1
      %s239 = smul.addr %s238, 3
      %s240 = scalar_lea.vmem %s6, %s239
      %p241 = scmp.lt.s32.totalorder %s17, 1
      %s242 = scalar_select %p241, %s17, 1
      %s243 = smul.addr %s242, 8
      %s244 = smul.addr %s243, 8
      %s245 = scalar_lea.vmem %s0, %s244
      %p246 = scmp.lt.s32.totalorder %s17, 1
      %s247 = scalar_select %p246, %s17, 1
      %s248 = smul.addr %s247, 3
      %s249 = scalar_lea.vmem %s6, %s248
      %v250 = vld [vmem:[%s245] sm:$0xff]
      %v251 = vld [vmem:[%s245 + $0x8] sm:$0xff]
      %v252 = vld [vmem:[%s245 + $0x10] sm:$0xff]
      %v253 = vld [vmem:[%s245 + $0x18] sm:$0xff]
      %v254 = vld [vmem:[%s245 + $0x20] sm:$0x3]
      %v255 = vld [vmem:[%s245 + $0x28] sm:$0x3]
      %v256 = vld [vmem:[%s245 + $0x30] sm:$0x3]
      %v257 = vld [vmem:[%s245 + $0x38] sm:$0x3]
      %v258 = vld [vmem:[%s1] sm:$0xff]
      %v259 = vld [vmem:[%s1 + $0x8] sm:$0xf]
      %262 = vrot.lane.b32.xlu0 %v258, 118
      %v263 = vpop.permute.xlu0 %262
      %264 = vrot.lane.b32.xlu0 %v259, 118
      %v265 = vpop.permute.xlu0 %264
      %272 = vrot.lane.b32.xlu0 %v250, 127
      %v273 = vpop.permute.xlu0 %272
      %274 = vrot.lane.b32.xlu0 %v251, 127
      %v275 = vpop.permute.xlu0 %274
      %276 = vrot.lane.b32.xlu0 %v252, 127
      %v277 = vpop.permute.xlu0 %276
      %278 = vrot.lane.b32.xlu0 %v254, 127
      %v279 = vpop.permute.xlu0 %278
      %280 = vrot.lane.b32.xlu0 %v255, 127
      %v281 = vpop.permute.xlu0 %280
      %282 = vrot.lane.b32.xlu0 %v256, 127
      %v283 = vpop.permute.xlu0 %282
      %vm284 = vcmask 1039360
      %v285 = vsel %vm284, %v273, %v275
      %v286 = vsel %vm284, %v275, %v277
      %v287 = vsel %vm284, %v279, %v281
      %v288 = vsel %vm284, %v281, %v283
      %vm292 = vcmask 80896
      %v293 = vsel %vm292, %v263, 0
      %v295 = vsel %vm292, %v265, 0
      %vm297 = vcmask 1041408
      %v298 = vsel %vm297, %v287, 0
      %v300 = vsel %vm297, %v288, 0
      %v302 = vsel %vm297, %v283, 0
      %304 = vmatpush.msra.mxu0 0.0
      %305 = vmatpush.msra.mxu0 0.0
      %306 = vmatpush.msra.mxu0 0.0
      %307 = vmatpush.msra.mxu0 0.0
      %308 = vmatpush.msra.mxu0 0.0
      %309 = vmatpush.msra.mxu0 0.0
      %310 = vmatpush.msra.mxu0 0.0
      %311 = vmatpush.msra.mxu0 0.0
      %312 = vmatpush.msra.mxu0 0.0
      %313 = vmatpush.msra.mxu0 0.0
      %314 = vmatpush.msra.mxu0 0.0
      %315 = vmatpush.msra.mxu0 0.0
      %316 = vmatpush.msra.mxu0 0.0
      %317 = vmatpush.msra.mxu0 0.0
      %318 = vmatpush.msra.mxu0 %v298
      %319 = vmatpush.msra.mxu0 %v285
      %320 = vmatmul.f32.gmra.mxu0 %v293
      %v321 = vpop.f32.mrf.mxu0
      %v322 = vadd.f32 0.0, %v321
      %323 = vmatmul.f32.gmra.mxu0 %v295
      %v324 = vpop.f32.mrf.mxu0
      %v325 = vadd.f32 0.0, %v324
      %326 = vdwg.mxu0
      %327 = vmatpush.msra.mxu0 0.0
      %328 = vmatpush.msra.mxu0 0.0
      %329 = vmatpush.msra.mxu0 0.0
      %330 = vmatpush.msra.mxu0 0.0
      %331 = vmatpush.msra.mxu0 0.0
      %332 = vmatpush.msra.mxu0 0.0
      %333 = vmatpush.msra.mxu0 0.0
      %334 = vmatpush.msra.mxu0 0.0
      %335 = vmatpush.msra.mxu0 0.0
      %336 = vmatpush.msra.mxu0 0.0
      %337 = vmatpush.msra.mxu0 0.0
      %338 = vmatpush.msra.mxu0 0.0
      %339 = vmatpush.msra.mxu0 0.0
      %340 = vmatpush.msra.mxu0 0.0
      %341 = vmatpush.msra.mxu0 %v300
      %342 = vmatpush.msra.mxu0 %v286
      %343 = vmatmul.f32.gmra.mxu0 %v293
      %v344 = vpop.f32.mrf.mxu0
      %v345 = vadd.f32 0.0, %v344
      %346 = vmatmul.f32.gmra.mxu0 %v295
      %v347 = vpop.f32.mrf.mxu0
      %v348 = vadd.f32 0.0, %v347
      %349 = vdwg.mxu0
      %350 = vmatpush.msra.mxu0 0.0
      %351 = vmatpush.msra.mxu0 0.0
      %352 = vmatpush.msra.mxu0 0.0
      %353 = vmatpush.msra.mxu0 0.0
      %354 = vmatpush.msra.mxu0 0.0
      %355 = vmatpush.msra.mxu0 0.0
      %356 = vmatpush.msra.mxu0 0.0
      %357 = vmatpush.msra.mxu0 0.0
      %358 = vmatpush.msra.mxu0 0.0
      %359 = vmatpush.msra.mxu0 0.0
      %360 = vmatpush.msra.mxu0 0.0
      %361 = vmatpush.msra.mxu0 0.0
      %362 = vmatpush.msra.mxu0 0.0
      %363 = vmatpush.msra.mxu0 0.0
      %364 = vmatpush.msra.mxu0 %v302
      %365 = vmatpush.msra.mxu0 %v277
      %366 = vmatmul.f32.gmra.mxu0 %v293
      %v367 = vpop.f32.mrf.mxu0
      %v368 = vadd.f32 0.0, %v367
      %369 = vmatmul.f32.gmra.mxu0 %v295
      %v370 = vpop.f32.mrf.mxu0
      %v371 = vadd.f32 0.0, %v370
      %372 = vdwg.mxu0
      %v373 = vsel %vm292, %v258, 0
      %v375 = vsel %vm292, %v259, 0
      %v377 = vsel %vm297, %v254, 0
      %v379 = vsel %vm297, %v255, 0
      %v381 = vsel %vm297, %v256, 0
      %383 = vmatpush.msra.mxu0 0.0
      %384 = vmatpush.msra.mxu0 0.0
      %385 = vmatpush.msra.mxu0 0.0
      %386 = vmatpush.msra.mxu0 0.0
      %387 = vmatpush.msra.mxu0 0.0
      %388 = vmatpush.msra.mxu0 0.0
      %389 = vmatpush.msra.mxu0 0.0
      %390 = vmatpush.msra.mxu0 0.0
      %391 = vmatpush.msra.mxu0 0.0
      %392 = vmatpush.msra.mxu0 0.0
      %393 = vmatpush.msra.mxu0 0.0
      %394 = vmatpush.msra.mxu0 0.0
      %395 = vmatpush.msra.mxu0 0.0
      %396 = vmatpush.msra.mxu0 0.0
      %397 = vmatpush.msra.mxu0 %v377
      %398 = vmatpush.msra.mxu0 %v250
      %399 = vmatmul.f32.gmra.mxu0 %v373
      %v400 = vpop.f32.mrf.mxu0
      %v401 = vadd.f32 %v322, %v400
      %402 = vmatmul.f32.gmra.mxu0 %v375
      %v403 = vpop.f32.mrf.mxu0
      %v404 = vadd.f32 %v325, %v403
      %405 = vdwg.mxu0
      %406 = vmatpush.msra.mxu0 0.0
      %407 = vmatpush.msra.mxu0 0.0
      %408 = vmatpush.msra.mxu0 0.0
      %409 = vmatpush.msra.mxu0 0.0
      %410 = vmatpush.msra.mxu0 0.0
      %411 = vmatpush.msra.mxu0 0.0
      %412 = vmatpush.msra.mxu0 0.0
      %413 = vmatpush.msra.mxu0 0.0
      %414 = vmatpush.msra.mxu0 0.0
      %415 = vmatpush.msra.mxu0 0.0
      %416 = vmatpush.msra.mxu0 0.0
      %417 = vmatpush.msra.mxu0 0.0
      %418 = vmatpush.msra.mxu0 0.0
      %419 = vmatpush.msra.mxu0 0.0
      %420 = vmatpush.msra.mxu0 %v379
      %421 = vmatpush.msra.mxu0 %v251
      %422 = vmatmul.f32.gmra.mxu0 %v373
      %v423 = vpop.f32.mrf.mxu0
      %v424 = vadd.f32 %v345, %v423
      %425 = vmatmul.f32.gmra.mxu0 %v375
      %v426 = vpop.f32.mrf.mxu0
      %v427 = vadd.f32 %v348, %v426
      %428 = vdwg.mxu0
      %429 = vmatpush.msra.mxu0 0.0
      %430 = vmatpush.msra.mxu0 0.0
      %431 = vmatpush.msra.mxu0 0.0
      %432 = vmatpush.msra.mxu0 0.0
      %433 = vmatpush.msra.mxu0 0.0
      %434 = vmatpush.msra.mxu0 0.0
      %435 = vmatpush.msra.mxu0 0.0
      %436 = vmatpush.msra.mxu0 0.0
      %437 = vmatpush.msra.mxu0 0.0
      %438 = vmatpush.msra.mxu0 0.0
      %439 = vmatpush.msra.mxu0 0.0
      %440 = vmatpush.msra.mxu0 0.0
      %441 = vmatpush.msra.mxu0 0.0
      %442 = vmatpush.msra.mxu0 0.0
      %443 = vmatpush.msra.mxu0 %v381
      %444 = vmatpush.msra.mxu0 %v252
      %445 = vmatmul.f32.gmra.mxu0 %v373
      %v446 = vpop.f32.mrf.mxu0
      %v447 = vadd.f32 %v368, %v446
      %448 = vmatmul.f32.gmra.mxu0 %v375
      %v449 = vpop.f32.mrf.mxu0
      %v450 = vadd.f32 %v371, %v449
      %451 = vdwg.mxu0
      %452 = vrot.lane.b32.xlu0 %v258, 108
      %v453 = vpop.permute.xlu0 %452
      %454 = vrot.lane.b32.xlu0 %v259, 108
      %v455 = vpop.permute.xlu0 %454
      %456 = vrot.lane.b32.xlu0 %v250, 126
      %v457 = vpop.permute.xlu0 %456
      %458 = vrot.lane.b32.xlu0 %v251, 126
      %v459 = vpop.permute.xlu0 %458
      %460 = vrot.lane.b32.xlu0 %v252, 126
      %v461 = vpop.permute.xlu0 %460
      %462 = vrot.lane.b32.xlu0 %v254, 126
      %v463 = vpop.permute.xlu0 %462
      %464 = vrot.lane.b32.xlu0 %v255, 126
      %v465 = vpop.permute.xlu0 %464
      %466 = vrot.lane.b32.xlu0 %v256, 126
      %v467 = vpop.permute.xlu0 %466
      %vm468 = vcmask 1031168
      %v469 = vsel %vm468, %v457, %v459
      %v470 = vsel %vm468, %v459, %v461
      %v471 = vsel %vm468, %v463, %v465
      %v472 = vsel %vm468, %v465, %v467
      %v476 = vsel %vm292, %v453, 0
      %v478 = vsel %vm292, %v455, 0
      %v480 = vsel %vm297, %v471, 0
      %v482 = vsel %vm297, %v472, 0
      %v484 = vsel %vm297, %v467, 0
      %486 = vmatpush.msra.mxu0 0.0
      %487 = vmatpush.msra.mxu0 0.0
      %488 = vmatpush.msra.mxu0 0.0
      %489 = vmatpush.msra.mxu0 0.0
      %490 = vmatpush.msra.mxu0 0.0
      %491 = vmatpush.msra.mxu0 0.0
      %492 = vmatpush.msra.mxu0 0.0
      %493 = vmatpush.msra.mxu0 0.0
      %494 = vmatpush.msra.mxu0 0.0
      %495 = vmatpush.msra.mxu0 0.0
      %496 = vmatpush.msra.mxu0 0.0
      %497 = vmatpush.msra.mxu0 0.0
      %498 = vmatpush.msra.mxu0 0.0
      %499 = vmatpush.msra.mxu0 0.0
      %500 = vmatpush.msra.mxu0 %v480
      %501 = vmatpush.msra.mxu0 %v469
      %502 = vmatmul.f32.gmra.mxu0 %v476
      %v503 = vpop.f32.mrf.mxu0
      %v504 = vadd.f32 0.0, %v503
      %505 = vmatmul.f32.gmra.mxu0 %v478
      %v506 = vpop.f32.mrf.mxu0
      %v507 = vadd.f32 0.0, %v506
      %508 = vdwg.mxu0
      %509 = vmatpush.msra.mxu0 0.0
      %510 = vmatpush.msra.mxu0 0.0
      %511 = vmatpush.msra.mxu0 0.0
      %512 = vmatpush.msra.mxu0 0.0
      %513 = vmatpush.msra.mxu0 0.0
      %514 = vmatpush.msra.mxu0 0.0
      %515 = vmatpush.msra.mxu0 0.0
      %516 = vmatpush.msra.mxu0 0.0
      %517 = vmatpush.msra.mxu0 0.0
      %518 = vmatpush.msra.mxu0 0.0
      %519 = vmatpush.msra.mxu0 0.0
      %520 = vmatpush.msra.mxu0 0.0
      %521 = vmatpush.msra.mxu0 0.0
      %522 = vmatpush.msra.mxu0 0.0
      %523 = vmatpush.msra.mxu0 %v482
      %524 = vmatpush.msra.mxu0 %v470
      %525 = vmatmul.f32.gmra.mxu0 %v476
      %v526 = vpop.f32.mrf.mxu0
      %v527 = vadd.f32 0.0, %v526
      %528 = vmatmul.f32.gmra.mxu0 %v478
      %v529 = vpop.f32.mrf.mxu0
      %v530 = vadd.f32 0.0, %v529
      %531 = vdwg.mxu0
      %532 = vmatpush.msra.mxu0 0.0
      %533 = vmatpush.msra.mxu0 0.0
      %534 = vmatpush.msra.mxu0 0.0
      %535 = vmatpush.msra.mxu0 0.0
      %536 = vmatpush.msra.mxu0 0.0
      %537 = vmatpush.msra.mxu0 0.0
      %538 = vmatpush.msra.mxu0 0.0
      %539 = vmatpush.msra.mxu0 0.0
      %540 = vmatpush.msra.mxu0 0.0
      %541 = vmatpush.msra.mxu0 0.0
      %542 = vmatpush.msra.mxu0 0.0
      %543 = vmatpush.msra.mxu0 0.0
      %544 = vmatpush.msra.mxu0 0.0
      %545 = vmatpush.msra.mxu0 0.0
      %546 = vmatpush.msra.mxu0 %v484
      %547 = vmatpush.msra.mxu0 %v461
      %548 = vmatmul.f32.gmra.mxu0 %v476
      %v549 = vpop.f32.mrf.mxu0
      %v550 = vadd.f32 0.0, %v549
      %551 = vmatmul.f32.gmra.mxu0 %v478
      %v552 = vpop.f32.mrf.mxu0
      %v553 = vadd.f32 0.0, %v552
      %554 = vdwg.mxu0
      %v555 = vadd.f32 %v401, %v504
      %v556 = vadd.f32 %v424, %v527
      %v557 = vadd.f32 %v447, %v550
      %v558 = vadd.f32 %v404, %v507
      %v559 = vadd.f32 %v427, %v530
      %v560 = vadd.f32 %v450, %v553
      %561 = vrot.lane.b32.xlu0 %v258, 98
      %v562 = vpop.permute.xlu0 %561
      %563 = vrot.lane.b32.xlu0 %v259, 98
      %v564 = vpop.permute.xlu0 %563
      %565 = vrot.lane.b32.xlu0 %v250, 108
      %v566 = vpop.permute.xlu0 %565
      %567 = vrot.lane.b32.xlu0 %v251, 108
      %v568 = vpop.permute.xlu0 %567
      %569 = vrot.lane.b32.xlu0 %v252, 108
      %v570 = vpop.permute.xlu0 %569
      %571 = vrot.lane.b32.xlu0 %v254, 108
      %v572 = vpop.permute.xlu0 %571
      %573 = vrot.lane.b32.xlu0 %v255, 108
      %v574 = vpop.permute.xlu0 %573
      %575 = vrot.lane.b32.xlu0 %v256, 108
      %v576 = vpop.permute.xlu0 %575
      %vm577 = vcmask 883712
      %v578 = vsel %vm577, %v566, %v568
      %v579 = vsel %vm577, %v568, %v570
      %v580 = vsel %vm577, %v572, %v574
      %v581 = vsel %vm577, %v574, %v576
      %v585 = vsel %vm292, %v562, 0
      %v587 = vsel %vm292, %v564, 0
      %v589 = vsel %vm297, %v580, 0
      %v591 = vsel %vm297, %v581, 0
      %v593 = vsel %vm297, %v576, 0
      %595 = vmatpush.msra.mxu0 0.0
      %596 = vmatpush.msra.mxu0 0.0
      %597 = vmatpush.msra.mxu0 0.0
      %598 = vmatpush.msra.mxu0 0.0
      %599 = vmatpush.msra.mxu0 0.0
      %600 = vmatpush.msra.mxu0 0.0
      %601 = vmatpush.msra.mxu0 0.0
      %602 = vmatpush.msra.mxu0 0.0
      %603 = vmatpush.msra.mxu0 0.0
      %604 = vmatpush.msra.mxu0 0.0
      %605 = vmatpush.msra.mxu0 0.0
      %606 = vmatpush.msra.mxu0 0.0
      %607 = vmatpush.msra.mxu0 0.0
      %608 = vmatpush.msra.mxu0 0.0
      %609 = vmatpush.msra.mxu0 %v589
      %610 = vmatpush.msra.mxu0 %v578
      %611 = vmatmul.f32.gmra.mxu0 %v585
      %v612 = vpop.f32.mrf.mxu0
      %v613 = vadd.f32 0.0, %v612
      %614 = vmatmul.f32.gmra.mxu0 %v587
      %v615 = vpop.f32.mrf.mxu0
      %v616 = vadd.f32 0.0, %v615
      %617 = vdwg.mxu0
      %618 = vmatpush.msra.mxu0 0.0
      %619 = vmatpush.msra.mxu0 0.0
      %620 = vmatpush.msra.mxu0 0.0
      %621 = vmatpush.msra.mxu0 0.0
      %622 = vmatpush.msra.mxu0 0.0
      %623 = vmatpush.msra.mxu0 0.0
      %624 = vmatpush.msra.mxu0 0.0
      %625 = vmatpush.msra.mxu0 0.0
      %626 = vmatpush.msra.mxu0 0.0
      %627 = vmatpush.msra.mxu0 0.0
      %628 = vmatpush.msra.mxu0 0.0
      %629 = vmatpush.msra.mxu0 0.0
      %630 = vmatpush.msra.mxu0 0.0
      %631 = vmatpush.msra.mxu0 0.0
      %632 = vmatpush.msra.mxu0 %v591
      %633 = vmatpush.msra.mxu0 %v579
      %634 = vmatmul.f32.gmra.mxu0 %v585
      %v635 = vpop.f32.mrf.mxu0
      %v636 = vadd.f32 0.0, %v635
      %637 = vmatmul.f32.gmra.mxu0 %v587
      %v638 = vpop.f32.mrf.mxu0
      %v639 = vadd.f32 0.0, %v638
      %640 = vdwg.mxu0
      %641 = vmatpush.msra.mxu0 0.0
      %642 = vmatpush.msra.mxu0 0.0
      %643 = vmatpush.msra.mxu0 0.0
      %644 = vmatpush.msra.mxu0 0.0
      %645 = vmatpush.msra.mxu0 0.0
      %646 = vmatpush.msra.mxu0 0.0
      %647 = vmatpush.msra.mxu0 0.0
      %648 = vmatpush.msra.mxu0 0.0
      %649 = vmatpush.msra.mxu0 0.0
      %650 = vmatpush.msra.mxu0 0.0
      %651 = vmatpush.msra.mxu0 0.0
      %652 = vmatpush.msra.mxu0 0.0
      %653 = vmatpush.msra.mxu0 0.0
      %654 = vmatpush.msra.mxu0 0.0
      %655 = vmatpush.msra.mxu0 %v593
      %656 = vmatpush.msra.mxu0 %v570
      %657 = vmatmul.f32.gmra.mxu0 %v585
      %v658 = vpop.f32.mrf.mxu0
      %v659 = vadd.f32 0.0, %v658
      %660 = vmatmul.f32.gmra.mxu0 %v587
      %v661 = vpop.f32.mrf.mxu0
      %v662 = vadd.f32 0.0, %v661
      %663 = vdwg.mxu0
      %v664 = vadd.f32 %v555, %v613
      %v665 = vadd.f32 %v556, %v636
      %v666 = vadd.f32 %v557, %v659
      %v667 = vadd.f32 %v558, %v616
      %v668 = vadd.f32 %v559, %v639
      %v669 = vadd.f32 %v560, %v662
      %670 = vrot.lane.b32.xlu0 %v258, 88
      %v671 = vpop.permute.xlu0 %670
      %672 = vrot.lane.b32.xlu0 %v259, 88
      %v673 = vpop.permute.xlu0 %672
      %674 = vrot.lane.b32.xlu0 %v250, 107
      %v675 = vpop.permute.xlu0 %674
      %676 = vrot.lane.b32.xlu0 %v251, 107
      %v677 = vpop.permute.xlu0 %676
      %678 = vrot.lane.b32.xlu0 %v252, 107
      %v679 = vpop.permute.xlu0 %678
      %680 = vrot.lane.b32.xlu0 %v254, 107
      %v681 = vpop.permute.xlu0 %680
      %682 = vrot.lane.b32.xlu0 %v255, 107
      %v683 = vpop.permute.xlu0 %682
      %684 = vrot.lane.b32.xlu0 %v256, 107
      %v685 = vpop.permute.xlu0 %684
      %vm686 = vcmask 875520
      %v687 = vsel %vm686, %v675, %v677
      %v688 = vsel %vm686, %v677, %v679
      %v689 = vsel %vm686, %v681, %v683
      %v690 = vsel %vm686, %v683, %v685
      %v694 = vsel %vm292, %v671, 0
      %v696 = vsel %vm292, %v673, 0
      %v698 = vsel %vm297, %v689, 0
      %v700 = vsel %vm297, %v690, 0
      %v702 = vsel %vm297, %v685, 0
      %704 = vmatpush.msra.mxu0 0.0
      %705 = vmatpush.msra.mxu0 0.0
      %706 = vmatpush.msra.mxu0 0.0
      %707 = vmatpush.msra.mxu0 0.0
      %708 = vmatpush.msra.mxu0 0.0
      %709 = vmatpush.msra.mxu0 0.0
      %710 = vmatpush.msra.mxu0 0.0
      %711 = vmatpush.msra.mxu0 0.0
      %712 = vmatpush.msra.mxu0 0.0
      %713 = vmatpush.msra.mxu0 0.0
      %714 = vmatpush.msra.mxu0 0.0
      %715 = vmatpush.msra.mxu0 0.0
      %716 = vmatpush.msra.mxu0 0.0
      %717 = vmatpush.msra.mxu0 0.0
      %718 = vmatpush.msra.mxu0 %v698
      %719 = vmatpush.msra.mxu0 %v687
      %720 = vmatmul.f32.gmra.mxu0 %v694
      %v721 = vpop.f32.mrf.mxu0
      %v722 = vadd.f32 0.0, %v721
      %723 = vmatmul.f32.gmra.mxu0 %v696
      %v724 = vpop.f32.mrf.mxu0
      %v725 = vadd.f32 0.0, %v724
      %726 = vdwg.mxu0
      %727 = vmatpush.msra.mxu0 0.0
      %728 = vmatpush.msra.mxu0 0.0
      %729 = vmatpush.msra.mxu0 0.0
      %730 = vmatpush.msra.mxu0 0.0
      %731 = vmatpush.msra.mxu0 0.0
      %732 = vmatpush.msra.mxu0 0.0
      %733 = vmatpush.msra.mxu0 0.0
      %734 = vmatpush.msra.mxu0 0.0
      %735 = vmatpush.msra.mxu0 0.0
      %736 = vmatpush.msra.mxu0 0.0
      %737 = vmatpush.msra.mxu0 0.0
      %738 = vmatpush.msra.mxu0 0.0
      %739 = vmatpush.msra.mxu0 0.0
      %740 = vmatpush.msra.mxu0 0.0
      %741 = vmatpush.msra.mxu0 %v700
      %742 = vmatpush.msra.mxu0 %v688
      %743 = vmatmul.f32.gmra.mxu0 %v694
      %v744 = vpop.f32.mrf.mxu0
      %v745 = vadd.f32 0.0, %v744
      %746 = vmatmul.f32.gmra.mxu0 %v696
      %v747 = vpop.f32.mrf.mxu0
      %v748 = vadd.f32 0.0, %v747
      %749 = vdwg.mxu0
      %750 = vmatpush.msra.mxu0 0.0
      %751 = vmatpush.msra.mxu0 0.0
      %752 = vmatpush.msra.mxu0 0.0
      %753 = vmatpush.msra.mxu0 0.0
      %754 = vmatpush.msra.mxu0 0.0
      %755 = vmatpush.msra.mxu0 0.0
      %756 = vmatpush.msra.mxu0 0.0
      %757 = vmatpush.msra.mxu0 0.0
      %758 = vmatpush.msra.mxu0 0.0
      %759 = vmatpush.msra.mxu0 0.0
      %760 = vmatpush.msra.mxu0 0.0
      %761 = vmatpush.msra.mxu0 0.0
      %762 = vmatpush.msra.mxu0 0.0
      %763 = vmatpush.msra.mxu0 0.0
      %764 = vmatpush.msra.mxu0 %v702
      %765 = vmatpush.msra.mxu0 %v679
      %766 = vmatmul.f32.gmra.mxu0 %v694
      %v767 = vpop.f32.mrf.mxu0
      %v768 = vadd.f32 0.0, %v767
      %769 = vmatmul.f32.gmra.mxu0 %v696
      %v770 = vpop.f32.mrf.mxu0
      %v771 = vadd.f32 0.0, %v770
      %772 = vdwg.mxu0
      %v773 = vadd.f32 %v664, %v722
      %v774 = vadd.f32 %v665, %v745
      %v775 = vadd.f32 %v666, %v768
      %v776 = vadd.f32 %v667, %v725
      %v777 = vadd.f32 %v668, %v748
      %v778 = vadd.f32 %v669, %v771
      %779 = vrot.lane.b32.xlu0 %v258, 78
      %v780 = vpop.permute.xlu0 %779
      %781 = vrot.lane.b32.xlu0 %v259, 78
      %v782 = vpop.permute.xlu0 %781
      %783 = vrot.lane.b32.xlu0 %v250, 106
      %v784 = vpop.permute.xlu0 %783
      %785 = vrot.lane.b32.xlu0 %v251, 106
      %v786 = vpop.permute.xlu0 %785
      %787 = vrot.lane.b32.xlu0 %v252, 106
      %v788 = vpop.permute.xlu0 %787
      %789 = vrot.lane.b32.xlu0 %v254, 106
      %v790 = vpop.permute.xlu0 %789
      %791 = vrot.lane.b32.xlu0 %v255, 106
      %v792 = vpop.permute.xlu0 %791
      %793 = vrot.lane.b32.xlu0 %v256, 106
      %v794 = vpop.permute.xlu0 %793
      %vm795 = vcmask 867328
      %v796 = vsel %vm795, %v784, %v786
      %v797 = vsel %vm795, %v786, %v788
      %v798 = vsel %vm795, %v790, %v792
      %v799 = vsel %vm795, %v792, %v794
      %v803 = vsel %vm292, %v780, 0
      %v805 = vsel %vm292, %v782, 0
      %v807 = vsel %vm297, %v798, 0
      %v809 = vsel %vm297, %v799, 0
      %v811 = vsel %vm297, %v794, 0
      %813 = vmatpush.msra.mxu0 0.0
      %814 = vmatpush.msra.mxu0 0.0
      %815 = vmatpush.msra.mxu0 0.0
      %816 = vmatpush.msra.mxu0 0.0
      %817 = vmatpush.msra.mxu0 0.0
      %818 = vmatpush.msra.mxu0 0.0
      %819 = vmatpush.msra.mxu0 0.0
      %820 = vmatpush.msra.mxu0 0.0
      %821 = vmatpush.msra.mxu0 0.0
      %822 = vmatpush.msra.mxu0 0.0
      %823 = vmatpush.msra.mxu0 0.0
      %824 = vmatpush.msra.mxu0 0.0
      %825 = vmatpush.msra.mxu0 0.0
      %826 = vmatpush.msra.mxu0 0.0
      %827 = vmatpush.msra.mxu0 %v807
      %828 = vmatpush.msra.mxu0 %v796
      %829 = vmatmul.f32.gmra.mxu0 %v803
      %v830 = vpop.f32.mrf.mxu0
      %v831 = vadd.f32 0.0, %v830
      %832 = vmatmul.f32.gmra.mxu0 %v805
      %v833 = vpop.f32.mrf.mxu0
      %v834 = vadd.f32 0.0, %v833
      %835 = vdwg.mxu0
      %836 = vmatpush.msra.mxu0 0.0
      %837 = vmatpush.msra.mxu0 0.0
      %838 = vmatpush.msra.mxu0 0.0
      %839 = vmatpush.msra.mxu0 0.0
      %840 = vmatpush.msra.mxu0 0.0
      %841 = vmatpush.msra.mxu0 0.0
      %842 = vmatpush.msra.mxu0 0.0
      %843 = vmatpush.msra.mxu0 0.0
      %844 = vmatpush.msra.mxu0 0.0
      %845 = vmatpush.msra.mxu0 0.0
      %846 = vmatpush.msra.mxu0 0.0
      %847 = vmatpush.msra.mxu0 0.0
      %848 = vmatpush.msra.mxu0 0.0
      %849 = vmatpush.msra.mxu0 0.0
      %850 = vmatpush.msra.mxu0 %v809
      %851 = vmatpush.msra.mxu0 %v797
      %852 = vmatmul.f32.gmra.mxu0 %v803
      %v853 = vpop.f32.mrf.mxu0
      %v854 = vadd.f32 0.0, %v853
      %855 = vmatmul.f32.gmra.mxu0 %v805
      %v856 = vpop.f32.mrf.mxu0
      %v857 = vadd.f32 0.0, %v856
      %858 = vdwg.mxu0
      %859 = vmatpush.msra.mxu0 0.0
      %860 = vmatpush.msra.mxu0 0.0
      %861 = vmatpush.msra.mxu0 0.0
      %862 = vmatpush.msra.mxu0 0.0
      %863 = vmatpush.msra.mxu0 0.0
      %864 = vmatpush.msra.mxu0 0.0
      %865 = vmatpush.msra.mxu0 0.0
      %866 = vmatpush.msra.mxu0 0.0
      %867 = vmatpush.msra.mxu0 0.0
      %868 = vmatpush.msra.mxu0 0.0
      %869 = vmatpush.msra.mxu0 0.0
      %870 = vmatpush.msra.mxu0 0.0
      %871 = vmatpush.msra.mxu0 0.0
      %872 = vmatpush.msra.mxu0 0.0
      %873 = vmatpush.msra.mxu0 %v811
      %874 = vmatpush.msra.mxu0 %v788
      %875 = vmatmul.f32.gmra.mxu0 %v803
      %v876 = vpop.f32.mrf.mxu0
      %v877 = vadd.f32 0.0, %v876
      %878 = vmatmul.f32.gmra.mxu0 %v805
      %v879 = vpop.f32.mrf.mxu0
      %v880 = vadd.f32 0.0, %v879
      %881 = vdwg.mxu0
      %v882 = vadd.f32 %v773, %v831
      %v883 = vadd.f32 %v774, %v854
      %v884 = vadd.f32 %v775, %v877
      %v885 = vadd.f32 %v776, %v834
      %v886 = vadd.f32 %v777, %v857
      %v887 = vadd.f32 %v778, %v880
      %888 = vrot.lane.b32.xlu0 %v258, 68
      %v889 = vpop.permute.xlu0 %888
      %890 = vrot.lane.b32.xlu0 %v259, 68
      %v891 = vpop.permute.xlu0 %890
      %894 = vrot.lane.b32.xlu0 %v250, 88
      %v895 = vpop.permute.xlu0 %894
      %896 = vrot.lane.b32.xlu0 %v251, 88
      %v897 = vpop.permute.xlu0 %896
      %898 = vrot.lane.b32.xlu0 %v252, 88
      %v899 = vpop.permute.xlu0 %898
      %900 = vrot.lane.b32.xlu0 %v253, 88
      %v901 = vpop.permute.xlu0 %900
      %902 = vrot.lane.b32.xlu0 %v254, 88
      %v903 = vpop.permute.xlu0 %902
      %904 = vrot.lane.b32.xlu0 %v255, 88
      %v905 = vpop.permute.xlu0 %904
      %906 = vrot.lane.b32.xlu0 %v256, 88
      %v907 = vpop.permute.xlu0 %906
      %908 = vrot.lane.b32.xlu0 %v257, 88
      %v909 = vpop.permute.xlu0 %908
      %vm910 = vcmask 719872
      %v911 = vsel %vm910, %v895, %v897
      %v912 = vsel %vm910, %v897, %v899
      %v913 = vsel %vm910, %v899, %v901
      %v914 = vsel %vm910, %v903, %v905
      %v915 = vsel %vm910, %v905, %v907
      %v916 = vsel %vm910, %v907, %v909
      %v920 = vsel %vm292, %v889, 0
      %v922 = vsel %vm292, %v891, 0
      %v924 = vsel %vm297, %v914, 0
      %v926 = vsel %vm297, %v915, 0
      %v928 = vsel %vm297, %v916, 0
      %930 = vmatpush.msra.mxu0 0.0
      %931 = vmatpush.msra.mxu0 0.0
      %932 = vmatpush.msra.mxu0 0.0
      %933 = vmatpush.msra.mxu0 0.0
      %934 = vmatpush.msra.mxu0 0.0
      %935 = vmatpush.msra.mxu0 0.0
      %936 = vmatpush.msra.mxu0 0.0
      %937 = vmatpush.msra.mxu0 0.0
      %938 = vmatpush.msra.mxu0 0.0
      %939 = vmatpush.msra.mxu0 0.0
      %940 = vmatpush.msra.mxu0 0.0
      %941 = vmatpush.msra.mxu0 0.0
      %942 = vmatpush.msra.mxu0 0.0
      %943 = vmatpush.msra.mxu0 0.0
      %944 = vmatpush.msra.mxu0 %v924
      %945 = vmatpush.msra.mxu0 %v911
      %946 = vmatmul.f32.gmra.mxu0 %v920
      %v947 = vpop.f32.mrf.mxu0
      %v948 = vadd.f32 0.0, %v947
      %949 = vmatmul.f32.gmra.mxu0 %v922
      %v950 = vpop.f32.mrf.mxu0
      %v951 = vadd.f32 0.0, %v950
      %952 = vdwg.mxu0
      %953 = vmatpush.msra.mxu0 0.0
      %954 = vmatpush.msra.mxu0 0.0
      %955 = vmatpush.msra.mxu0 0.0
      %956 = vmatpush.msra.mxu0 0.0
      %957 = vmatpush.msra.mxu0 0.0
      %958 = vmatpush.msra.mxu0 0.0
      %959 = vmatpush.msra.mxu0 0.0
      %960 = vmatpush.msra.mxu0 0.0
      %961 = vmatpush.msra.mxu0 0.0
      %962 = vmatpush.msra.mxu0 0.0
      %963 = vmatpush.msra.mxu0 0.0
      %964 = vmatpush.msra.mxu0 0.0
      %965 = vmatpush.msra.mxu0 0.0
      %966 = vmatpush.msra.mxu0 0.0
      %967 = vmatpush.msra.mxu0 %v926
      %968 = vmatpush.msra.mxu0 %v912
      %969 = vmatmul.f32.gmra.mxu0 %v920
      %v970 = vpop.f32.mrf.mxu0
      %v971 = vadd.f32 0.0, %v970
      %972 = vmatmul.f32.gmra.mxu0 %v922
      %v973 = vpop.f32.mrf.mxu0
      %v974 = vadd.f32 0.0, %v973
      %975 = vdwg.mxu0
      %976 = vmatpush.msra.mxu0 0.0
      %977 = vmatpush.msra.mxu0 0.0
      %978 = vmatpush.msra.mxu0 0.0
      %979 = vmatpush.msra.mxu0 0.0
      %980 = vmatpush.msra.mxu0 0.0
      %981 = vmatpush.msra.mxu0 0.0
      %982 = vmatpush.msra.mxu0 0.0
      %983 = vmatpush.msra.mxu0 0.0
      %984 = vmatpush.msra.mxu0 0.0
      %985 = vmatpush.msra.mxu0 0.0
      %986 = vmatpush.msra.mxu0 0.0
      %987 = vmatpush.msra.mxu0 0.0
      %988 = vmatpush.msra.mxu0 0.0
      %989 = vmatpush.msra.mxu0 0.0
      %990 = vmatpush.msra.mxu0 %v928
      %991 = vmatpush.msra.mxu0 %v913
      %992 = vmatmul.f32.gmra.mxu0 %v920
      %v993 = vpop.f32.mrf.mxu0
      %v994 = vadd.f32 0.0, %v993
      %995 = vmatmul.f32.gmra.mxu0 %v922
      %v996 = vpop.f32.mrf.mxu0
      %v997 = vadd.f32 0.0, %v996
      %998 = vdwg.mxu0
      %v999 = vadd.f32 %v882, %v948
      %v1000 = vadd.f32 %v883, %v971
      %v1001 = vadd.f32 %v884, %v994
      %v1002 = vadd.f32 %v885, %v951
      %v1003 = vadd.f32 %v886, %v974
      %v1004 = vadd.f32 %v887, %v997
      %1005 = vrot.lane.b32.xlu0 %v258, 58
      %v1006 = vpop.permute.xlu0 %1005
      %1007 = vrot.lane.b32.xlu0 %v259, 58
      %v1008 = vpop.permute.xlu0 %1007
      %1009 = vrot.lane.b32.xlu0 %v250, 87
      %v1010 = vpop.permute.xlu0 %1009
      %1011 = vrot.lane.b32.xlu0 %v251, 87
      %v1012 = vpop.permute.xlu0 %1011
      %1013 = vrot.lane.b32.xlu0 %v252, 87
      %v1014 = vpop.permute.xlu0 %1013
      %1015 = vrot.lane.b32.xlu0 %v253, 87
      %v1016 = vpop.permute.xlu0 %1015
      %1017 = vrot.lane.b32.xlu0 %v254, 87
      %v1018 = vpop.permute.xlu0 %1017
      %1019 = vrot.lane.b32.xlu0 %v255, 87
      %v1020 = vpop.permute.xlu0 %1019
      %1021 = vrot.lane.b32.xlu0 %v256, 87
      %v1022 = vpop.permute.xlu0 %1021
      %1023 = vrot.lane.b32.xlu0 %v257, 87
      %v1024 = vpop.permute.xlu0 %1023
      %vm1025 = vcmask 711680
      %v1026 = vsel %vm1025, %v1010, %v1012
      %v1027 = vsel %vm1025, %v1012, %v1014
      %v1028 = vsel %vm1025, %v1014, %v1016
      %v1029 = vsel %vm1025, %v1018, %v1020
      %v1030 = vsel %vm1025, %v1020, %v1022
      %v1031 = vsel %vm1025, %v1022, %v1024
      %v1035 = vsel %vm292, %v1006, 0
      %v1037 = vsel %vm292, %v1008, 0
      %v1039 = vsel %vm297, %v1029, 0
      %v1041 = vsel %vm297, %v1030, 0
      %v1043 = vsel %vm297, %v1031, 0
      %1045 = vmatpush.msra.mxu0 0.0
      %1046 = vmatpush.msra.mxu0 0.0
      %1047 = vmatpush.msra.mxu0 0.0
      %1048 = vmatpush.msra.mxu0 0.0
      %1049 = vmatpush.msra.mxu0 0.0
      %1050 = vmatpush.msra.mxu0 0.0
      %1051 = vmatpush.msra.mxu0 0.0
      %1052 = vmatpush.msra.mxu0 0.0
      %1053 = vmatpush.msra.mxu0 0.0
      %1054 = vmatpush.msra.mxu0 0.0
      %1055 = vmatpush.msra.mxu0 0.0
      %1056 = vmatpush.msra.mxu0 0.0
      %1057 = vmatpush.msra.mxu0 0.0
      %1058 = vmatpush.msra.mxu0 0.0
      %1059 = vmatpush.msra.mxu0 %v1039
      %1060 = vmatpush.msra.mxu0 %v1026
      %1061 = vmatmul.f32.gmra.mxu0 %v1035
      %v1062 = vpop.f32.mrf.mxu0
      %v1063 = vadd.f32 0.0, %v1062
      %1064 = vmatmul.f32.gmra.mxu0 %v1037
      %v1065 = vpop.f32.mrf.mxu0
      %v1066 = vadd.f32 0.0, %v1065
      %1067 = vdwg.mxu0
      %1068 = vmatpush.msra.mxu0 0.0
      %1069 = vmatpush.msra.mxu0 0.0
      %1070 = vmatpush.msra.mxu0 0.0
      %1071 = vmatpush.msra.mxu0 0.0
      %1072 = vmatpush.msra.mxu0 0.0
      %1073 = vmatpush.msra.mxu0 0.0
      %1074 = vmatpush.msra.mxu0 0.0
      %1075 = vmatpush.msra.mxu0 0.0
      %1076 = vmatpush.msra.mxu0 0.0
      %1077 = vmatpush.msra.mxu0 0.0
      %1078 = vmatpush.msra.mxu0 0.0
      %1079 = vmatpush.msra.mxu0 0.0
      %1080 = vmatpush.msra.mxu0 0.0
      %1081 = vmatpush.msra.mxu0 0.0
      %1082 = vmatpush.msra.mxu0 %v1041
      %1083 = vmatpush.msra.mxu0 %v1027
      %1084 = vmatmul.f32.gmra.mxu0 %v1035
      %v1085 = vpop.f32.mrf.mxu0
      %v1086 = vadd.f32 0.0, %v1085
      %1087 = vmatmul.f32.gmra.mxu0 %v1037
      %v1088 = vpop.f32.mrf.mxu0
      %v1089 = vadd.f32 0.0, %v1088
      %1090 = vdwg.mxu0
      %1091 = vmatpush.msra.mxu0 0.0
      %1092 = vmatpush.msra.mxu0 0.0
      %1093 = vmatpush.msra.mxu0 0.0
      %1094 = vmatpush.msra.mxu0 0.0
      %1095 = vmatpush.msra.mxu0 0.0
      %1096 = vmatpush.msra.mxu0 0.0
      %1097 = vmatpush.msra.mxu0 0.0
      %1098 = vmatpush.msra.mxu0 0.0
      %1099 = vmatpush.msra.mxu0 0.0
      %1100 = vmatpush.msra.mxu0 0.0
      %1101 = vmatpush.msra.mxu0 0.0
      %1102 = vmatpush.msra.mxu0 0.0
      %1103 = vmatpush.msra.mxu0 0.0
      %1104 = vmatpush.msra.mxu0 0.0
      %1105 = vmatpush.msra.mxu0 %v1043
      %1106 = vmatpush.msra.mxu0 %v1028
      %1107 = vmatmul.f32.gmra.mxu0 %v1035
      %v1108 = vpop.f32.mrf.mxu0
      %v1109 = vadd.f32 0.0, %v1108
      %1110 = vmatmul.f32.gmra.mxu0 %v1037
      %v1111 = vpop.f32.mrf.mxu0
      %v1112 = vadd.f32 0.0, %v1111
      %1113 = vdwg.mxu0
      %v1114 = vadd.f32 %v999, %v1063
      %v1115 = vadd.f32 %v1000, %v1086
      %v1116 = vadd.f32 %v1001, %v1109
      %v1117 = vadd.f32 %v1002, %v1066
      %v1118 = vadd.f32 %v1003, %v1089
      %v1119 = vadd.f32 %v1004, %v1112
      %1120 = vrot.lane.b32.xlu0 %v258, 48
      %v1121 = vpop.permute.xlu0 %1120
      %1122 = vrot.lane.b32.xlu0 %v259, 48
      %v1123 = vpop.permute.xlu0 %1122
      %1124 = vrot.lane.b32.xlu0 %v250, 86
      %v1125 = vpop.permute.xlu0 %1124
      %1126 = vrot.lane.b32.xlu0 %v251, 86
      %v1127 = vpop.permute.xlu0 %1126
      %1128 = vrot.lane.b32.xlu0 %v252, 86
      %v1129 = vpop.permute.xlu0 %1128
      %1130 = vrot.lane.b32.xlu0 %v253, 86
      %v1131 = vpop.permute.xlu0 %1130
      %1132 = vrot.lane.b32.xlu0 %v254, 86
      %v1133 = vpop.permute.xlu0 %1132
      %1134 = vrot.lane.b32.xlu0 %v255, 86
      %v1135 = vpop.permute.xlu0 %1134
      %1136 = vrot.lane.b32.xlu0 %v256, 86
      %v1137 = vpop.permute.xlu0 %1136
      %1138 = vrot.lane.b32.xlu0 %v257, 86
      %v1139 = vpop.permute.xlu0 %1138
      %vm1140 = vcmask 703488
      %v1141 = vsel %vm1140, %v1125, %v1127
      %v1142 = vsel %vm1140, %v1127, %v1129
      %v1143 = vsel %vm1140, %v1129, %v1131
      %v1144 = vsel %vm1140, %v1133, %v1135
      %v1145 = vsel %vm1140, %v1135, %v1137
      %v1146 = vsel %vm1140, %v1137, %v1139
      %v1150 = vsel %vm292, %v1121, 0
      %v1152 = vsel %vm292, %v1123, 0
      %v1154 = vsel %vm297, %v1144, 0
      %v1156 = vsel %vm297, %v1145, 0
      %v1158 = vsel %vm297, %v1146, 0
      %1160 = vmatpush.msra.mxu0 0.0
      %1161 = vmatpush.msra.mxu0 0.0
      %1162 = vmatpush.msra.mxu0 0.0
      %1163 = vmatpush.msra.mxu0 0.0
      %1164 = vmatpush.msra.mxu0 0.0
      %1165 = vmatpush.msra.mxu0 0.0
      %1166 = vmatpush.msra.mxu0 0.0
      %1167 = vmatpush.msra.mxu0 0.0
      %1168 = vmatpush.msra.mxu0 0.0
      %1169 = vmatpush.msra.mxu0 0.0
      %1170 = vmatpush.msra.mxu0 0.0
      %1171 = vmatpush.msra.mxu0 0.0
      %1172 = vmatpush.msra.mxu0 0.0
      %1173 = vmatpush.msra.mxu0 0.0
      %1174 = vmatpush.msra.mxu0 %v1154
      %1175 = vmatpush.msra.mxu0 %v1141
      %1176 = vmatmul.f32.gmra.mxu0 %v1150
      %v1177 = vpop.f32.mrf.mxu0
      %v1178 = vadd.f32 0.0, %v1177
      %1179 = vmatmul.f32.gmra.mxu0 %v1152
      %v1180 = vpop.f32.mrf.mxu0
      %v1181 = vadd.f32 0.0, %v1180
      %1182 = vdwg.mxu0
      %1183 = vmatpush.msra.mxu0 0.0
      %1184 = vmatpush.msra.mxu0 0.0
      %1185 = vmatpush.msra.mxu0 0.0
      %1186 = vmatpush.msra.mxu0 0.0
      %1187 = vmatpush.msra.mxu0 0.0
      %1188 = vmatpush.msra.mxu0 0.0
      %1189 = vmatpush.msra.mxu0 0.0
      %1190 = vmatpush.msra.mxu0 0.0
      %1191 = vmatpush.msra.mxu0 0.0
      %1192 = vmatpush.msra.mxu0 0.0
      %1193 = vmatpush.msra.mxu0 0.0
      %1194 = vmatpush.msra.mxu0 0.0
      %1195 = vmatpush.msra.mxu0 0.0
      %1196 = vmatpush.msra.mxu0 0.0
      %1197 = vmatpush.msra.mxu0 %v1156
      %1198 = vmatpush.msra.mxu0 %v1142
      %1199 = vmatmul.f32.gmra.mxu0 %v1150
      %v1200 = vpop.f32.mrf.mxu0
      %v1201 = vadd.f32 0.0, %v1200
      %1202 = vmatmul.f32.gmra.mxu0 %v1152
      %v1203 = vpop.f32.mrf.mxu0
      %v1204 = vadd.f32 0.0, %v1203
      %1205 = vdwg.mxu0
      %1206 = vmatpush.msra.mxu0 0.0
      %1207 = vmatpush.msra.mxu0 0.0
      %1208 = vmatpush.msra.mxu0 0.0
      %1209 = vmatpush.msra.mxu0 0.0
      %1210 = vmatpush.msra.mxu0 0.0
      %1211 = vmatpush.msra.mxu0 0.0
      %1212 = vmatpush.msra.mxu0 0.0
      %1213 = vmatpush.msra.mxu0 0.0
      %1214 = vmatpush.msra.mxu0 0.0
      %1215 = vmatpush.msra.mxu0 0.0
      %1216 = vmatpush.msra.mxu0 0.0
      %1217 = vmatpush.msra.mxu0 0.0
      %1218 = vmatpush.msra.mxu0 0.0
      %1219 = vmatpush.msra.mxu0 0.0
      %1220 = vmatpush.msra.mxu0 %v1158
      %1221 = vmatpush.msra.mxu0 %v1143
      %1222 = vmatmul.f32.gmra.mxu0 %v1150
      %v1223 = vpop.f32.mrf.mxu0
      %v1224 = vadd.f32 0.0, %v1223
      %1225 = vmatmul.f32.gmra.mxu0 %v1152
      %v1226 = vpop.f32.mrf.mxu0
      %v1227 = vadd.f32 0.0, %v1226
      %1228 = vdwg.mxu0
      %v1229 = vadd.f32 %v1114, %v1178
      %v1230 = vadd.f32 %v1115, %v1201
      %v1231 = vadd.f32 %v1116, %v1224
      %v1232 = vadd.f32 %v1117, %v1181
      %v1233 = vadd.f32 %v1118, %v1204
      %v1234 = vadd.f32 %v1119, %v1227
      %v1235 = vtanh.pop %v1229
      %v1236 = vtanh.pop %v1230
      %v1237 = vtanh.pop %v1231
      %v1238 = vtanh.pop %v1232
      %v1239 = vtanh.pop %v1233
      %v1240 = vtanh.pop %v1234
      %v1241 = vld [vmem:[%s2] sm:$0xff]
      %v1242 = vld [vmem:[%s2 + $0x8] sm:$0xf]
      %1245 = vrot.lane.b32.xlu0 %v1241, 116
      %v1246 = vpop.permute.xlu0 %1245
      %1247 = vrot.lane.b32.xlu0 %v1242, 116
      %v1248 = vpop.permute.xlu0 %1247
      %1255 = vrot.lane.b32.xlu0 %v1235, 127
      %v1256 = vpop.permute.xlu0 %1255
      %1257 = vrot.lane.b32.xlu0 %v1236, 127
      %v1258 = vpop.permute.xlu0 %1257
      %1259 = vrot.lane.b32.xlu0 %v1237, 127
      %v1260 = vpop.permute.xlu0 %1259
      %1261 = vrot.lane.b32.xlu0 %v1238, 127
      %v1262 = vpop.permute.xlu0 %1261
      %1263 = vrot.lane.b32.xlu0 %v1239, 127
      %v1264 = vpop.permute.xlu0 %1263
      %1265 = vrot.lane.b32.xlu0 %v1240, 127
      %v1266 = vpop.permute.xlu0 %1265
      %v1267 = vsel %vm284, %v1256, %v1258
      %v1268 = vsel %vm284, %v1258, %v1260
      %v1269 = vsel %vm284, %v1262, %v1264
      %v1270 = vsel %vm284, %v1264, %v1266
      %vm1274 = vcmask 97280
      %v1275 = vsel %vm1274, %v1246, 0
      %v1277 = vsel %vm1274, %v1248, 0
      %vm1279 = vcmask 1043456
      %v1280 = vsel %vm1279, %v1269, 0
      %v1282 = vsel %vm1279, %v1270, 0
      %v1284 = vsel %vm1279, %v1266, 0
      %1286 = vmatpush.msra.mxu0 0.0
      %1287 = vmatpush.msra.mxu0 0.0
      %1288 = vmatpush.msra.mxu0 0.0
      %1289 = vmatpush.msra.mxu0 0.0
      %1290 = vmatpush.msra.mxu0 0.0
      %1291 = vmatpush.msra.mxu0 0.0
      %1292 = vmatpush.msra.mxu0 0.0
      %1293 = vmatpush.msra.mxu0 0.0
      %1294 = vmatpush.msra.mxu0 0.0
      %1295 = vmatpush.msra.mxu0 0.0
      %1296 = vmatpush.msra.mxu0 0.0
      %1297 = vmatpush.msra.mxu0 0.0
      %1298 = vmatpush.msra.mxu0 0.0
      %1299 = vmatpush.msra.mxu0 0.0
      %1300 = vmatpush.msra.mxu0 %v1280
      %1301 = vmatpush.msra.mxu0 %v1267
      %1302 = vmatmul.f32.gmra.mxu0 %v1275
      %v1303 = vpop.f32.mrf.mxu0
      %v1304 = vadd.f32 0.0, %v1303
      %1305 = vmatmul.f32.gmra.mxu0 %v1277
      %v1306 = vpop.f32.mrf.mxu0
      %v1307 = vadd.f32 0.0, %v1306
      %1308 = vdwg.mxu0
      %1309 = vmatpush.msra.mxu0 0.0
      %1310 = vmatpush.msra.mxu0 0.0
      %1311 = vmatpush.msra.mxu0 0.0
      %1312 = vmatpush.msra.mxu0 0.0
      %1313 = vmatpush.msra.mxu0 0.0
      %1314 = vmatpush.msra.mxu0 0.0
      %1315 = vmatpush.msra.mxu0 0.0
      %1316 = vmatpush.msra.mxu0 0.0
      %1317 = vmatpush.msra.mxu0 0.0
      %1318 = vmatpush.msra.mxu0 0.0
      %1319 = vmatpush.msra.mxu0 0.0
      %1320 = vmatpush.msra.mxu0 0.0
      %1321 = vmatpush.msra.mxu0 0.0
      %1322 = vmatpush.msra.mxu0 0.0
      %1323 = vmatpush.msra.mxu0 %v1282
      %1324 = vmatpush.msra.mxu0 %v1268
      %1325 = vmatmul.f32.gmra.mxu0 %v1275
      %v1326 = vpop.f32.mrf.mxu0
      %v1327 = vadd.f32 0.0, %v1326
      %1328 = vmatmul.f32.gmra.mxu0 %v1277
      %v1329 = vpop.f32.mrf.mxu0
      %v1330 = vadd.f32 0.0, %v1329
      %1331 = vdwg.mxu0
      %1332 = vmatpush.msra.mxu0 0.0
      %1333 = vmatpush.msra.mxu0 0.0
      %1334 = vmatpush.msra.mxu0 0.0
      %1335 = vmatpush.msra.mxu0 0.0
      %1336 = vmatpush.msra.mxu0 0.0
      %1337 = vmatpush.msra.mxu0 0.0
      %1338 = vmatpush.msra.mxu0 0.0
      %1339 = vmatpush.msra.mxu0 0.0
      %1340 = vmatpush.msra.mxu0 0.0
      %1341 = vmatpush.msra.mxu0 0.0
      %1342 = vmatpush.msra.mxu0 0.0
      %1343 = vmatpush.msra.mxu0 0.0
      %1344 = vmatpush.msra.mxu0 0.0
      %1345 = vmatpush.msra.mxu0 0.0
      %1346 = vmatpush.msra.mxu0 %v1284
      %1347 = vmatpush.msra.mxu0 %v1260
      %1348 = vmatmul.f32.gmra.mxu0 %v1275
      %v1349 = vpop.f32.mrf.mxu0
      %v1350 = vadd.f32 0.0, %v1349
      %1351 = vmatmul.f32.gmra.mxu0 %v1277
      %v1352 = vpop.f32.mrf.mxu0
      %v1353 = vadd.f32 0.0, %v1352
      %1354 = vdwg.mxu0
      %v1355 = vsel %vm1274, %v1241, 0
      %v1357 = vsel %vm1274, %v1242, 0
      %v1359 = vsel %vm1279, %v1238, 0
      %v1361 = vsel %vm1279, %v1239, 0
      %v1363 = vsel %vm1279, %v1240, 0
      %1365 = vmatpush.msra.mxu0 0.0
      %1366 = vmatpush.msra.mxu0 0.0
      %1367 = vmatpush.msra.mxu0 0.0
      %1368 = vmatpush.msra.mxu0 0.0
      %1369 = vmatpush.msra.mxu0 0.0
      %1370 = vmatpush.msra.mxu0 0.0
      %1371 = vmatpush.msra.mxu0 0.0
      %1372 = vmatpush.msra.mxu0 0.0
      %1373 = vmatpush.msra.mxu0 0.0
      %1374 = vmatpush.msra.mxu0 0.0
      %1375 = vmatpush.msra.mxu0 0.0
      %1376 = vmatpush.msra.mxu0 0.0
      %1377 = vmatpush.msra.mxu0 0.0
      %1378 = vmatpush.msra.mxu0 0.0
      %1379 = vmatpush.msra.mxu0 %v1359
      %1380 = vmatpush.msra.mxu0 %v1235
      %1381 = vmatmul.f32.gmra.mxu0 %v1355
      %v1382 = vpop.f32.mrf.mxu0
      %v1383 = vadd.f32 %v1304, %v1382
      %1384 = vmatmul.f32.gmra.mxu0 %v1357
      %v1385 = vpop.f32.mrf.mxu0
      %v1386 = vadd.f32 %v1307, %v1385
      %1387 = vdwg.mxu0
      %1388 = vmatpush.msra.mxu0 0.0
      %1389 = vmatpush.msra.mxu0 0.0
      %1390 = vmatpush.msra.mxu0 0.0
      %1391 = vmatpush.msra.mxu0 0.0
      %1392 = vmatpush.msra.mxu0 0.0
      %1393 = vmatpush.msra.mxu0 0.0
      %1394 = vmatpush.msra.mxu0 0.0
      %1395 = vmatpush.msra.mxu0 0.0
      %1396 = vmatpush.msra.mxu0 0.0
      %1397 = vmatpush.msra.mxu0 0.0
      %1398 = vmatpush.msra.mxu0 0.0
      %1399 = vmatpush.msra.mxu0 0.0
      %1400 = vmatpush.msra.mxu0 0.0
      %1401 = vmatpush.msra.mxu0 0.0
      %1402 = vmatpush.msra.mxu0 %v1361
      %1403 = vmatpush.msra.mxu0 %v1236
      %1404 = vmatmul.f32.gmra.mxu0 %v1355
      %v1405 = vpop.f32.mrf.mxu0
      %v1406 = vadd.f32 %v1327, %v1405
      %1407 = vmatmul.f32.gmra.mxu0 %v1357
      %v1408 = vpop.f32.mrf.mxu0
      %v1409 = vadd.f32 %v1330, %v1408
      %1410 = vdwg.mxu0
      %1411 = vmatpush.msra.mxu0 0.0
      %1412 = vmatpush.msra.mxu0 0.0
      %1413 = vmatpush.msra.mxu0 0.0
      %1414 = vmatpush.msra.mxu0 0.0
      %1415 = vmatpush.msra.mxu0 0.0
      %1416 = vmatpush.msra.mxu0 0.0
      %1417 = vmatpush.msra.mxu0 0.0
      %1418 = vmatpush.msra.mxu0 0.0
      %1419 = vmatpush.msra.mxu0 0.0
      %1420 = vmatpush.msra.mxu0 0.0
      %1421 = vmatpush.msra.mxu0 0.0
      %1422 = vmatpush.msra.mxu0 0.0
      %1423 = vmatpush.msra.mxu0 0.0
      %1424 = vmatpush.msra.mxu0 0.0
      %1425 = vmatpush.msra.mxu0 %v1363
      %1426 = vmatpush.msra.mxu0 %v1237
      %1427 = vmatmul.f32.gmra.mxu0 %v1355
      %v1428 = vpop.f32.mrf.mxu0
      %v1429 = vadd.f32 %v1350, %v1428
      %1430 = vmatmul.f32.gmra.mxu0 %v1357
      %v1431 = vpop.f32.mrf.mxu0
      %v1432 = vadd.f32 %v1353, %v1431
      %1433 = vdwg.mxu0
      %1434 = vrot.lane.b32.xlu0 %v1241, 104
      %v1435 = vpop.permute.xlu0 %1434
      %1436 = vrot.lane.b32.xlu0 %v1242, 104
      %v1437 = vpop.permute.xlu0 %1436
      %1438 = vrot.lane.b32.xlu0 %v1235, 126
      %v1439 = vpop.permute.xlu0 %1438
      %1440 = vrot.lane.b32.xlu0 %v1236, 126
      %v1441 = vpop.permute.xlu0 %1440
      %1442 = vrot.lane.b32.xlu0 %v1237, 126
      %v1443 = vpop.permute.xlu0 %1442
      %1444 = vrot.lane.b32.xlu0 %v1238, 126
      %v1445 = vpop.permute.xlu0 %1444
      %1446 = vrot.lane.b32.xlu0 %v1239, 126
      %v1447 = vpop.permute.xlu0 %1446
      %1448 = vrot.lane.b32.xlu0 %v1240, 126
      %v1449 = vpop.permute.xlu0 %1448
      %v1450 = vsel %vm468, %v1439, %v1441
      %v1451 = vsel %vm468, %v1441, %v1443
      %v1452 = vsel %vm468, %v1445, %v1447
      %v1453 = vsel %vm468, %v1447, %v1449
      %v1457 = vsel %vm1274, %v1435, 0
      %v1459 = vsel %vm1274, %v1437, 0
      %v1461 = vsel %vm1279, %v1452, 0
      %v1463 = vsel %vm1279, %v1453, 0
      %v1465 = vsel %vm1279, %v1449, 0
      %1467 = vmatpush.msra.mxu0 0.0
      %1468 = vmatpush.msra.mxu0 0.0
      %1469 = vmatpush.msra.mxu0 0.0
      %1470 = vmatpush.msra.mxu0 0.0
      %1471 = vmatpush.msra.mxu0 0.0
      %1472 = vmatpush.msra.mxu0 0.0
      %1473 = vmatpush.msra.mxu0 0.0
      %1474 = vmatpush.msra.mxu0 0.0
      %1475 = vmatpush.msra.mxu0 0.0
      %1476 = vmatpush.msra.mxu0 0.0
      %1477 = vmatpush.msra.mxu0 0.0
      %1478 = vmatpush.msra.mxu0 0.0
      %1479 = vmatpush.msra.mxu0 0.0
      %1480 = vmatpush.msra.mxu0 0.0
      %1481 = vmatpush.msra.mxu0 %v1461
      %1482 = vmatpush.msra.mxu0 %v1450
      %1483 = vmatmul.f32.gmra.mxu0 %v1457
      %v1484 = vpop.f32.mrf.mxu0
      %v1485 = vadd.f32 0.0, %v1484
      %1486 = vmatmul.f32.gmra.mxu0 %v1459
      %v1487 = vpop.f32.mrf.mxu0
      %v1488 = vadd.f32 0.0, %v1487
      %1489 = vdwg.mxu0
      %1490 = vmatpush.msra.mxu0 0.0
      %1491 = vmatpush.msra.mxu0 0.0
      %1492 = vmatpush.msra.mxu0 0.0
      %1493 = vmatpush.msra.mxu0 0.0
      %1494 = vmatpush.msra.mxu0 0.0
      %1495 = vmatpush.msra.mxu0 0.0
      %1496 = vmatpush.msra.mxu0 0.0
      %1497 = vmatpush.msra.mxu0 0.0
      %1498 = vmatpush.msra.mxu0 0.0
      %1499 = vmatpush.msra.mxu0 0.0
      %1500 = vmatpush.msra.mxu0 0.0
      %1501 = vmatpush.msra.mxu0 0.0
      %1502 = vmatpush.msra.mxu0 0.0
      %1503 = vmatpush.msra.mxu0 0.0
      %1504 = vmatpush.msra.mxu0 %v1463
      %1505 = vmatpush.msra.mxu0 %v1451
      %1506 = vmatmul.f32.gmra.mxu0 %v1457
      %v1507 = vpop.f32.mrf.mxu0
      %v1508 = vadd.f32 0.0, %v1507
      %1509 = vmatmul.f32.gmra.mxu0 %v1459
      %v1510 = vpop.f32.mrf.mxu0
      %v1511 = vadd.f32 0.0, %v1510
      %1512 = vdwg.mxu0
      %1513 = vmatpush.msra.mxu0 0.0
      %1514 = vmatpush.msra.mxu0 0.0
      %1515 = vmatpush.msra.mxu0 0.0
      %1516 = vmatpush.msra.mxu0 0.0
      %1517 = vmatpush.msra.mxu0 0.0
      %1518 = vmatpush.msra.mxu0 0.0
      %1519 = vmatpush.msra.mxu0 0.0
      %1520 = vmatpush.msra.mxu0 0.0
      %1521 = vmatpush.msra.mxu0 0.0
      %1522 = vmatpush.msra.mxu0 0.0
      %1523 = vmatpush.msra.mxu0 0.0
      %1524 = vmatpush.msra.mxu0 0.0
      %1525 = vmatpush.msra.mxu0 0.0
      %1526 = vmatpush.msra.mxu0 0.0
      %1527 = vmatpush.msra.mxu0 %v1465
      %1528 = vmatpush.msra.mxu0 %v1443
      %1529 = vmatmul.f32.gmra.mxu0 %v1457
      %v1530 = vpop.f32.mrf.mxu0
      %v1531 = vadd.f32 0.0, %v1530
      %1532 = vmatmul.f32.gmra.mxu0 %v1459
      %v1533 = vpop.f32.mrf.mxu0
      %v1534 = vadd.f32 0.0, %v1533
      %1535 = vdwg.mxu0
      %v1536 = vadd.f32 %v1383, %v1485
      %v1537 = vadd.f32 %v1406, %v1508
      %v1538 = vadd.f32 %v1429, %v1531
      %v1539 = vadd.f32 %v1386, %v1488
      %v1540 = vadd.f32 %v1409, %v1511
      %v1541 = vadd.f32 %v1432, %v1534
      %1542 = vrot.lane.b32.xlu0 %v1241, 92
      %v1543 = vpop.permute.xlu0 %1542
      %1544 = vrot.lane.b32.xlu0 %v1242, 92
      %v1545 = vpop.permute.xlu0 %1544
      %1546 = vrot.lane.b32.xlu0 %v1235, 108
      %v1547 = vpop.permute.xlu0 %1546
      %1548 = vrot.lane.b32.xlu0 %v1236, 108
      %v1549 = vpop.permute.xlu0 %1548
      %1550 = vrot.lane.b32.xlu0 %v1237, 108
      %v1551 = vpop.permute.xlu0 %1550
      %1552 = vrot.lane.b32.xlu0 %v1238, 108
      %v1553 = vpop.permute.xlu0 %1552
      %1554 = vrot.lane.b32.xlu0 %v1239, 108
      %v1555 = vpop.permute.xlu0 %1554
      %1556 = vrot.lane.b32.xlu0 %v1240, 108
      %v1557 = vpop.permute.xlu0 %1556
      %v1558 = vsel %vm577, %v1547, %v1549
      %v1559 = vsel %vm577, %v1549, %v1551
      %v1560 = vsel %vm577, %v1553, %v1555
      %v1561 = vsel %vm577, %v1555, %v1557
      %v1565 = vsel %vm1274, %v1543, 0
      %v1567 = vsel %vm1274, %v1545, 0
      %v1569 = vsel %vm1279, %v1560, 0
      %v1571 = vsel %vm1279, %v1561, 0
      %v1573 = vsel %vm1279, %v1557, 0
      %1575 = vmatpush.msra.mxu0 0.0
      %1576 = vmatpush.msra.mxu0 0.0
      %1577 = vmatpush.msra.mxu0 0.0
      %1578 = vmatpush.msra.mxu0 0.0
      %1579 = vmatpush.msra.mxu0 0.0
      %1580 = vmatpush.msra.mxu0 0.0
      %1581 = vmatpush.msra.mxu0 0.0
      %1582 = vmatpush.msra.mxu0 0.0
      %1583 = vmatpush.msra.mxu0 0.0
      %1584 = vmatpush.msra.mxu0 0.0
      %1585 = vmatpush.msra.mxu0 0.0
      %1586 = vmatpush.msra.mxu0 0.0
      %1587 = vmatpush.msra.mxu0 0.0
      %1588 = vmatpush.msra.mxu0 0.0
      %1589 = vmatpush.msra.mxu0 %v1569
      %1590 = vmatpush.msra.mxu0 %v1558
      %1591 = vmatmul.f32.gmra.mxu0 %v1565
      %v1592 = vpop.f32.mrf.mxu0
      %v1593 = vadd.f32 0.0, %v1592
      %1594 = vmatmul.f32.gmra.mxu0 %v1567
      %v1595 = vpop.f32.mrf.mxu0
      %v1596 = vadd.f32 0.0, %v1595
      %1597 = vdwg.mxu0
      %1598 = vmatpush.msra.mxu0 0.0
      %1599 = vmatpush.msra.mxu0 0.0
      %1600 = vmatpush.msra.mxu0 0.0
      %1601 = vmatpush.msra.mxu0 0.0
      %1602 = vmatpush.msra.mxu0 0.0
      %1603 = vmatpush.msra.mxu0 0.0
      %1604 = vmatpush.msra.mxu0 0.0
      %1605 = vmatpush.msra.mxu0 0.0
      %1606 = vmatpush.msra.mxu0 0.0
      %1607 = vmatpush.msra.mxu0 0.0
      %1608 = vmatpush.msra.mxu0 0.0
      %1609 = vmatpush.msra.mxu0 0.0
      %1610 = vmatpush.msra.mxu0 0.0
      %1611 = vmatpush.msra.mxu0 0.0
      %1612 = vmatpush.msra.mxu0 %v1571
      %1613 = vmatpush.msra.mxu0 %v1559
      %1614 = vmatmul.f32.gmra.mxu0 %v1565
      %v1615 = vpop.f32.mrf.mxu0
      %v1616 = vadd.f32 0.0, %v1615
      %1617 = vmatmul.f32.gmra.mxu0 %v1567
      %v1618 = vpop.f32.mrf.mxu0
      %v1619 = vadd.f32 0.0, %v1618
      %1620 = vdwg.mxu0
      %1621 = vmatpush.msra.mxu0 0.0
      %1622 = vmatpush.msra.mxu0 0.0
      %1623 = vmatpush.msra.mxu0 0.0
      %1624 = vmatpush.msra.mxu0 0.0
      %1625 = vmatpush.msra.mxu0 0.0
      %1626 = vmatpush.msra.mxu0 0.0
      %1627 = vmatpush.msra.mxu0 0.0
      %1628 = vmatpush.msra.mxu0 0.0
      %1629 = vmatpush.msra.mxu0 0.0
      %1630 = vmatpush.msra.mxu0 0.0
      %1631 = vmatpush.msra.mxu0 0.0
      %1632 = vmatpush.msra.mxu0 0.0
      %1633 = vmatpush.msra.mxu0 0.0
      %1634 = vmatpush.msra.mxu0 0.0
      %1635 = vmatpush.msra.mxu0 %v1573
      %1636 = vmatpush.msra.mxu0 %v1551
      %1637 = vmatmul.f32.gmra.mxu0 %v1565
      %v1638 = vpop.f32.mrf.mxu0
      %v1639 = vadd.f32 0.0, %v1638
      %1640 = vmatmul.f32.gmra.mxu0 %v1567
      %v1641 = vpop.f32.mrf.mxu0
      %v1642 = vadd.f32 0.0, %v1641
      %1643 = vdwg.mxu0
      %v1644 = vadd.f32 %v1536, %v1593
      %v1645 = vadd.f32 %v1537, %v1616
      %v1646 = vadd.f32 %v1538, %v1639
      %v1647 = vadd.f32 %v1539, %v1596
      %v1648 = vadd.f32 %v1540, %v1619
      %v1649 = vadd.f32 %v1541, %v1642
      %1650 = vrot.lane.b32.xlu0 %v1241, 80
      %v1651 = vpop.permute.xlu0 %1650
      %1652 = vrot.lane.b32.xlu0 %v1242, 80
      %v1653 = vpop.permute.xlu0 %1652
      %1654 = vrot.lane.b32.xlu0 %v1235, 107
      %v1655 = vpop.permute.xlu0 %1654
      %1656 = vrot.lane.b32.xlu0 %v1236, 107
      %v1657 = vpop.permute.xlu0 %1656
      %1658 = vrot.lane.b32.xlu0 %v1237, 107
      %v1659 = vpop.permute.xlu0 %1658
      %1660 = vrot.lane.b32.xlu0 %v1238, 107
      %v1661 = vpop.permute.xlu0 %1660
      %1662 = vrot.lane.b32.xlu0 %v1239, 107
      %v1663 = vpop.permute.xlu0 %1662
      %1664 = vrot.lane.b32.xlu0 %v1240, 107
      %v1665 = vpop.permute.xlu0 %1664
      %v1666 = vsel %vm686, %v1655, %v1657
      %v1667 = vsel %vm686, %v1657, %v1659
      %v1668 = vsel %vm686, %v1661, %v1663
      %v1669 = vsel %vm686, %v1663, %v1665
      %v1673 = vsel %vm1274, %v1651, 0
      %v1675 = vsel %vm1274, %v1653, 0
      %v1677 = vsel %vm1279, %v1668, 0
      %v1679 = vsel %vm1279, %v1669, 0
      %v1681 = vsel %vm1279, %v1665, 0
      %1683 = vmatpush.msra.mxu0 0.0
      %1684 = vmatpush.msra.mxu0 0.0
      %1685 = vmatpush.msra.mxu0 0.0
      %1686 = vmatpush.msra.mxu0 0.0
      %1687 = vmatpush.msra.mxu0 0.0
      %1688 = vmatpush.msra.mxu0 0.0
      %1689 = vmatpush.msra.mxu0 0.0
      %1690 = vmatpush.msra.mxu0 0.0
      %1691 = vmatpush.msra.mxu0 0.0
      %1692 = vmatpush.msra.mxu0 0.0
      %1693 = vmatpush.msra.mxu0 0.0
      %1694 = vmatpush.msra.mxu0 0.0
      %1695 = vmatpush.msra.mxu0 0.0
      %1696 = vmatpush.msra.mxu0 0.0
      %1697 = vmatpush.msra.mxu0 %v1677
      %1698 = vmatpush.msra.mxu0 %v1666
      %1699 = vmatmul.f32.gmra.mxu0 %v1673
      %v1700 = vpop.f32.mrf.mxu0
      %v1701 = vadd.f32 0.0, %v1700
      %1702 = vmatmul.f32.gmra.mxu0 %v1675
      %v1703 = vpop.f32.mrf.mxu0
      %v1704 = vadd.f32 0.0, %v1703
      %1705 = vdwg.mxu0
      %1706 = vmatpush.msra.mxu0 0.0
      %1707 = vmatpush.msra.mxu0 0.0
      %1708 = vmatpush.msra.mxu0 0.0
      %1709 = vmatpush.msra.mxu0 0.0
      %1710 = vmatpush.msra.mxu0 0.0
      %1711 = vmatpush.msra.mxu0 0.0
      %1712 = vmatpush.msra.mxu0 0.0
      %1713 = vmatpush.msra.mxu0 0.0
      %1714 = vmatpush.msra.mxu0 0.0
      %1715 = vmatpush.msra.mxu0 0.0
      %1716 = vmatpush.msra.mxu0 0.0
      %1717 = vmatpush.msra.mxu0 0.0
      %1718 = vmatpush.msra.mxu0 0.0
      %1719 = vmatpush.msra.mxu0 0.0
      %1720 = vmatpush.msra.mxu0 %v1679
      %1721 = vmatpush.msra.mxu0 %v1667
      %1722 = vmatmul.f32.gmra.mxu0 %v1673
      %v1723 = vpop.f32.mrf.mxu0
      %v1724 = vadd.f32 0.0, %v1723
      %1725 = vmatmul.f32.gmra.mxu0 %v1675
      %v1726 = vpop.f32.mrf.mxu0
      %v1727 = vadd.f32 0.0, %v1726
      %1728 = vdwg.mxu0
      %1729 = vmatpush.msra.mxu0 0.0
      %1730 = vmatpush.msra.mxu0 0.0
      %1731 = vmatpush.msra.mxu0 0.0
      %1732 = vmatpush.msra.mxu0 0.0
      %1733 = vmatpush.msra.mxu0 0.0
      %1734 = vmatpush.msra.mxu0 0.0
      %1735 = vmatpush.msra.mxu0 0.0
      %1736 = vmatpush.msra.mxu0 0.0
      %1737 = vmatpush.msra.mxu0 0.0
      %1738 = vmatpush.msra.mxu0 0.0
      %1739 = vmatpush.msra.mxu0 0.0
      %1740 = vmatpush.msra.mxu0 0.0
      %1741 = vmatpush.msra.mxu0 0.0
      %1742 = vmatpush.msra.mxu0 0.0
      %1743 = vmatpush.msra.mxu0 %v1681
      %1744 = vmatpush.msra.mxu0 %v1659
      %1745 = vmatmul.f32.gmra.mxu0 %v1673
      %v1746 = vpop.f32.mrf.mxu0
      %v1747 = vadd.f32 0.0, %v1746
      %1748 = vmatmul.f32.gmra.mxu0 %v1675
      %v1749 = vpop.f32.mrf.mxu0
      %v1750 = vadd.f32 0.0, %v1749
      %1751 = vdwg.mxu0
      %v1752 = vadd.f32 %v1644, %v1701
      %v1753 = vadd.f32 %v1645, %v1724
      %v1754 = vadd.f32 %v1646, %v1747
      %v1755 = vadd.f32 %v1647, %v1704
      %v1756 = vadd.f32 %v1648, %v1727
      %v1757 = vadd.f32 %v1649, %v1750
      %1758 = vrot.lane.b32.xlu0 %v1241, 68
      %v1759 = vpop.permute.xlu0 %1758
      %1760 = vrot.lane.b32.xlu0 %v1242, 68
      %v1761 = vpop.permute.xlu0 %1760
      %1762 = vrot.lane.b32.xlu0 %v1235, 106
      %v1763 = vpop.permute.xlu0 %1762
      %1764 = vrot.lane.b32.xlu0 %v1236, 106
      %v1765 = vpop.permute.xlu0 %1764
      %1766 = vrot.lane.b32.xlu0 %v1237, 106
      %v1767 = vpop.permute.xlu0 %1766
      %1768 = vrot.lane.b32.xlu0 %v1238, 106
      %v1769 = vpop.permute.xlu0 %1768
      %1770 = vrot.lane.b32.xlu0 %v1239, 106
      %v1771 = vpop.permute.xlu0 %1770
      %1772 = vrot.lane.b32.xlu0 %v1240, 106
      %v1773 = vpop.permute.xlu0 %1772
      %v1774 = vsel %vm795, %v1763, %v1765
      %v1775 = vsel %vm795, %v1765, %v1767
      %v1776 = vsel %vm795, %v1769, %v1771
      %v1777 = vsel %vm795, %v1771, %v1773
      %v1781 = vsel %vm1274, %v1759, 0
      %v1783 = vsel %vm1274, %v1761, 0
      %v1785 = vsel %vm1279, %v1776, 0
      %v1787 = vsel %vm1279, %v1777, 0
      %v1789 = vsel %vm1279, %v1773, 0
      %1791 = vmatpush.msra.mxu0 0.0
      %1792 = vmatpush.msra.mxu0 0.0
      %1793 = vmatpush.msra.mxu0 0.0
      %1794 = vmatpush.msra.mxu0 0.0
      %1795 = vmatpush.msra.mxu0 0.0
      %1796 = vmatpush.msra.mxu0 0.0
      %1797 = vmatpush.msra.mxu0 0.0
      %1798 = vmatpush.msra.mxu0 0.0
      %1799 = vmatpush.msra.mxu0 0.0
      %1800 = vmatpush.msra.mxu0 0.0
      %1801 = vmatpush.msra.mxu0 0.0
      %1802 = vmatpush.msra.mxu0 0.0
      %1803 = vmatpush.msra.mxu0 0.0
      %1804 = vmatpush.msra.mxu0 0.0
      %1805 = vmatpush.msra.mxu0 %v1785
      %1806 = vmatpush.msra.mxu0 %v1774
      %1807 = vmatmul.f32.gmra.mxu0 %v1781
      %v1808 = vpop.f32.mrf.mxu0
      %v1809 = vadd.f32 0.0, %v1808
      %1810 = vmatmul.f32.gmra.mxu0 %v1783
      %v1811 = vpop.f32.mrf.mxu0
      %v1812 = vadd.f32 0.0, %v1811
      %1813 = vdwg.mxu0
      %1814 = vmatpush.msra.mxu0 0.0
      %1815 = vmatpush.msra.mxu0 0.0
      %1816 = vmatpush.msra.mxu0 0.0
      %1817 = vmatpush.msra.mxu0 0.0
      %1818 = vmatpush.msra.mxu0 0.0
      %1819 = vmatpush.msra.mxu0 0.0
      %1820 = vmatpush.msra.mxu0 0.0
      %1821 = vmatpush.msra.mxu0 0.0
      %1822 = vmatpush.msra.mxu0 0.0
      %1823 = vmatpush.msra.mxu0 0.0
      %1824 = vmatpush.msra.mxu0 0.0
      %1825 = vmatpush.msra.mxu0 0.0
      %1826 = vmatpush.msra.mxu0 0.0
      %1827 = vmatpush.msra.mxu0 0.0
      %1828 = vmatpush.msra.mxu0 %v1787
      %1829 = vmatpush.msra.mxu0 %v1775
      %1830 = vmatmul.f32.gmra.mxu0 %v1781
      %v1831 = vpop.f32.mrf.mxu0
      %v1832 = vadd.f32 0.0, %v1831
      %1833 = vmatmul.f32.gmra.mxu0 %v1783
      %v1834 = vpop.f32.mrf.mxu0
      %v1835 = vadd.f32 0.0, %v1834
      %1836 = vdwg.mxu0
      %1837 = vmatpush.msra.mxu0 0.0
      %1838 = vmatpush.msra.mxu0 0.0
      %1839 = vmatpush.msra.mxu0 0.0
      %1840 = vmatpush.msra.mxu0 0.0
      %1841 = vmatpush.msra.mxu0 0.0
      %1842 = vmatpush.msra.mxu0 0.0
      %1843 = vmatpush.msra.mxu0 0.0
      %1844 = vmatpush.msra.mxu0 0.0
      %1845 = vmatpush.msra.mxu0 0.0
      %1846 = vmatpush.msra.mxu0 0.0
      %1847 = vmatpush.msra.mxu0 0.0
      %1848 = vmatpush.msra.mxu0 0.0
      %1849 = vmatpush.msra.mxu0 0.0
      %1850 = vmatpush.msra.mxu0 0.0
      %1851 = vmatpush.msra.mxu0 %v1789
      %1852 = vmatpush.msra.mxu0 %v1767
      %1853 = vmatmul.f32.gmra.mxu0 %v1781
      %v1854 = vpop.f32.mrf.mxu0
      %v1855 = vadd.f32 0.0, %v1854
      %1856 = vmatmul.f32.gmra.mxu0 %v1783
      %v1857 = vpop.f32.mrf.mxu0
      %v1858 = vadd.f32 0.0, %v1857
      %1859 = vdwg.mxu0
      %v1860 = vadd.f32 %v1752, %v1809
      %v1861 = vadd.f32 %v1753, %v1832
      %v1862 = vadd.f32 %v1754, %v1855
      %v1863 = vadd.f32 %v1755, %v1812
      %v1864 = vadd.f32 %v1756, %v1835
      %v1865 = vadd.f32 %v1757, %v1858
      %1866 = vrot.lane.b32.xlu0 %v1241, 56
      %v1867 = vpop.permute.xlu0 %1866
      %1868 = vrot.lane.b32.xlu0 %v1242, 56
      %v1869 = vpop.permute.xlu0 %1868
      %1870 = vrot.lane.b32.xlu0 %v1235, 88
      %v1871 = vpop.permute.xlu0 %1870
      %1872 = vrot.lane.b32.xlu0 %v1236, 88
      %v1873 = vpop.permute.xlu0 %1872
      %1874 = vrot.lane.b32.xlu0 %v1237, 88
      %v1875 = vpop.permute.xlu0 %1874
      %1876 = vrot.lane.b32.xlu0 %v1238, 88
      %v1877 = vpop.permute.xlu0 %1876
      %1878 = vrot.lane.b32.xlu0 %v1239, 88
      %v1879 = vpop.permute.xlu0 %1878
      %1880 = vrot.lane.b32.xlu0 %v1240, 88
      %v1881 = vpop.permute.xlu0 %1880
      %v1882 = vsel %vm910, %v1871, %v1873
      %v1883 = vsel %vm910, %v1873, %v1875
      %v1884 = vsel %vm910, %v1877, %v1879
      %v1885 = vsel %vm910, %v1879, %v1881
      %v1889 = vsel %vm1274, %v1867, 0
      %v1891 = vsel %vm1274, %v1869, 0
      %v1893 = vsel %vm1279, %v1884, 0
      %v1895 = vsel %vm1279, %v1885, 0
      %v1897 = vsel %vm1279, %v1881, 0
      %1899 = vmatpush.msra.mxu0 0.0
      %1900 = vmatpush.msra.mxu0 0.0
      %1901 = vmatpush.msra.mxu0 0.0
      %1902 = vmatpush.msra.mxu0 0.0
      %1903 = vmatpush.msra.mxu0 0.0
      %1904 = vmatpush.msra.mxu0 0.0
      %1905 = vmatpush.msra.mxu0 0.0
      %1906 = vmatpush.msra.mxu0 0.0
      %1907 = vmatpush.msra.mxu0 0.0
      %1908 = vmatpush.msra.mxu0 0.0
      %1909 = vmatpush.msra.mxu0 0.0
      %1910 = vmatpush.msra.mxu0 0.0
      %1911 = vmatpush.msra.mxu0 0.0
      %1912 = vmatpush.msra.mxu0 0.0
      %1913 = vmatpush.msra.mxu0 %v1893
      %1914 = vmatpush.msra.mxu0 %v1882
      %1915 = vmatmul.f32.gmra.mxu0 %v1889
      %v1916 = vpop.f32.mrf.mxu0
      %v1917 = vadd.f32 0.0, %v1916
      %1918 = vmatmul.f32.gmra.mxu0 %v1891
      %v1919 = vpop.f32.mrf.mxu0
      %v1920 = vadd.f32 0.0, %v1919
      %1921 = vdwg.mxu0
      %1922 = vmatpush.msra.mxu0 0.0
      %1923 = vmatpush.msra.mxu0 0.0
      %1924 = vmatpush.msra.mxu0 0.0
      %1925 = vmatpush.msra.mxu0 0.0
      %1926 = vmatpush.msra.mxu0 0.0
      %1927 = vmatpush.msra.mxu0 0.0
      %1928 = vmatpush.msra.mxu0 0.0
      %1929 = vmatpush.msra.mxu0 0.0
      %1930 = vmatpush.msra.mxu0 0.0
      %1931 = vmatpush.msra.mxu0 0.0
      %1932 = vmatpush.msra.mxu0 0.0
      %1933 = vmatpush.msra.mxu0 0.0
      %1934 = vmatpush.msra.mxu0 0.0
      %1935 = vmatpush.msra.mxu0 0.0
      %1936 = vmatpush.msra.mxu0 %v1895
      %1937 = vmatpush.msra.mxu0 %v1883
      %1938 = vmatmul.f32.gmra.mxu0 %v1889
      %v1939 = vpop.f32.mrf.mxu0
      %v1940 = vadd.f32 0.0, %v1939
      %1941 = vmatmul.f32.gmra.mxu0 %v1891
      %v1942 = vpop.f32.mrf.mxu0
      %v1943 = vadd.f32 0.0, %v1942
      %1944 = vdwg.mxu0
      %1945 = vmatpush.msra.mxu0 0.0
      %1946 = vmatpush.msra.mxu0 0.0
      %1947 = vmatpush.msra.mxu0 0.0
      %1948 = vmatpush.msra.mxu0 0.0
      %1949 = vmatpush.msra.mxu0 0.0
      %1950 = vmatpush.msra.mxu0 0.0
      %1951 = vmatpush.msra.mxu0 0.0
      %1952 = vmatpush.msra.mxu0 0.0
      %1953 = vmatpush.msra.mxu0 0.0
      %1954 = vmatpush.msra.mxu0 0.0
      %1955 = vmatpush.msra.mxu0 0.0
      %1956 = vmatpush.msra.mxu0 0.0
      %1957 = vmatpush.msra.mxu0 0.0
      %1958 = vmatpush.msra.mxu0 0.0
      %1959 = vmatpush.msra.mxu0 %v1897
      %1960 = vmatpush.msra.mxu0 %v1875
      %1961 = vmatmul.f32.gmra.mxu0 %v1889
      %v1962 = vpop.f32.mrf.mxu0
      %v1963 = vadd.f32 0.0, %v1962
      %1964 = vmatmul.f32.gmra.mxu0 %v1891
      %v1965 = vpop.f32.mrf.mxu0
      %v1966 = vadd.f32 0.0, %v1965
      %1967 = vdwg.mxu0
      %v1968 = vadd.f32 %v1860, %v1917
      %v1969 = vadd.f32 %v1861, %v1940
      %v1970 = vadd.f32 %v1862, %v1963
      %v1971 = vadd.f32 %v1863, %v1920
      %v1972 = vadd.f32 %v1864, %v1943
      %v1973 = vadd.f32 %v1865, %v1966
      %1974 = vrot.lane.b32.xlu0 %v1241, 44
      %v1975 = vpop.permute.xlu0 %1974
      %1976 = vrot.lane.b32.xlu0 %v1242, 44
      %v1977 = vpop.permute.xlu0 %1976
      %1978 = vrot.lane.b32.xlu0 %v1235, 87
      %v1979 = vpop.permute.xlu0 %1978
      %1980 = vrot.lane.b32.xlu0 %v1236, 87
      %v1981 = vpop.permute.xlu0 %1980
      %1982 = vrot.lane.b32.xlu0 %v1237, 87
      %v1983 = vpop.permute.xlu0 %1982
      %1984 = vrot.lane.b32.xlu0 %v1238, 87
      %v1985 = vpop.permute.xlu0 %1984
      %1986 = vrot.lane.b32.xlu0 %v1239, 87
      %v1987 = vpop.permute.xlu0 %1986
      %1988 = vrot.lane.b32.xlu0 %v1240, 87
      %v1989 = vpop.permute.xlu0 %1988
      %v1990 = vsel %vm1025, %v1979, %v1981
      %v1991 = vsel %vm1025, %v1981, %v1983
      %v1992 = vsel %vm1025, %v1985, %v1987
      %v1993 = vsel %vm1025, %v1987, %v1989
      %v1997 = vsel %vm1274, %v1975, 0
      %v1999 = vsel %vm1274, %v1977, 0
      %v2001 = vsel %vm1279, %v1992, 0
      %v2003 = vsel %vm1279, %v1993, 0
      %v2005 = vsel %vm1279, %v1989, 0
      %2007 = vmatpush.msra.mxu0 0.0
      %2008 = vmatpush.msra.mxu0 0.0
      %2009 = vmatpush.msra.mxu0 0.0
      %2010 = vmatpush.msra.mxu0 0.0
      %2011 = vmatpush.msra.mxu0 0.0
      %2012 = vmatpush.msra.mxu0 0.0
      %2013 = vmatpush.msra.mxu0 0.0
      %2014 = vmatpush.msra.mxu0 0.0
      %2015 = vmatpush.msra.mxu0 0.0
      %2016 = vmatpush.msra.mxu0 0.0
      %2017 = vmatpush.msra.mxu0 0.0
      %2018 = vmatpush.msra.mxu0 0.0
      %2019 = vmatpush.msra.mxu0 0.0
      %2020 = vmatpush.msra.mxu0 0.0
      %2021 = vmatpush.msra.mxu0 %v2001
      %2022 = vmatpush.msra.mxu0 %v1990
      %2023 = vmatmul.f32.gmra.mxu0 %v1997
      %v2024 = vpop.f32.mrf.mxu0
      %v2025 = vadd.f32 0.0, %v2024
      %2026 = vmatmul.f32.gmra.mxu0 %v1999
      %v2027 = vpop.f32.mrf.mxu0
      %v2028 = vadd.f32 0.0, %v2027
      %2029 = vdwg.mxu0
      %2030 = vmatpush.msra.mxu0 0.0
      %2031 = vmatpush.msra.mxu0 0.0
      %2032 = vmatpush.msra.mxu0 0.0
      %2033 = vmatpush.msra.mxu0 0.0
      %2034 = vmatpush.msra.mxu0 0.0
      %2035 = vmatpush.msra.mxu0 0.0
      %2036 = vmatpush.msra.mxu0 0.0
      %2037 = vmatpush.msra.mxu0 0.0
      %2038 = vmatpush.msra.mxu0 0.0
      %2039 = vmatpush.msra.mxu0 0.0
      %2040 = vmatpush.msra.mxu0 0.0
      %2041 = vmatpush.msra.mxu0 0.0
      %2042 = vmatpush.msra.mxu0 0.0
      %2043 = vmatpush.msra.mxu0 0.0
      %2044 = vmatpush.msra.mxu0 %v2003
      %2045 = vmatpush.msra.mxu0 %v1991
      %2046 = vmatmul.f32.gmra.mxu0 %v1997
      %v2047 = vpop.f32.mrf.mxu0
      %v2048 = vadd.f32 0.0, %v2047
      %2049 = vmatmul.f32.gmra.mxu0 %v1999
      %v2050 = vpop.f32.mrf.mxu0
      %v2051 = vadd.f32 0.0, %v2050
      %2052 = vdwg.mxu0
      %2053 = vmatpush.msra.mxu0 0.0
      %2054 = vmatpush.msra.mxu0 0.0
      %2055 = vmatpush.msra.mxu0 0.0
      %2056 = vmatpush.msra.mxu0 0.0
      %2057 = vmatpush.msra.mxu0 0.0
      %2058 = vmatpush.msra.mxu0 0.0
      %2059 = vmatpush.msra.mxu0 0.0
      %2060 = vmatpush.msra.mxu0 0.0
      %2061 = vmatpush.msra.mxu0 0.0
      %2062 = vmatpush.msra.mxu0 0.0
      %2063 = vmatpush.msra.mxu0 0.0
      %2064 = vmatpush.msra.mxu0 0.0
      %2065 = vmatpush.msra.mxu0 0.0
      %2066 = vmatpush.msra.mxu0 0.0
      %2067 = vmatpush.msra.mxu0 %v2005
      %2068 = vmatpush.msra.mxu0 %v1983
      %2069 = vmatmul.f32.gmra.mxu0 %v1997
      %v2070 = vpop.f32.mrf.mxu0
      %v2071 = vadd.f32 0.0, %v2070
      %2072 = vmatmul.f32.gmra.mxu0 %v1999
      %v2073 = vpop.f32.mrf.mxu0
      %v2074 = vadd.f32 0.0, %v2073
      %2075 = vdwg.mxu0
      %v2076 = vadd.f32 %v1968, %v2025
      %v2077 = vadd.f32 %v1969, %v2048
      %v2078 = vadd.f32 %v1970, %v2071
      %v2079 = vadd.f32 %v1971, %v2028
      %v2080 = vadd.f32 %v1972, %v2051
      %v2081 = vadd.f32 %v1973, %v2074
      %2082 = vrot.lane.b32.xlu0 %v1241, 32
      %v2083 = vpop.permute.xlu0 %2082
      %2084 = vrot.lane.b32.xlu0 %v1242, 32
      %v2085 = vpop.permute.xlu0 %2084
      %2086 = vrot.lane.b32.xlu0 %v1235, 86
      %v2087 = vpop.permute.xlu0 %2086
      %2088 = vrot.lane.b32.xlu0 %v1236, 86
      %v2089 = vpop.permute.xlu0 %2088
      %2090 = vrot.lane.b32.xlu0 %v1237, 86
      %v2091 = vpop.permute.xlu0 %2090
      %2092 = vrot.lane.b32.xlu0 %v1238, 86
      %v2093 = vpop.permute.xlu0 %2092
      %2094 = vrot.lane.b32.xlu0 %v1239, 86
      %v2095 = vpop.permute.xlu0 %2094
      %2096 = vrot.lane.b32.xlu0 %v1240, 86
      %v2097 = vpop.permute.xlu0 %2096
      %v2098 = vsel %vm1140, %v2087, %v2089
      %v2099 = vsel %vm1140, %v2089, %v2091
      %v2100 = vsel %vm1140, %v2093, %v2095
      %v2101 = vsel %vm1140, %v2095, %v2097
      %v2105 = vsel %vm1274, %v2083, 0
      %v2107 = vsel %vm1274, %v2085, 0
      %v2109 = vsel %vm1279, %v2100, 0
      %v2111 = vsel %vm1279, %v2101, 0
      %v2113 = vsel %vm1279, %v2097, 0
      %2115 = vmatpush.msra.mxu0 0.0
      %2116 = vmatpush.msra.mxu0 0.0
      %2117 = vmatpush.msra.mxu0 0.0
      %2118 = vmatpush.msra.mxu0 0.0
      %2119 = vmatpush.msra.mxu0 0.0
      %2120 = vmatpush.msra.mxu0 0.0
      %2121 = vmatpush.msra.mxu0 0.0
      %2122 = vmatpush.msra.mxu0 0.0
      %2123 = vmatpush.msra.mxu0 0.0
      %2124 = vmatpush.msra.mxu0 0.0
      %2125 = vmatpush.msra.mxu0 0.0
      %2126 = vmatpush.msra.mxu0 0.0
      %2127 = vmatpush.msra.mxu0 0.0
      %2128 = vmatpush.msra.mxu0 0.0
      %2129 = vmatpush.msra.mxu0 %v2109
      %2130 = vmatpush.msra.mxu0 %v2098
      %2131 = vmatmul.f32.gmra.mxu0 %v2105
      %v2132 = vpop.f32.mrf.mxu0
      %v2133 = vadd.f32 0.0, %v2132
      %2134 = vmatmul.f32.gmra.mxu0 %v2107
      %v2135 = vpop.f32.mrf.mxu0
      %v2136 = vadd.f32 0.0, %v2135
      %2137 = vdwg.mxu0
      %2138 = vmatpush.msra.mxu0 0.0
      %2139 = vmatpush.msra.mxu0 0.0
      %2140 = vmatpush.msra.mxu0 0.0
      %2141 = vmatpush.msra.mxu0 0.0
      %2142 = vmatpush.msra.mxu0 0.0
      %2143 = vmatpush.msra.mxu0 0.0
      %2144 = vmatpush.msra.mxu0 0.0
      %2145 = vmatpush.msra.mxu0 0.0
      %2146 = vmatpush.msra.mxu0 0.0
      %2147 = vmatpush.msra.mxu0 0.0
      %2148 = vmatpush.msra.mxu0 0.0
      %2149 = vmatpush.msra.mxu0 0.0
      %2150 = vmatpush.msra.mxu0 0.0
      %2151 = vmatpush.msra.mxu0 0.0
      %2152 = vmatpush.msra.mxu0 %v2111
      %2153 = vmatpush.msra.mxu0 %v2099
      %2154 = vmatmul.f32.gmra.mxu0 %v2105
      %v2155 = vpop.f32.mrf.mxu0
      %v2156 = vadd.f32 0.0, %v2155
      %2157 = vmatmul.f32.gmra.mxu0 %v2107
      %v2158 = vpop.f32.mrf.mxu0
      %v2159 = vadd.f32 0.0, %v2158
      %2160 = vdwg.mxu0
      %2161 = vmatpush.msra.mxu0 0.0
      %2162 = vmatpush.msra.mxu0 0.0
      %2163 = vmatpush.msra.mxu0 0.0
      %2164 = vmatpush.msra.mxu0 0.0
      %2165 = vmatpush.msra.mxu0 0.0
      %2166 = vmatpush.msra.mxu0 0.0
      %2167 = vmatpush.msra.mxu0 0.0
      %2168 = vmatpush.msra.mxu0 0.0
      %2169 = vmatpush.msra.mxu0 0.0
      %2170 = vmatpush.msra.mxu0 0.0
      %2171 = vmatpush.msra.mxu0 0.0
      %2172 = vmatpush.msra.mxu0 0.0
      %2173 = vmatpush.msra.mxu0 0.0
      %2174 = vmatpush.msra.mxu0 0.0
      %2175 = vmatpush.msra.mxu0 %v2113
      %2176 = vmatpush.msra.mxu0 %v2091
      %2177 = vmatmul.f32.gmra.mxu0 %v2105
      %v2178 = vpop.f32.mrf.mxu0
      %v2179 = vadd.f32 0.0, %v2178
      %2180 = vmatmul.f32.gmra.mxu0 %v2107
      %v2181 = vpop.f32.mrf.mxu0
      %v2182 = vadd.f32 0.0, %v2181
      %2183 = vdwg.mxu0
      %v2184 = vadd.f32 %v2076, %v2133
      %v2185 = vadd.f32 %v2077, %v2156
      %v2186 = vadd.f32 %v2078, %v2179
      %v2187 = vadd.f32 %v2079, %v2136
      %v2188 = vadd.f32 %v2080, %v2159
      %v2189 = vadd.f32 %v2081, %v2182
      %v2190 = vtanh.pop %v2184
      %v2191 = vtanh.pop %v2185
      %v2192 = vtanh.pop %v2186
      %v2193 = vtanh.pop %v2187
      %v2194 = vtanh.pop %v2188
      %v2195 = vtanh.pop %v2189
      %v2196 = vld [vmem:[%s3] sm:$0xff]
      %v2197 = vld [vmem:[%s3 + $0x8] sm:$0xf]
      %2199 = vset.pattern.permute.xlu0 0
      %2200 = vperm.xlu0 %2199, %v2196
      %v2201 = vpop.permute.xlu0 %2200
      %2204 = vset.pattern.permute.xlu0 0
      %2205 = vperm.xlu0 %2204, %v2197
      %v2206 = vpop.permute.xlu0 %2205
      %v2208 = vmul.f32 %v2190, %v2201
      %v2209 = vmul.f32 %v2191, %v2201
      %v2210 = vmul.f32 %v2192, %v2201
      %v2211 = vmul.f32 %v2193, %v2206
      %v2212 = vmul.f32 %v2194, %v2206
      %v2213 = vmul.f32 %v2195, %v2206
      %v2214 = vld [vmem:[%s4] sm:$0xff]
      %v2215 = vld [vmem:[%s4 + $0x8] sm:$0xf]
      %2217 = vset.pattern.permute.xlu0 0
      %2218 = vperm.xlu0 %2217, %v2214
      %v2219 = vpop.permute.xlu0 %2218
      %2222 = vset.pattern.permute.xlu0 0
      %2223 = vperm.xlu0 %2222, %v2215
      %v2224 = vpop.permute.xlu0 %2223
      %v2226 = vadd.f32 %v2208, %v2219
      %v2227 = vadd.f32 %v2209, %v2219
      %v2228 = vadd.f32 %v2210, %v2219
      %v2229 = vadd.f32 %v2211, %v2224
      %v2230 = vadd.f32 %v2212, %v2224
      %v2231 = vadd.f32 %v2213, %v2224
      %v2232 = vtanh.pop %v2226
      %v2233 = vtanh.pop %v2227
      %v2234 = vtanh.pop %v2228
      %v2235 = vtanh.pop %v2229
      %v2236 = vtanh.pop %v2230
      %v2237 = vtanh.pop %v2231
      %v2238 = vld [vmem:[%s5] sm:$0x1]
      %v2240 = vperm.slane %v2238, 0
      %2241 = vrot.lane.b32.xlu0 %v2240, 116
      %v2242 = vpop.permute.xlu0 %2241
      %2249 = vrot.lane.b32.xlu0 %v2232, 127
      %v2250 = vpop.permute.xlu0 %2249
      %2251 = vrot.lane.b32.xlu0 %v2233, 127
      %v2252 = vpop.permute.xlu0 %2251
      %2253 = vrot.lane.b32.xlu0 %v2234, 127
      %v2254 = vpop.permute.xlu0 %2253
      %2255 = vrot.lane.b32.xlu0 %v2235, 127
      %v2256 = vpop.permute.xlu0 %2255
      %2257 = vrot.lane.b32.xlu0 %v2236, 127
      %v2258 = vpop.permute.xlu0 %2257
      %2259 = vrot.lane.b32.xlu0 %v2237, 127
      %v2260 = vpop.permute.xlu0 %2259
      %v2261 = vsel %vm284, %v2250, %v2252
      %v2262 = vsel %vm284, %v2252, %v2254
      %v2263 = vsel %vm284, %v2256, %v2258
      %v2264 = vsel %vm284, %v2258, %v2260
      %v2268 = vsel %vm1274, %v2242, 0
      %v2270 = vsel %vm1279, %v2263, 0
      %v2272 = vsel %vm1279, %v2264, 0
      %v2274 = vsel %vm1279, %v2260, 0
      %2276 = vmatpush.msra.mxu0 0.0
      %2277 = vmatpush.msra.mxu0 0.0
      %2278 = vmatpush.msra.mxu0 0.0
      %2279 = vmatpush.msra.mxu0 0.0
      %2280 = vmatpush.msra.mxu0 0.0
      %2281 = vmatpush.msra.mxu0 0.0
      %2282 = vmatpush.msra.mxu0 0.0
      %2283 = vmatpush.msra.mxu0 0.0
      %2284 = vmatpush.msra.mxu0 0.0
      %2285 = vmatpush.msra.mxu0 0.0
      %2286 = vmatpush.msra.mxu0 0.0
      %2287 = vmatpush.msra.mxu0 0.0
      %2288 = vmatpush.msra.mxu0 0.0
      %2289 = vmatpush.msra.mxu0 0.0
      %2290 = vmatpush.msra.mxu0 %v2270
      %2291 = vmatpush.msra.mxu0 %v2261
      %2292 = vmatmul.f32.gmra.mxu0 %v2268
      %v2293 = vpop.f32.mrf.mxu0
      %v2294 = vadd.f32 0.0, %v2293
      %2295 = vdwg.mxu0
      %2296 = vmatpush.msra.mxu0 0.0
      %2297 = vmatpush.msra.mxu0 0.0
      %2298 = vmatpush.msra.mxu0 0.0
      %2299 = vmatpush.msra.mxu0 0.0
      %2300 = vmatpush.msra.mxu0 0.0
      %2301 = vmatpush.msra.mxu0 0.0
      %2302 = vmatpush.msra.mxu0 0.0
      %2303 = vmatpush.msra.mxu0 0.0
      %2304 = vmatpush.msra.mxu0 0.0
      %2305 = vmatpush.msra.mxu0 0.0
      %2306 = vmatpush.msra.mxu0 0.0
      %2307 = vmatpush.msra.mxu0 0.0
      %2308 = vmatpush.msra.mxu0 0.0
      %2309 = vmatpush.msra.mxu0 0.0
      %2310 = vmatpush.msra.mxu0 %v2272
      %2311 = vmatpush.msra.mxu0 %v2262
      %2312 = vmatmul.f32.gmra.mxu0 %v2268
      %v2313 = vpop.f32.mrf.mxu0
      %v2314 = vadd.f32 0.0, %v2313
      %2315 = vdwg.mxu0
      %2316 = vmatpush.msra.mxu0 0.0
      %2317 = vmatpush.msra.mxu0 0.0
      %2318 = vmatpush.msra.mxu0 0.0
      %2319 = vmatpush.msra.mxu0 0.0
      %2320 = vmatpush.msra.mxu0 0.0
      %2321 = vmatpush.msra.mxu0 0.0
      %2322 = vmatpush.msra.mxu0 0.0
      %2323 = vmatpush.msra.mxu0 0.0
      %2324 = vmatpush.msra.mxu0 0.0
      %2325 = vmatpush.msra.mxu0 0.0
      %2326 = vmatpush.msra.mxu0 0.0
      %2327 = vmatpush.msra.mxu0 0.0
      %2328 = vmatpush.msra.mxu0 0.0
      %2329 = vmatpush.msra.mxu0 0.0
      %2330 = vmatpush.msra.mxu0 %v2274
      %2331 = vmatpush.msra.mxu0 %v2254
      %2332 = vmatmul.f32.gmra.mxu0 %v2268
      %v2333 = vpop.f32.mrf.mxu0
      %v2334 = vadd.f32 0.0, %v2333
      %2335 = vdwg.mxu0
      %v2336 = vsel %vm1274, %v2238, 0
      %v2338 = vsel %vm1279, %v2235, 0
      %v2340 = vsel %vm1279, %v2236, 0
      %v2342 = vsel %vm1279, %v2237, 0
      %2344 = vmatpush.msra.mxu0 0.0
      %2345 = vmatpush.msra.mxu0 0.0
      %2346 = vmatpush.msra.mxu0 0.0
      %2347 = vmatpush.msra.mxu0 0.0
      %2348 = vmatpush.msra.mxu0 0.0
      %2349 = vmatpush.msra.mxu0 0.0
      %2350 = vmatpush.msra.mxu0 0.0
      %2351 = vmatpush.msra.mxu0 0.0
      %2352 = vmatpush.msra.mxu0 0.0
      %2353 = vmatpush.msra.mxu0 0.0
      %2354 = vmatpush.msra.mxu0 0.0
      %2355 = vmatpush.msra.mxu0 0.0
      %2356 = vmatpush.msra.mxu0 0.0
      %2357 = vmatpush.msra.mxu0 0.0
      %2358 = vmatpush.msra.mxu0 %v2338
      %2359 = vmatpush.msra.mxu0 %v2232
      %2360 = vmatmul.f32.gmra.mxu0 %v2336
      %v2361 = vpop.f32.mrf.mxu0
      %v2362 = vadd.f32 %v2294, %v2361
      %2363 = vdwg.mxu0
      %2364 = vmatpush.msra.mxu0 0.0
      %2365 = vmatpush.msra.mxu0 0.0
      %2366 = vmatpush.msra.mxu0 0.0
      %2367 = vmatpush.msra.mxu0 0.0
      %2368 = vmatpush.msra.mxu0 0.0
      %2369 = vmatpush.msra.mxu0 0.0
      %2370 = vmatpush.msra.mxu0 0.0
      %2371 = vmatpush.msra.mxu0 0.0
      %2372 = vmatpush.msra.mxu0 0.0
      %2373 = vmatpush.msra.mxu0 0.0
      %2374 = vmatpush.msra.mxu0 0.0
      %2375 = vmatpush.msra.mxu0 0.0
      %2376 = vmatpush.msra.mxu0 0.0
      %2377 = vmatpush.msra.mxu0 0.0
      %2378 = vmatpush.msra.mxu0 %v2340
      %2379 = vmatpush.msra.mxu0 %v2233
      %2380 = vmatmul.f32.gmra.mxu0 %v2336
      %v2381 = vpop.f32.mrf.mxu0
      %v2382 = vadd.f32 %v2314, %v2381
      %2383 = vdwg.mxu0
      %2384 = vmatpush.msra.mxu0 0.0
      %2385 = vmatpush.msra.mxu0 0.0
      %2386 = vmatpush.msra.mxu0 0.0
      %2387 = vmatpush.msra.mxu0 0.0
      %2388 = vmatpush.msra.mxu0 0.0
      %2389 = vmatpush.msra.mxu0 0.0
      %2390 = vmatpush.msra.mxu0 0.0
      %2391 = vmatpush.msra.mxu0 0.0
      %2392 = vmatpush.msra.mxu0 0.0
      %2393 = vmatpush.msra.mxu0 0.0
      %2394 = vmatpush.msra.mxu0 0.0
      %2395 = vmatpush.msra.mxu0 0.0
      %2396 = vmatpush.msra.mxu0 0.0
      %2397 = vmatpush.msra.mxu0 0.0
      %2398 = vmatpush.msra.mxu0 %v2342
      %2399 = vmatpush.msra.mxu0 %v2234
      %2400 = vmatmul.f32.gmra.mxu0 %v2336
      %v2401 = vpop.f32.mrf.mxu0
      %v2402 = vadd.f32 %v2334, %v2401
      %2403 = vdwg.mxu0
      %2404 = vrot.lane.b32.xlu0 %v2240, 104
      %v2405 = vpop.permute.xlu0 %2404
      %2406 = vrot.lane.b32.xlu0 %v2232, 108
      %v2407 = vpop.permute.xlu0 %2406
      %2408 = vrot.lane.b32.xlu0 %v2233, 108
      %v2409 = vpop.permute.xlu0 %2408
      %2410 = vrot.lane.b32.xlu0 %v2234, 108
      %v2411 = vpop.permute.xlu0 %2410
      %2412 = vrot.lane.b32.xlu0 %v2235, 108
      %v2413 = vpop.permute.xlu0 %2412
      %2414 = vrot.lane.b32.xlu0 %v2236, 108
      %v2415 = vpop.permute.xlu0 %2414
      %2416 = vrot.lane.b32.xlu0 %v2237, 108
      %v2417 = vpop.permute.xlu0 %2416
      %v2418 = vsel %vm577, %v2407, %v2409
      %v2419 = vsel %vm577, %v2409, %v2411
      %v2420 = vsel %vm577, %v2413, %v2415
      %v2421 = vsel %vm577, %v2415, %v2417
      %v2425 = vsel %vm1274, %v2405, 0
      %v2427 = vsel %vm1279, %v2420, 0
      %v2429 = vsel %vm1279, %v2421, 0
      %v2431 = vsel %vm1279, %v2417, 0
      %2433 = vmatpush.msra.mxu0 0.0
      %2434 = vmatpush.msra.mxu0 0.0
      %2435 = vmatpush.msra.mxu0 0.0
      %2436 = vmatpush.msra.mxu0 0.0
      %2437 = vmatpush.msra.mxu0 0.0
      %2438 = vmatpush.msra.mxu0 0.0
      %2439 = vmatpush.msra.mxu0 0.0
      %2440 = vmatpush.msra.mxu0 0.0
      %2441 = vmatpush.msra.mxu0 0.0
      %2442 = vmatpush.msra.mxu0 0.0
      %2443 = vmatpush.msra.mxu0 0.0
      %2444 = vmatpush.msra.mxu0 0.0
      %2445 = vmatpush.msra.mxu0 0.0
      %2446 = vmatpush.msra.mxu0 0.0
      %2447 = vmatpush.msra.mxu0 %v2427
      %2448 = vmatpush.msra.mxu0 %v2418
      %2449 = vmatmul.f32.gmra.mxu0 %v2425
      %v2450 = vpop.f32.mrf.mxu0
      %v2451 = vadd.f32 0.0, %v2450
      %2452 = vdwg.mxu0
      %2453 = vmatpush.msra.mxu0 0.0
      %2454 = vmatpush.msra.mxu0 0.0
      %2455 = vmatpush.msra.mxu0 0.0
      %2456 = vmatpush.msra.mxu0 0.0
      %2457 = vmatpush.msra.mxu0 0.0
      %2458 = vmatpush.msra.mxu0 0.0
      %2459 = vmatpush.msra.mxu0 0.0
      %2460 = vmatpush.msra.mxu0 0.0
      %2461 = vmatpush.msra.mxu0 0.0
      %2462 = vmatpush.msra.mxu0 0.0
      %2463 = vmatpush.msra.mxu0 0.0
      %2464 = vmatpush.msra.mxu0 0.0
      %2465 = vmatpush.msra.mxu0 0.0
      %2466 = vmatpush.msra.mxu0 0.0
      %2467 = vmatpush.msra.mxu0 %v2429
      %2468 = vmatpush.msra.mxu0 %v2419
      %2469 = vmatmul.f32.gmra.mxu0 %v2425
      %v2470 = vpop.f32.mrf.mxu0
      %v2471 = vadd.f32 0.0, %v2470
      %2472 = vdwg.mxu0
      %2473 = vmatpush.msra.mxu0 0.0
      %2474 = vmatpush.msra.mxu0 0.0
      %2475 = vmatpush.msra.mxu0 0.0
      %2476 = vmatpush.msra.mxu0 0.0
      %2477 = vmatpush.msra.mxu0 0.0
      %2478 = vmatpush.msra.mxu0 0.0
      %2479 = vmatpush.msra.mxu0 0.0
      %2480 = vmatpush.msra.mxu0 0.0
      %2481 = vmatpush.msra.mxu0 0.0
      %2482 = vmatpush.msra.mxu0 0.0
      %2483 = vmatpush.msra.mxu0 0.0
      %2484 = vmatpush.msra.mxu0 0.0
      %2485 = vmatpush.msra.mxu0 0.0
      %2486 = vmatpush.msra.mxu0 0.0
      %2487 = vmatpush.msra.mxu0 %v2431
      %2488 = vmatpush.msra.mxu0 %v2411
      %2489 = vmatmul.f32.gmra.mxu0 %v2425
      %v2490 = vpop.f32.mrf.mxu0
      %v2491 = vadd.f32 0.0, %v2490
      %2492 = vdwg.mxu0
      %v2493 = vadd.f32 %v2362, %v2451
      %v2494 = vadd.f32 %v2382, %v2471
      %v2495 = vadd.f32 %v2402, %v2491
      %2496 = vrot.lane.b32.xlu0 %v2240, 92
      %v2497 = vpop.permute.xlu0 %2496
      %2498 = vrot.lane.b32.xlu0 %v2232, 107
      %v2499 = vpop.permute.xlu0 %2498
      %2500 = vrot.lane.b32.xlu0 %v2233, 107
      %v2501 = vpop.permute.xlu0 %2500
      %2502 = vrot.lane.b32.xlu0 %v2234, 107
      %v2503 = vpop.permute.xlu0 %2502
      %2504 = vrot.lane.b32.xlu0 %v2235, 107
      %v2505 = vpop.permute.xlu0 %2504
      %2506 = vrot.lane.b32.xlu0 %v2236, 107
      %v2507 = vpop.permute.xlu0 %2506
      %2508 = vrot.lane.b32.xlu0 %v2237, 107
      %v2509 = vpop.permute.xlu0 %2508
      %v2510 = vsel %vm686, %v2499, %v2501
      %v2511 = vsel %vm686, %v2501, %v2503
      %v2512 = vsel %vm686, %v2505, %v2507
      %v2513 = vsel %vm686, %v2507, %v2509
      %v2517 = vsel %vm1274, %v2497, 0
      %v2519 = vsel %vm1279, %v2512, 0
      %v2521 = vsel %vm1279, %v2513, 0
      %v2523 = vsel %vm1279, %v2509, 0
      %2525 = vmatpush.msra.mxu0 0.0
      %2526 = vmatpush.msra.mxu0 0.0
      %2527 = vmatpush.msra.mxu0 0.0
      %2528 = vmatpush.msra.mxu0 0.0
      %2529 = vmatpush.msra.mxu0 0.0
      %2530 = vmatpush.msra.mxu0 0.0
      %2531 = vmatpush.msra.mxu0 0.0
      %2532 = vmatpush.msra.mxu0 0.0
      %2533 = vmatpush.msra.mxu0 0.0
      %2534 = vmatpush.msra.mxu0 0.0
      %2535 = vmatpush.msra.mxu0 0.0
      %2536 = vmatpush.msra.mxu0 0.0
      %2537 = vmatpush.msra.mxu0 0.0
      %2538 = vmatpush.msra.mxu0 0.0
      %2539 = vmatpush.msra.mxu0 %v2519
      %2540 = vmatpush.msra.mxu0 %v2510
      %2541 = vmatmul.f32.gmra.mxu0 %v2517
      %v2542 = vpop.f32.mrf.mxu0
      %v2543 = vadd.f32 0.0, %v2542
      %2544 = vdwg.mxu0
      %2545 = vmatpush.msra.mxu0 0.0
      %2546 = vmatpush.msra.mxu0 0.0
      %2547 = vmatpush.msra.mxu0 0.0
      %2548 = vmatpush.msra.mxu0 0.0
      %2549 = vmatpush.msra.mxu0 0.0
      %2550 = vmatpush.msra.mxu0 0.0
      %2551 = vmatpush.msra.mxu0 0.0
      %2552 = vmatpush.msra.mxu0 0.0
      %2553 = vmatpush.msra.mxu0 0.0
      %2554 = vmatpush.msra.mxu0 0.0
      %2555 = vmatpush.msra.mxu0 0.0
      %2556 = vmatpush.msra.mxu0 0.0
      %2557 = vmatpush.msra.mxu0 0.0
      %2558 = vmatpush.msra.mxu0 0.0
      %2559 = vmatpush.msra.mxu0 %v2521
      %2560 = vmatpush.msra.mxu0 %v2511
      %2561 = vmatmul.f32.gmra.mxu0 %v2517
      %v2562 = vpop.f32.mrf.mxu0
      %v2563 = vadd.f32 0.0, %v2562
      %2564 = vdwg.mxu0
      %2565 = vmatpush.msra.mxu0 0.0
      %2566 = vmatpush.msra.mxu0 0.0
      %2567 = vmatpush.msra.mxu0 0.0
      %2568 = vmatpush.msra.mxu0 0.0
      %2569 = vmatpush.msra.mxu0 0.0
      %2570 = vmatpush.msra.mxu0 0.0
      %2571 = vmatpush.msra.mxu0 0.0
      %2572 = vmatpush.msra.mxu0 0.0
      %2573 = vmatpush.msra.mxu0 0.0
      %2574 = vmatpush.msra.mxu0 0.0
      %2575 = vmatpush.msra.mxu0 0.0
      %2576 = vmatpush.msra.mxu0 0.0
      %2577 = vmatpush.msra.mxu0 0.0
      %2578 = vmatpush.msra.mxu0 0.0
      %2579 = vmatpush.msra.mxu0 %v2523
      %2580 = vmatpush.msra.mxu0 %v2503
      %2581 = vmatmul.f32.gmra.mxu0 %v2517
      %v2582 = vpop.f32.mrf.mxu0
      %v2583 = vadd.f32 0.0, %v2582
      %2584 = vdwg.mxu0
      %v2585 = vadd.f32 %v2493, %v2543
      %v2586 = vadd.f32 %v2494, %v2563
      %v2587 = vadd.f32 %v2495, %v2583
      %v2588 = vxor.u32 %v2585, 2147483648
      %v2589 = vxor.u32 %v2586, 2147483648
      %v2590 = vxor.u32 %v2587, 2147483648
      %v2591 = vmul.f32 %v2588, 1.442695
      %v2592 = vpow.pop %v2591
      %v2593 = vmul.f32 %v2589, 1.442695
      %v2594 = vpow.pop %v2593
      %v2595 = vmul.f32 %v2590, 1.442695
      %v2596 = vpow.pop %v2595
      %v2597 = vadd.f32 %v2592, 1.0
      %v2598 = vadd.f32 %v2594, 1.0
      %v2599 = vadd.f32 %v2596, 1.0
      %v2600 = vrcp.pop %v2597
      %v2601 = vmul.f32 %v2597, %v2600
      %v2602 = vsub.f32 1.0, %v2601
      %v2603 = vmul.f32 %v2600, %v2602
      %v2604 = vadd.f32 %v2600, %v2603
      %vm2605 = vweird.f32 %v2597
      %vm2606 = vweird.f32 %v2600
      %vm2607 = vmor %vm2605, %vm2606
      %v2608 = vsel %vm2607, %v2600, %v2604
      %v2609 = vand.u32 2147483647, %v2597
      %vm2610 = vcmp.eq.f32.partialorder %v2609, 8.507059e+37
      %v2611 = vand.u32 %v2597, 2147483648
      %v2612 = vor.u32 1.1754944e-38, %v2611
      %v2613 = vsel %vm2610, %v2612, %v2608
      %v2614 = vmul.f32 1.0, %v2613
      %v2615 = vrcp.pop %v2598
      %v2616 = vmul.f32 %v2598, %v2615
      %v2617 = vsub.f32 1.0, %v2616
      %v2618 = vmul.f32 %v2615, %v2617
      %v2619 = vadd.f32 %v2615, %v2618
      %vm2620 = vweird.f32 %v2598
      %vm2621 = vweird.f32 %v2615
      %vm2622 = vmor %vm2620, %vm2621
      %v2623 = vsel %vm2622, %v2615, %v2619
      %v2624 = vand.u32 2147483647, %v2598
      %vm2625 = vcmp.eq.f32.partialorder %v2624, 8.507059e+37
      %v2626 = vand.u32 %v2598, 2147483648
      %v2627 = vor.u32 1.1754944e-38, %v2626
      %v2628 = vsel %vm2625, %v2627, %v2623
      %v2629 = vmul.f32 1.0, %v2628
      %v2630 = vrcp.pop %v2599
      %v2631 = vmul.f32 %v2599, %v2630
      %v2632 = vsub.f32 1.0, %v2631
      %v2633 = vmul.f32 %v2630, %v2632
      %v2634 = vadd.f32 %v2630, %v2633
      %vm2635 = vweird.f32 %v2599
      %vm2636 = vweird.f32 %v2630
      %vm2637 = vmor %vm2635, %vm2636
      %v2638 = vsel %vm2637, %v2630, %v2634
      %v2639 = vand.u32 2147483647, %v2599
      %vm2640 = vcmp.eq.f32.partialorder %v2639, 8.507059e+37
      %v2641 = vand.u32 %v2599, 2147483648
      %v2642 = vor.u32 1.1754944e-38, %v2641
      %v2643 = vsel %vm2640, %v2642, %v2638
      %v2644 = vmul.f32 1.0, %v2643
      %v2648 = vrot.slane %v2629, 7
      %v2649 = vrot.slane %v2644, 6
      %vm2650 = vcmask 1040384
      %v2651 = vsel %vm2650, %v2614, %v2648
      %v2652 = vsel %vm297, %v2651, %v2649
      %v2654 = vlaneseq
      %vm2655 = vcmp.ge.s32.totalorder %v2654, 0
      %vm2656 = vcmp.lt.s32.totalorder %v2654, 295
      %vm2657 = vmand %vm2655, %vm2656
      %2658 = vst.msk [vmem:[%s249] sm:$0x7] %vm2657, %v2652
      %p2659 = scmp.lt.s32.totalorder %s17, 1
      %s2660 = scalar_select %p2659, %s17, 1
      %s2661 = smul.addr %s2660, 3
      %s2662 = scalar_lea.vmem %s6, %s2661
      // Predicated region
      $region45: #{pattern_encode_forward.4} parent=43 // pred_check
        %p2663 = pneg %p166
      $region46: #{pattern_encode_forward.4} parent=43 // pred_check_branch
        %2665 = sbr.rel (%p2663) target = $region48
      $region47: #{pattern_encode_forward.4} parent=43 // pred_region
        _
      $region48: #{pattern_encode_forward.4} parent=43 // pred_fallthru
        _
    $region44: #{pattern_encode_forward.4} parent=5 // pred_fallthru
      _
    %p2666 = scmp.le.s32.totalorder 2, %s12
    // Predicated region
    $region49: #{pattern_encode_forward.4} parent=5 // pred_check
      %p2667 = pneg %p2666
    $region50: #{pattern_encode_forward.4} parent=5 // pred_check_branch
      %2669 = sbr.rel (%p2667) target = $region52
    $region51: #{pattern_encode_forward.4} parent=5 // pred_region
      %s2670 = ssub.s32 %s12, 2
      // Predicated region
      $region53: #{pattern_encode_forward.4} parent=51 // pred_check
        %p2671 = pneg %p172
      $region54: #{pattern_encode_forward.4} parent=51 // pred_check_branch
        %2673 = sbr.rel (%p2671) target = $region56
      $region55: #{pattern_encode_forward.4} parent=51 // pred_region
        %p2674 = scmp.lt.s32.totalorder %s18, 1
        %s2675 = scalar_select %p2674, %s18, 1
        %s2676 = smul.addr %s2675, 3
        %s2677 = scalar_lea.vmem %s6, %s2676
      $region56: #{pattern_encode_forward.4} parent=51 // pred_fallthru
        _
    $region52: #{pattern_encode_forward.4} parent=5 // pred_fallthru
      _
  $region6: #{pattern_encode_forward.4} parent=0 // loop_footer
    %s16 = sadd.s32 1, %s12
  $region7: #{pattern_encode_forward.4} parent=0 // loop_footer_branch
    %11 = sbr.rel target = $region3
  $region8: #{pattern_encode_forward.4} parent=0 // loop_exit
    _

// kernel: pattern_encode_forward.5
$region0: #{pattern_encode_forward.5}
  #allocation0 [shape = 'u32[]', space=smem, size = 0x4, offset = 0x4, fixed_abs, tag = 'smem constant byte address 0x4 - core index']
  #allocation1 [shape = 'u32[72,128]{1,0:T(1,128)}', space=vmem, size = 0x9000, scoped, tag = 'internal scratch']
  %s0 = inlined_call_operand.vmem [shape: f32[2,24,144], index: 0, kind: input, shape index: {}]
  %s1 = inlined_call_operand.vmem [shape: f32[2,1,96], index: 1, kind: input, shape index: {}]
  %s2 = inlined_call_operand.vmem [shape: f32[1,144], index: 2, kind: input, shape index: {}]
  %s3 = inlined_call_operand.vmem [shape: f32[12,24], index: 3, kind: input, shape index: {}]
  %s4 = inlined_call_operand.vmem [shape: f32[12,1], index: 4, kind: input, shape index: {}]
  %s5 = inlined_call_operand.vmem [shape: f32[12,108], index: 5, kind: input, shape index: {}]
  %s6 = inlined_call_operand.vmem [shape: f32[6,108], index: 6, kind: input, shape index: {}]
  %s7 = inlined_call_operand.vmem [shape: f32[12,6], index: 7, kind: input, shape index: {}]
  %s8 = inlined_call_operand.vmem [shape: f32[12,1], index: 8, kind: input, shape index: {}]
  %s9 = inlined_call_operand.vmem [shape: f32[6,12], index: 9, kind: input, shape index: {}]
  %s10 = inlined_call_operand.vmem [shape: f32[2,6,92], index: 10, kind: output, shape index: {}]
  %s11 = sld [smem:[#allocation0]]
  $region73: #{pattern_encode_forward.5} parent=0
    _
  %s13 = ssub.s32 1, %s11
  %s14 = scalar_select 0, %s13, %s11
  loop: start=0, step=1, limit=4
  $region2: #{pattern_encode_forward.5} parent=0 // loop_pre_header
    _
  $region3: #{pattern_encode_forward.5} parent=0 // loop_header
    %s16 = sphi 0, %s20
    %p17 = scmp.ge.s32.totalorder %s16, 4
    %s26 = sphi 0, %s28
    %s29 = sphi 0, %s26
    %s30 = sphi 0, %s29
    %s46 = sphi 0, %s30
    %s52 = sphi 0, %s54
    %s55 = sphi 0, %s52
    %s56 = sphi 0, %s55
    %s72 = sphi 0, %s56
    %s76 = sphi 0, %s76
    %s78 = sphi 0, %s76
    %s79 = sphi 0, %s78
    %s93 = sphi 0, %s79
    %s97 = sphi 0, %s97
    %s99 = sphi 0, %s97
    %s100 = sphi 0, %s99
    %s114 = sphi 0, %s100
    %s118 = sphi 0, %s118
    %s120 = sphi 0, %s118
    %s121 = sphi 0, %s120
    %s135 = sphi 0, %s121
    %s139 = sphi 0, %s139
    %s141 = sphi 0, %s139
    %s142 = sphi 0, %s141
    %s156 = sphi 0, %s142
    %s160 = sphi 0, %s160
    %s162 = sphi 0, %s160
    %s163 = sphi 0, %s162
    %s177 = sphi 0, %s163
    %s181 = sphi 0, %s181
    %s183 = sphi 0, %s181
    %s184 = sphi 0, %s183
    %s198 = sphi 0, %s184
    %s202 = sphi 0, %s202
    %s204 = sphi 0, %s202
    %s205 = sphi 0, %s204
    %s219 = sphi 0, %s205
    %s223 = sphi 0, %s223
    %s225 = sphi 0, %s223
    %s226 = sphi 0, %s225
    %s240 = sphi 0, %s226
    %s246 = sphi 0, %s248
    %s249 = sphi 0, %s246
    %s250 = sphi 0, %s249
    %s266 = sphi 0, %s250
  $region4: #{pattern_encode_forward.5} parent=0 // loop_header_branch
    %19 = sbr.rel (%p17) target = $region8
  $region5: #{pattern_encode_forward.5} parent=0 // loop_body
    %s21 = ssub.s32 %s16, 1
    %s22 = ssub.s32 %s16, 2
    %s23 = sadd.s32 %s16, 1
    %s24 = ssub.s32 %s16, %s23
    %p25 = scmp.eq.s32.totalorder %s24, 0
    %s27 = sadd.s32 %s26, 1
    %s28 = scalar_select %p25, %s26, %s27
    %p31 = pneg %p25
    %p32 = scmp.eq.s32.totalorder %s16, 1
    %p33 = por %p31, %p32
    %p34 = scmp.ne.s32.totalorder %s26, %s29
    %p35 = scmp.eq.s32.totalorder %s16, 0
    %p36 = por %p34, %p35
    %p37 = scmp.ne.s32.totalorder %s26, %s29
    %p38 = scmp.eq.s32.totalorder %s21, 1
    %p39 = por %p37, %p38
    %p40 = scmp.ne.s32.totalorder %s29, %s30
    %p41 = scmp.eq.s32.totalorder %s21, 0
    %p42 = por %p40, %p41
    %p43 = scmp.ne.s32.totalorder %s29, %s30
    %p44 = scmp.eq.s32.totalorder %s22, 1
    %p45 = por %p43, %p44
    %p47 = scmp.ne.s32.totalorder %s30, %s46
    %p48 = scmp.eq.s32.totalorder %s22, 0
    %p49 = por %p47, %p48
    %s50 = ssub.s32 %s16, %s23
    %p51 = scmp.eq.s32.totalorder %s50, 0
    %s53 = sadd.s32 %s52, 1
    %s54 = scalar_select %p51, %s52, %s53
    %p57 = pneg %p51
    %p58 = scmp.eq.s32.totalorder %s16, 1
    %p59 = por %p57, %p58
    %p60 = scmp.ne.s32.totalorder %s52, %s55
    %p61 = scmp.eq.s32.totalorder %s16, 0
    %p62 = por %p60, %p61
    %p63 = scmp.ne.s32.totalorder %s52, %s55
    %p64 = scmp.eq.s32.totalorder %s21, 1
    %p65 = por %p63, %p64
    %p66 = scmp.ne.s32.totalorder %s55, %s56
    %p67 = scmp.eq.s32.totalorder %s21, 0
    %p68 = por %p66, %p67
    %p69 = scmp.ne.s32.totalorder %s55, %s56
    %p70 = scmp.eq.s32.totalorder %s22, 1
    %p71 = por %p69, %p70
    %p73 = scmp.ne.s32.totalorder %s56, %s72
    %p74 = scmp.eq.s32.totalorder %s22, 0
    %p75 = por %p73, %p74
    %s77 = sadd.s32 %s76, 1
    %p80 = scmp.eq.s32.totalorder %s16, 1
    %p81 = scmp.ne.s32.totalorder %s76, %s78
    %p82 = scmp.eq.s32.totalorder %s16, 0
    %p83 = por %p81, %p82
    %p84 = scmp.ne.s32.totalorder %s76, %s78
    %p85 = scmp.eq.s32.totalorder %s21, 1
    %p86 = por %p84, %p85
    %p87 = scmp.ne.s32.totalorder %s78, %s79
    %p88 = scmp.eq.s32.totalorder %s21, 0
    %p89 = por %p87, %p88
    %p90 = scmp.ne.s32.totalorder %s78, %s79
    %p91 = scmp.eq.s32.totalorder %s22, 1
    %p92 = por %p90, %p91
    %p94 = scmp.ne.s32.totalorder %s79, %s93
    %p95 = scmp.eq.s32.totalorder %s22, 0
    %p96 = por %p94, %p95
    %s98 = sadd.s32 %s97, 1
    %p101 = scmp.eq.s32.totalorder %s16, 1
    %p102 = scmp.ne.s32.totalorder %s97, %s99
    %p103 = scmp.eq.s32.totalorder %s16, 0
    %p104 = por %p102, %p103
    %p105 = scmp.ne.s32.totalorder %s97, %s99
    %p106 = scmp.eq.s32.totalorder %s21, 1
    %p107 = por %p105, %p106
    %p108 = scmp.ne.s32.totalorder %s99, %s100
    %p109 = scmp.eq.s32.totalorder %s21, 0
    %p110 = por %p108, %p109
    %p111 = scmp.ne.s32.totalorder %s99, %s100
    %p112 = scmp.eq.s32.totalorder %s22, 1
    %p113 = por %p111, %p112
    %p115 = scmp.ne.s32.totalorder %s100, %s114
    %p116 = scmp.eq.s32.totalorder %s22, 0
    %p117 = por %p115, %p116
    %s119 = sadd.s32 %s118, 1
    %p122 = scmp.eq.s32.totalorder %s16, 1
    %p123 = scmp.ne.s32.totalorder %s118, %s120
    %p124 = scmp.eq.s32.totalorder %s16, 0
    %p125 = por %p123, %p124
    %p126 = scmp.ne.s32.totalorder %s118, %s120
    %p127 = scmp.eq.s32.totalorder %s21, 1
    %p128 = por %p126, %p127
    %p129 = scmp.ne.s32.totalorder %s120, %s121
    %p130 = scmp.eq.s32.totalorder %s21, 0
    %p131 = por %p129, %p130
    %p132 = scmp.ne.s32.totalorder %s120, %s121
    %p133 = scmp.eq.s32.totalorder %s22, 1
    %p134 = por %p132, %p133
    %p136 = scmp.ne.s32.totalorder %s121, %s135
    %p137 = scmp.eq.s32.totalorder %s22, 0
    %p138 = por %p136, %p137
    %s140 = sadd.s32 %s139, 1
    %p143 = scmp.eq.s32.totalorder %s16, 1
    %p144 = scmp.ne.s32.totalorder %s139, %s141
    %p145 = scmp.eq.s32.totalorder %s16, 0
    %p146 = por %p144, %p145
    %p147 = scmp.ne.s32.totalorder %s139, %s141
    %p148 = scmp.eq.s32.totalorder %s21, 1
    %p149 = por %p147, %p148
    %p150 = scmp.ne.s32.totalorder %s141, %s142
    %p151 = scmp.eq.s32.totalorder %s21, 0
    %p152 = por %p150, %p151
    %p153 = scmp.ne.s32.totalorder %s141, %s142
    %p154 = scmp.eq.s32.totalorder %s22, 1
    %p155 = por %p153, %p154
    %p157 = scmp.ne.s32.totalorder %s142, %s156
    %p158 = scmp.eq.s32.totalorder %s22, 0
    %p159 = por %p157, %p158
    %s161 = sadd.s32 %s160, 1
    %p164 = scmp.eq.s32.totalorder %s16, 1
    %p165 = scmp.ne.s32.totalorder %s160, %s162
    %p166 = scmp.eq.s32.totalorder %s16, 0
    %p167 = por %p165, %p166
    %p168 = scmp.ne.s32.totalorder %s160, %s162
    %p169 = scmp.eq.s32.totalorder %s21, 1
    %p170 = por %p168, %p169
    %p171 = scmp.ne.s32.totalorder %s162, %s163
    %p172 = scmp.eq.s32.totalorder %s21, 0
    %p173 = por %p171, %p172
    %p174 = scmp.ne.s32.totalorder %s162, %s163
    %p175 = scmp.eq.s32.totalorder %s22, 1
    %p176 = por %p174, %p175
    %p178 = scmp.ne.s32.totalorder %s163, %s177
    %p179 = scmp.eq.s32.totalorder %s22, 0
    %p180 = por %p178, %p179
    %s182 = sadd.s32 %s181, 1
    %p185 = scmp.eq.s32.totalorder %s16, 1
    %p186 = scmp.ne.s32.totalorder %s181, %s183
    %p187 = scmp.eq.s32.totalorder %s16, 0
    %p188 = por %p186, %p187
    %p189 = scmp.ne.s32.totalorder %s181, %s183
    %p190 = scmp.eq.s32.totalorder %s21, 1
    %p191 = por %p189, %p190
    %p192 = scmp.ne.s32.totalorder %s183, %s184
    %p193 = scmp.eq.s32.totalorder %s21, 0
    %p194 = por %p192, %p193
    %p195 = scmp.ne.s32.totalorder %s183, %s184
    %p196 = scmp.eq.s32.totalorder %s22, 1
    %p197 = por %p195, %p196
    %p199 = scmp.ne.s32.totalorder %s184, %s198
    %p200 = scmp.eq.s32.totalorder %s22, 0
    %p201 = por %p199, %p200
    %s203 = sadd.s32 %s202, 1
    %p206 = scmp.eq.s32.totalorder %s16, 1
    %p207 = scmp.ne.s32.totalorder %s202, %s204
    %p208 = scmp.eq.s32.totalorder %s16, 0
    %p209 = por %p207, %p208
    %p210 = scmp.ne.s32.totalorder %s202, %s204
    %p211 = scmp.eq.s32.totalorder %s21, 1
    %p212 = por %p210, %p211
    %p213 = scmp.ne.s32.totalorder %s204, %s205
    %p214 = scmp.eq.s32.totalorder %s21, 0
    %p215 = por %p213, %p214
    %p216 = scmp.ne.s32.totalorder %s204, %s205
    %p217 = scmp.eq.s32.totalorder %s22, 1
    %p218 = por %p216, %p217
    %p220 = scmp.ne.s32.totalorder %s205, %s219
    %p221 = scmp.eq.s32.totalorder %s22, 0
    %p222 = por %p220, %p221
    %s224 = sadd.s32 %s223, 1
    %p227 = scmp.eq.s32.totalorder %s16, 1
    %p228 = scmp.ne.s32.totalorder %s223, %s225
    %p229 = scmp.eq.s32.totalorder %s16, 0
    %p230 = por %p228, %p229
    %p231 = scmp.ne.s32.totalorder %s223, %s225
    %p232 = scmp.eq.s32.totalorder %s21, 1
    %p233 = por %p231, %p232
    %p234 = scmp.ne.s32.totalorder %s225, %s226
    %p235 = scmp.eq.s32.totalorder %s21, 0
    %p236 = por %p234, %p235
    %p237 = scmp.ne.s32.totalorder %s225, %s226
    %p238 = scmp.eq.s32.totalorder %s22, 1
    %p239 = por %p237, %p238
    %p241 = scmp.ne.s32.totalorder %s226, %s240
    %p242 = scmp.eq.s32.totalorder %s22, 0
    %p243 = por %p241, %p242
    %s244 = ssub.s32 %s16, %s23
    %p245 = scmp.eq.s32.totalorder %s244, 0
    %s247 = sadd.s32 %s246, 1
    %s248 = scalar_select %p245, %s246, %s247
    %p251 = pneg %p245
    %p252 = scmp.eq.s32.totalorder %s16, 1
    %p253 = por %p251, %p252
    %p254 = scmp.ne.s32.totalorder %s246, %s249
    %p255 = scmp.eq.s32.totalorder %s16, 0
    %p256 = por %p254, %p255
    %p257 = scmp.ne.s32.totalorder %s246, %s249
    %p258 = scmp.eq.s32.totalorder %s21, 1
    %p259 = por %p257, %p258
    %p260 = scmp.ne.s32.totalorder %s249, %s250
    %p261 = scmp.eq.s32.totalorder %s21, 0
    %p262 = por %p260, %p261
    %p263 = scmp.ne.s32.totalorder %s249, %s250
    %p264 = scmp.eq.s32.totalorder %s22, 1
    %p265 = por %p263, %p264
    %p267 = scmp.ne.s32.totalorder %s250, %s266
    %p268 = scmp.eq.s32.totalorder %s22, 0
    %p269 = por %p267, %p268
    %p270 = scmp.le.s32.totalorder 1, %s16
    %p271 = scmp.lt.s32.totalorder %s16, 3
    %p272 = pnand %p270, %p271
    %p273 = pneg %p272
    // Predicated region
    $region9: #{pattern_encode_forward.5} parent=5 // pred_check
      _
    $region10: #{pattern_encode_forward.5} parent=5 // pred_check_branch
      %275 = sbr.rel (%p272) target = $region12
    $region11: #{pattern_encode_forward.5} parent=5 // pred_region
      %s276 = ssub.s32 %s16, 1
      // Predicated region
      $region13: #{pattern_encode_forward.5} parent=11 // pred_check
        %p277 = pneg %p89
      $region14: #{pattern_encode_forward.5} parent=11 // pred_check_branch
        %279 = sbr.rel (%p277) target = $region16
      $region15: #{pattern_encode_forward.5} parent=11 // pred_region
        _
      $region16: #{pattern_encode_forward.5} parent=11 // pred_fallthru
        _
      // Predicated region
      $region17: #{pattern_encode_forward.5} parent=11 // pred_check
        %p280 = pneg %p110
      $region18: #{pattern_encode_forward.5} parent=11 // pred_check_branch
        %282 = sbr.rel (%p280) target = $region20
      $region19: #{pattern_encode_forward.5} parent=11 // pred_region
        _
      $region20: #{pattern_encode_forward.5} parent=11 // pred_fallthru
        _
      // Predicated region
      $region21: #{pattern_encode_forward.5} parent=11 // pred_check
        %p283 = pneg %p131
      $region22: #{pattern_encode_forward.5} parent=11 // pred_check_branch
        %285 = sbr.rel (%p283) target = $region24
      $region23: #{pattern_encode_forward.5} parent=11 // pred_region
        _
      $region24: #{pattern_encode_forward.5} parent=11 // pred_fallthru
        _
      // Predicated region
      $region25: #{pattern_encode_forward.5} parent=11 // pred_check
        %p286 = pneg %p152
      $region26: #{pattern_encode_forward.5} parent=11 // pred_check_branch
        %288 = sbr.rel (%p286) target = $region28
      $region27: #{pattern_encode_forward.5} parent=11 // pred_region
        _
      $region28: #{pattern_encode_forward.5} parent=11 // pred_fallthru
        _
      // Predicated region
      $region29: #{pattern_encode_forward.5} parent=11 // pred_check
        %p289 = pneg %p173
      $region30: #{pattern_encode_forward.5} parent=11 // pred_check_branch
        %291 = sbr.rel (%p289) target = $region32
      $region31: #{pattern_encode_forward.5} parent=11 // pred_region
        _
      $region32: #{pattern_encode_forward.5} parent=11 // pred_fallthru
        _
      // Predicated region
      $region33: #{pattern_encode_forward.5} parent=11 // pred_check
        %p292 = pneg %p194
      $region34: #{pattern_encode_forward.5} parent=11 // pred_check_branch
        %294 = sbr.rel (%p292) target = $region36
      $region35: #{pattern_encode_forward.5} parent=11 // pred_region
        _
      $region36: #{pattern_encode_forward.5} parent=11 // pred_fallthru
        _
      // Predicated region
      $region37: #{pattern_encode_forward.5} parent=11 // pred_check
        %p295 = pneg %p215
      $region38: #{pattern_encode_forward.5} parent=11 // pred_check_branch
        %297 = sbr.rel (%p295) target = $region40
      $region39: #{pattern_encode_forward.5} parent=11 // pred_region
        _
      $region40: #{pattern_encode_forward.5} parent=11 // pred_fallthru
        _
      // Predicated region
      $region41: #{pattern_encode_forward.5} parent=11 // pred_check
        %p298 = pneg %p236
      $region42: #{pattern_encode_forward.5} parent=11 // pred_check_branch
        %300 = sbr.rel (%p298) target = $region44
      $region43: #{pattern_encode_forward.5} parent=11 // pred_region
        _
      $region44: #{pattern_encode_forward.5} parent=11 // pred_fallthru
        _
    $region12: #{pattern_encode_forward.5} parent=5 // pred_fallthru
      _
    %p301 = scmp.lt.s32.totalorder %s16, 2
    // Predicated region
    $region45: #{pattern_encode_forward.5} parent=5 // pred_check
      %p302 = pneg %p301
    $region46: #{pattern_encode_forward.5} parent=5 // pred_check_branch
      %304 = sbr.rel (%p302) target = $region48
    $region47: #{pattern_encode_forward.5} parent=5 // pred_region
      // Predicated region
      $region49: #{pattern_encode_forward.5} parent=47 // pred_check
        %p305 = pneg %p36
      $region50: #{pattern_encode_forward.5} parent=47 // pred_check_branch
        %307 = sbr.rel (%p305) target = $region52
      $region51: #{pattern_encode_forward.5} parent=47 // pred_region
        %p308 = scmp.lt.s32.totalorder %s16, 1
        %s309 = scalar_select %p308, %s16, 1
        %s310 = smul.addr %s309, 6
        %s311 = smul.addr %s310, 8
        %s312 = scalar_lea.vmem %s0, %s311
      $region52: #{pattern_encode_forward.5} parent=47 // pred_fallthru
        _
      // Predicated region
      $region53: #{pattern_encode_forward.5} parent=47 // pred_check
        %p313 = pneg %p62
      $region54: #{pattern_encode_forward.5} parent=47 // pred_check_branch
        %315 = sbr.rel (%p313) target = $region56
      $region55: #{pattern_encode_forward.5} parent=47 // pred_region
        %p316 = scmp.lt.s32.totalorder %s16, 1
        %s317 = scalar_select %p316, %s16, 1
        %s318 = scalar_lea.vmem %s1, %s317
      $region56: #{pattern_encode_forward.5} parent=47 // pred_fallthru
        _
    $region48: #{pattern_encode_forward.5} parent=5 // pred_fallthru
      _
    %p319 = scmp.le.s32.totalorder 1, %s16
    %p320 = scmp.lt.s32.totalorder %s16, 3
    %p321 = pnand %p319, %p320
    %p322 = pneg %p321
    // Predicated region
    $region57: #{pattern_encode_forward.5} parent=5 // pred_check
      _
    $region58: #{pattern_encode_forward.5} parent=5 // pred_check_branch
      %324 = sbr.rel (%p321) target = $region60
    $region59: #{pattern_encode_forward.5} parent=5 // pred_region
      %s325 = ssub.s32 %s16, 1
      %p326 = scmp.lt.s32.totalorder %s21, 1
      %s327 = scalar_select %p326, %s21, 1
      %s328 = smul.addr %s327, 6
      %s329 = smul.addr %s328, 8
      %s330 = scalar_lea.vmem %s0, %s329
      %p331 = pneg %p42
      %p332 = pneg %p39
      %p333 = scmp.lt.s32.totalorder %s21, 1
      %s334 = scalar_select %p333, %s21, 1
      %s335 = scalar_lea.vmem %s1, %s334
      %p336 = pneg %p68
      %p337 = pneg %p65
      %p338 = pneg %p89
      %p339 = pneg %p86
      %p340 = pneg %p110
      %p341 = pneg %p107
      %p342 = pneg %p131
      %p343 = pneg %p128
      %p344 = pneg %p152
      %p345 = pneg %p149
      %p346 = pneg %p173
      %p347 = pneg %p170
      %p348 = pneg %p194
      %p349 = pneg %p191
      %p350 = pneg %p215
      %p351 = pneg %p212
      %p352 = pneg %p236
      %p353 = pneg %p233
      %p354 = pneg %p262
      %p355 = pneg %p259
      %p356 = scmp.lt.s32.totalorder %s21, 1
      %s357 = scalar_select %p356, %s21, 1
      %s358 = smul.addr %s357, 8
      %s359 = scalar_lea.vmem %s10, %s358
      %p360 = scmp.lt.s32.totalorder %s21, 1
      %s361 = scalar_select %p360, %s21, 1
      %s362 = smul.addr %s361, 6
      %s363 = smul.addr %s362, 8
      %s364 = scalar_lea.vmem %s0, %s363
      %p365 = scmp.lt.s32.totalorder %s21, 1
      %s366 = scalar_select %p365, %s21, 1
      %s367 = scalar_lea.vmem %s1, %s366
      %p368 = scmp.lt.s32.totalorder %s21, 1
      %s369 = scalar_select %p368, %s21, 1
      %s370 = smul.addr %s369, 8
      %s371 = scalar_lea.vmem %s10, %s370
      %v372 = vld [vmem:[%s364] sm:$0xff]
      %v373 = vld [vmem:[%s364 + $0x8] sm:$0xff]
      %v374 = vld [vmem:[%s364 + $0x10] sm:$0xff]
      %v375 = vld [vmem:[%s364 + $0x18] sm:$0xff]
      %v376 = vld [vmem:[%s364 + $0x20] sm:$0xff]
      %v377 = vld [vmem:[%s364 + $0x28] sm:$0xff]
      %v378 = vld [vmem:[%s3] sm:$0xff]
      %v379 = vld [vmem:[%s3 + $0x8] sm:$0xf]
      %v380 = vld [vmem:[%s4] sm:$0xff]
      %v381 = vld [vmem:[%s4 + $0x8] sm:$0xf]
      %383 = vset.pattern.permute.xlu0 0
      %384 = vperm.xlu0 %383, %v380
      %v385 = vpop.permute.xlu0 %384
      %388 = vset.pattern.permute.xlu0 0
      %389 = vperm.xlu0 %388, %v381
      %v390 = vpop.permute.xlu0 %389
      %vm392 = vcmask 195584
      %v394 = vsel %vm392, %v378, 0
      %v397 = vsel %vm392, %v379, 0
      %399 = vmatpush.msra.mxu0 0.0
      %400 = vmatpush.msra.mxu0 0.0
      %401 = vmatpush.msra.mxu0 0.0
      %402 = vmatpush.msra.mxu0 0.0
      %403 = vmatpush.msra.mxu0 0.0
      %404 = vmatpush.msra.mxu0 0.0
      %405 = vmatpush.msra.mxu0 0.0
      %406 = vmatpush.msra.mxu0 0.0
      %407 = vmatpush.msra.mxu0 0.0
      %408 = vmatpush.msra.mxu0 0.0
      %409 = vmatpush.msra.mxu0 0.0
      %410 = vmatpush.msra.mxu0 0.0
      %411 = vmatpush.msra.mxu0 0.0
      %412 = vmatpush.msra.mxu0 %v376
      %413 = vmatpush.msra.mxu0 %v374
      %414 = vmatpush.msra.mxu0 %v372
      %415 = vmatmul.f32.gmra.mxu0 %v394
      %v416 = vpop.f32.mrf.mxu0
      %v417 = vadd.f32 %v385, %v416
      %418 = vmatmul.f32.gmra.mxu0 %v397
      %v419 = vpop.f32.mrf.mxu0
      %v420 = vadd.f32 %v390, %v419
      %421 = vdwg.mxu0
      %422 = vmatpush.msra.mxu0 0.0
      %423 = vmatpush.msra.mxu0 0.0
      %424 = vmatpush.msra.mxu0 0.0
      %425 = vmatpush.msra.mxu0 0.0
      %426 = vmatpush.msra.mxu0 0.0
      %427 = vmatpush.msra.mxu0 0.0
      %428 = vmatpush.msra.mxu0 0.0
      %429 = vmatpush.msra.mxu0 0.0
      %430 = vmatpush.msra.mxu0 0.0
      %431 = vmatpush.msra.mxu0 0.0
      %432 = vmatpush.msra.mxu0 0.0
      %433 = vmatpush.msra.mxu0 0.0
      %434 = vmatpush.msra.mxu0 0.0
      %435 = vmatpush.msra.mxu0 %v377
      %436 = vmatpush.msra.mxu0 %v375
      %437 = vmatpush.msra.mxu0 %v373
      %438 = vmatmul.f32.gmra.mxu0 %v394
      %v439 = vpop.f32.mrf.mxu0
      %v440 = vadd.f32 %v385, %v439
      %441 = vmatmul.f32.gmra.mxu0 %v397
      %v442 = vpop.f32.mrf.mxu0
      %v443 = vadd.f32 %v390, %v442
      %444 = vdwg.mxu0
      %v445 = vtanh.pop %v417
      %v446 = vtanh.pop %v440
      %v447 = vtanh.pop %v420
      %v448 = vtanh.pop %v443
      %v449 = vld [vmem:[%s2] sm:$0x3]
      %v451 = vperm.slane %v449, 0
      %v452 = vperm.slane %v449, 1
      %v455 = vmul.f32 %v445, %v451
      %v456 = vmul.f32 %v446, %v452
      %v457 = vmul.f32 %v447, %v451
      %v458 = vmul.f32 %v448, %v452
      %v459 = vld [vmem:[%s5] sm:$0xff]
      %v460 = vld [vmem:[%s5 + $0x8] sm:$0xf]
      %463 = vrot.lane.b32.xlu0 %v459, 116
      %v464 = vpop.permute.xlu0 %463
      %465 = vrot.lane.b32.xlu0 %v460, 116
      %v466 = vpop.permute.xlu0 %465
      %469 = vrot.lane.b32.xlu0 %v455, 127
      %v470 = vpop.permute.xlu0 %469
      %471 = vrot.lane.b32.xlu0 %v457, 127
      %v472 = vpop.permute.xlu0 %471
      %vm474 = vcmask 97280
      %v475 = vsel %vm474, %v464, 0
      %v477 = vsel %vm474, %v466, 0
      %vm479 = vcmask 1043456
      %v480 = vsel %vm479, %v472, 0
      %482 = vmatpush.msra.mxu0 0.0
      %483 = vmatpush.msra.mxu0 0.0
      %484 = vmatpush.msra.mxu0 0.0
      %485 = vmatpush.msra.mxu0 0.0
      %486 = vmatpush.msra.mxu0 0.0
      %487 = vmatpush.msra.mxu0 0.0
      %488 = vmatpush.msra.mxu0 0.0
      %489 = vmatpush.msra.mxu0 0.0
      %490 = vmatpush.msra.mxu0 0.0
      %491 = vmatpush.msra.mxu0 0.0
      %492 = vmatpush.msra.mxu0 0.0
      %493 = vmatpush.msra.mxu0 0.0
      %494 = vmatpush.msra.mxu0 0.0
      %495 = vmatpush.msra.mxu0 0.0
      %496 = vmatpush.msra.mxu0 %v480
      %497 = vmatpush.msra.mxu0 %v470
      %498 = vmatmul.f32.gmra.mxu0 %v475
      %v499 = vpop.f32.mrf.mxu0
      %v500 = vadd.f32 0.0, %v499
      %501 = vmatmul.f32.gmra.mxu0 %v477
      %v502 = vpop.f32.mrf.mxu0
      %v503 = vadd.f32 0.0, %v502
      %504 = vdwg.mxu0
      %v505 = vsel %vm474, %v459, 0
      %v507 = vsel %vm474, %v460, 0
      %v509 = vsel %vm479, %v457, 0
      %511 = vmatpush.msra.mxu0 0.0
      %512 = vmatpush.msra.mxu0 0.0
      %513 = vmatpush.msra.mxu0 0.0
      %514 = vmatpush.msra.mxu0 0.0
      %515 = vmatpush.msra.mxu0 0.0
      %516 = vmatpush.msra.mxu0 0.0
      %517 = vmatpush.msra.mxu0 0.0
      %518 = vmatpush.msra.mxu0 0.0
      %519 = vmatpush.msra.mxu0 0.0
      %520 = vmatpush.msra.mxu0 0.0
      %521 = vmatpush.msra.mxu0 0.0
      %522 = vmatpush.msra.mxu0 0.0
      %523 = vmatpush.msra.mxu0 0.0
      %524 = vmatpush.msra.mxu0 0.0
      %525 = vmatpush.msra.mxu0 %v509
      %526 = vmatpush.msra.mxu0 %v455
      %527 = vmatmul.f32.gmra.mxu0 %v505
      %v528 = vpop.f32.mrf.mxu0
      %v529 = vadd.f32 %v500, %v528
      %530 = vmatmul.f32.gmra.mxu0 %v507
      %v531 = vpop.f32.mrf.mxu0
      %v532 = vadd.f32 %v503, %v531
      %533 = vdwg.mxu0
      %534 = vrot.lane.b32.xlu0 %v459, 104
      %v535 = vpop.permute.xlu0 %534
      %536 = vrot.lane.b32.xlu0 %v460, 104
      %v537 = vpop.permute.xlu0 %536
      %538 = vrot.lane.b32.xlu0 %v455, 126
      %v539 = vpop.permute.xlu0 %538
      %540 = vrot.lane.b32.xlu0 %v457, 126
      %v541 = vpop.permute.xlu0 %540
      %v543 = vsel %vm474, %v535, 0
      %v545 = vsel %vm474, %v537, 0
      %v547 = vsel %vm479, %v541, 0
      %549 = vmatpush.msra.mxu0 0.0
      %550 = vmatpush.msra.mxu0 0.0
      %551 = vmatpush.msra.mxu0 0.0
      %552 = vmatpush.msra.mxu0 0.0
      %553 = vmatpush.msra.mxu0 0.0
      %554 = vmatpush.msra.mxu0 0.0
      %555 = vmatpush.msra.mxu0 0.0
      %556 = vmatpush.msra.mxu0 0.0
      %557 = vmatpush.msra.mxu0 0.0
      %558 = vmatpush.msra.mxu0 0.0
      %559 = vmatpush.msra.mxu0 0.0
      %560 = vmatpush.msra.mxu0 0.0
      %561 = vmatpush.msra.mxu0 0.0
      %562 = vmatpush.msra.mxu0 0.0
      %563 = vmatpush.msra.mxu0 %v547
      %564 = vmatpush.msra.mxu0 %v539
      %565 = vmatmul.f32.gmra.mxu0 %v543
      %v566 = vpop.f32.mrf.mxu0
      %v567 = vadd.f32 0.0, %v566
      %568 = vmatmul.f32.gmra.mxu0 %v545
      %v569 = vpop.f32.mrf.mxu0
      %v570 = vadd.f32 0.0, %v569
      %571 = vdwg.mxu0
      %v572 = vadd.f32 %v529, %v567
      %v573 = vadd.f32 %v532, %v570
      %574 = vrot.lane.b32.xlu0 %v459, 92
      %v575 = vpop.permute.xlu0 %574
      %576 = vrot.lane.b32.xlu0 %v460, 92
      %v577 = vpop.permute.xlu0 %576
      %580 = vrot.lane.b32.xlu0 %v455, 116
      %v581 = vpop.permute.xlu0 %580
      %582 = vrot.lane.b32.xlu0 %v456, 116
      %v583 = vpop.permute.xlu0 %582
      %584 = vrot.lane.b32.xlu0 %v457, 116
      %v585 = vpop.permute.xlu0 %584
      %586 = vrot.lane.b32.xlu0 %v458, 116
      %v587 = vpop.permute.xlu0 %586
      %vm588 = vcmask 949248
      %v589 = vsel %vm588, %v581, %v583
      %v590 = vsel %vm588, %v585, %v587
      %v592 = vsel %vm474, %v575, 0
      %v594 = vsel %vm474, %v577, 0
      %v596 = vsel %vm479, %v590, 0
      %598 = vmatpush.msra.mxu0 0.0
      %599 = vmatpush.msra.mxu0 0.0
      %600 = vmatpush.msra.mxu0 0.0
      %601 = vmatpush.msra.mxu0 0.0
      %602 = vmatpush.msra.mxu0 0.0
      %603 = vmatpush.msra.mxu0 0.0
      %604 = vmatpush.msra.mxu0 0.0
      %605 = vmatpush.msra.mxu0 0.0
      %606 = vmatpush.msra.mxu0 0.0
      %607 = vmatpush.msra.mxu0 0.0
      %608 = vmatpush.msra.mxu0 0.0
      %609 = vmatpush.msra.mxu0 0.0
      %610 = vmatpush.msra.mxu0 0.0
      %611 = vmatpush.msra.mxu0 0.0
      %612 = vmatpush.msra.mxu0 %v596
      %613 = vmatpush.msra.mxu0 %v589
      %614 = vmatmul.f32.gmra.mxu0 %v592
      %v615 = vpop.f32.mrf.mxu0
      %v616 = vadd.f32 0.0, %v615
      %617 = vmatmul.f32.gmra.mxu0 %v594
      %v618 = vpop.f32.mrf.mxu0
      %v619 = vadd.f32 0.0, %v618
      %620 = vdwg.mxu0
      %v621 = vadd.f32 %v572, %v616
      %v622 = vadd.f32 %v573, %v619
      %623 = vrot.lane.b32.xlu0 %v459, 80
      %v624 = vpop.permute.xlu0 %623
      %625 = vrot.lane.b32.xlu0 %v460, 80
      %v626 = vpop.permute.xlu0 %625
      %627 = vrot.lane.b32.xlu0 %v455, 115
      %v628 = vpop.permute.xlu0 %627
      %629 = vrot.lane.b32.xlu0 %v456, 115
      %v630 = vpop.permute.xlu0 %629
      %631 = vrot.lane.b32.xlu0 %v457, 115
      %v632 = vpop.permute.xlu0 %631
      %633 = vrot.lane.b32.xlu0 %v458, 115
      %v634 = vpop.permute.xlu0 %633
      %vm635 = vcmask 941056
      %v636 = vsel %vm635, %v628, %v630
      %v637 = vsel %vm635, %v632, %v634
      %v639 = vsel %vm474, %v624, 0
      %v641 = vsel %vm474, %v626, 0
      %v643 = vsel %vm479, %v637, 0
      %645 = vmatpush.msra.mxu0 0.0
      %646 = vmatpush.msra.mxu0 0.0
      %647 = vmatpush.msra.mxu0 0.0
      %648 = vmatpush.msra.mxu0 0.0
      %649 = vmatpush.msra.mxu0 0.0
      %650 = vmatpush.msra.mxu0 0.0
      %651 = vmatpush.msra.mxu0 0.0
      %652 = vmatpush.msra.mxu0 0.0
      %653 = vmatpush.msra.mxu0 0.0
      %654 = vmatpush.msra.mxu0 0.0
      %655 = vmatpush.msra.mxu0 0.0
      %656 = vmatpush.msra.mxu0 0.0
      %657 = vmatpush.msra.mxu0 0.0
      %658 = vmatpush.msra.mxu0 0.0
      %659 = vmatpush.msra.mxu0 %v643
      %660 = vmatpush.msra.mxu0 %v636
      %661 = vmatmul.f32.gmra.mxu0 %v639
      %v662 = vpop.f32.mrf.mxu0
      %v663 = vadd.f32 0.0, %v662
      %664 = vmatmul.f32.gmra.mxu0 %v641
      %v665 = vpop.f32.mrf.mxu0
      %v666 = vadd.f32 0.0, %v665
      %667 = vdwg.mxu0
      %v668 = vadd.f32 %v621, %v663
      %v669 = vadd.f32 %v622, %v666
      %670 = vrot.lane.b32.xlu0 %v459, 68
      %v671 = vpop.permute.xlu0 %670
      %672 = vrot.lane.b32.xlu0 %v460, 68
      %v673 = vpop.permute.xlu0 %672
      %674 = vrot.lane.b32.xlu0 %v455, 114
      %v675 = vpop.permute.xlu0 %674
      %676 = vrot.lane.b32.xlu0 %v456, 114
      %v677 = vpop.permute.xlu0 %676
      %678 = vrot.lane.b32.xlu0 %v457, 114
      %v679 = vpop.permute.xlu0 %678
      %680 = vrot.lane.b32.xlu0 %v458, 114
      %v681 = vpop.permute.xlu0 %680
      %vm682 = vcmask 932864
      %v683 = vsel %vm682, %v675, %v677
      %v684 = vsel %vm682, %v679, %v681
      %v686 = vsel %vm474, %v671, 0
      %v688 = vsel %vm474, %v673, 0
      %v690 = vsel %vm479, %v684, 0
      %692 = vmatpush.msra.mxu0 0.0
      %693 = vmatpush.msra.mxu0 0.0
      %694 = vmatpush.msra.mxu0 0.0
      %695 = vmatpush.msra.mxu0 0.0
      %696 = vmatpush.msra.mxu0 0.0
      %697 = vmatpush.msra.mxu0 0.0
      %698 = vmatpush.msra.mxu0 0.0
      %699 = vmatpush.msra.mxu0 0.0
      %700 = vmatpush.msra.mxu0 0.0
      %701 = vmatpush.msra.mxu0 0.0
      %702 = vmatpush.msra.mxu0 0.0
      %703 = vmatpush.msra.mxu0 0.0
      %704 = vmatpush.msra.mxu0 0.0
      %705 = vmatpush.msra.mxu0 0.0
      %706 = vmatpush.msra.mxu0 %v690
      %707 = vmatpush.msra.mxu0 %v683
      %708 = vmatmul.f32.gmra.mxu0 %v686
      %v709 = vpop.f32.mrf.mxu0
      %v710 = vadd.f32 0.0, %v709
      %711 = vmatmul.f32.gmra.mxu0 %v688
      %v712 = vpop.f32.mrf.mxu0
      %v713 = vadd.f32 0.0, %v712
      %714 = vdwg.mxu0
      %v715 = vadd.f32 %v668, %v710
      %v716 = vadd.f32 %v669, %v713
      %717 = vrot.lane.b32.xlu0 %v459, 56
      %v718 = vpop.permute.xlu0 %717
      %719 = vrot.lane.b32.xlu0 %v460, 56
      %v720 = vpop.permute.xlu0 %719
      %721 = vrot.lane.b32.xlu0 %v455, 104
      %v722 = vpop.permute.xlu0 %721
      %723 = vrot.lane.b32.xlu0 %v456, 104
      %v724 = vpop.permute.xlu0 %723
      %725 = vrot.lane.b32.xlu0 %v457, 104
      %v726 = vpop.permute.xlu0 %725
      %727 = vrot.lane.b32.xlu0 %v458, 104
      %v728 = vpop.permute.xlu0 %727
      %vm729 = vcmask 850944
      %v730 = vsel %vm729, %v722, %v724
      %v731 = vsel %vm729, %v726, %v728
      %v733 = vsel %vm474, %v718, 0
      %v735 = vsel %vm474, %v720, 0
      %v737 = vsel %vm479, %v731, 0
      %739 = vmatpush.msra.mxu0 0.0
      %740 = vmatpush.msra.mxu0 0.0
      %741 = vmatpush.msra.mxu0 0.0
      %742 = vmatpush.msra.mxu0 0.0
      %743 = vmatpush.msra.mxu0 0.0
      %744 = vmatpush.msra.mxu0 0.0
      %745 = vmatpush.msra.mxu0 0.0
      %746 = vmatpush.msra.mxu0 0.0
      %747 = vmatpush.msra.mxu0 0.0
      %748 = vmatpush.msra.mxu0 0.0
      %749 = vmatpush.msra.mxu0 0.0
      %750 = vmatpush.msra.mxu0 0.0
      %751 = vmatpush.msra.mxu0 0.0
      %752 = vmatpush.msra.mxu0 0.0
      %753 = vmatpush.msra.mxu0 %v737
      %754 = vmatpush.msra.mxu0 %v730
      %755 = vmatmul.f32.gmra.mxu0 %v733
      %v756 = vpop.f32.mrf.mxu0
      %v757 = vadd.f32 0.0, %v756
      %758 = vmatmul.f32.gmra.mxu0 %v735
      %v759 = vpop.f32.mrf.mxu0
      %v760 = vadd.f32 0.0, %v759
      %761 = vdwg.mxu0
      %v762 = vadd.f32 %v715, %v757
      %v763 = vadd.f32 %v716, %v760
      %764 = vrot.lane.b32.xlu0 %v459, 44
      %v765 = vpop.permute.xlu0 %764
      %766 = vrot.lane.b32.xlu0 %v460, 44
      %v767 = vpop.permute.xlu0 %766
      %768 = vrot.lane.b32.xlu0 %v455, 103
      %v769 = vpop.permute.xlu0 %768
      %770 = vrot.lane.b32.xlu0 %v456, 103
      %v771 = vpop.permute.xlu0 %770
      %772 = vrot.lane.b32.xlu0 %v457, 103
      %v773 = vpop.permute.xlu0 %772
      %774 = vrot.lane.b32.xlu0 %v458, 103
      %v775 = vpop.permute.xlu0 %774
      %vm776 = vcmask 842752
      %v777 = vsel %vm776, %v769, %v771
      %v778 = vsel %vm776, %v773, %v775
      %v780 = vsel %vm474, %v765, 0
      %v782 = vsel %vm474, %v767, 0
      %v784 = vsel %vm479, %v778, 0
      %786 = vmatpush.msra.mxu0 0.0
      %787 = vmatpush.msra.mxu0 0.0
      %788 = vmatpush.msra.mxu0 0.0
      %789 = vmatpush.msra.mxu0 0.0
      %790 = vmatpush.msra.mxu0 0.0
      %791 = vmatpush.msra.mxu0 0.0
      %792 = vmatpush.msra.mxu0 0.0
      %793 = vmatpush.msra.mxu0 0.0
      %794 = vmatpush.msra.mxu0 0.0
      %795 = vmatpush.msra.mxu0 0.0
      %796 = vmatpush.msra.mxu0 0.0
      %797 = vmatpush.msra.mxu0 0.0
      %798 = vmatpush.msra.mxu0 0.0
      %799 = vmatpush.msra.mxu0 0.0
      %800 = vmatpush.msra.mxu0 %v784
      %801 = vmatpush.msra.mxu0 %v777
      %802 = vmatmul.f32.gmra.mxu0 %v780
      %v803 = vpop.f32.mrf.mxu0
      %v804 = vadd.f32 0.0, %v803
      %805 = vmatmul.f32.gmra.mxu0 %v782
      %v806 = vpop.f32.mrf.mxu0
      %v807 = vadd.f32 0.0, %v806
      %808 = vdwg.mxu0
      %v809 = vadd.f32 %v762, %v804
      %v810 = vadd.f32 %v763, %v807
      %811 = vrot.lane.b32.xlu0 %v459, 32
      %v812 = vpop.permute.xlu0 %811
      %813 = vrot.lane.b32.xlu0 %v460, 32
      %v814 = vpop.permute.xlu0 %813
      %815 = vrot.lane.b32.xlu0 %v455, 102
      %v816 = vpop.permute.xlu0 %815
      %817 = vrot.lane.b32.xlu0 %v456, 102
      %v818 = vpop.permute.xlu0 %817
      %819 = vrot.lane.b32.xlu0 %v457, 102
      %v820 = vpop.permute.xlu0 %819
      %821 = vrot.lane.b32.xlu0 %v458, 102
      %v822 = vpop.permute.xlu0 %821
      %vm823 = vcmask 834560
      %v824 = vsel %vm823, %v816, %v818
      %v825 = vsel %vm823, %v820, %v822
      %v827 = vsel %vm474, %v812, 0
      %v829 = vsel %vm474, %v814, 0
      %v831 = vsel %vm479, %v825, 0
      %833 = vmatpush.msra.mxu0 0.0
      %834 = vmatpush.msra.mxu0 0.0
      %835 = vmatpush.msra.mxu0 0.0
      %836 = vmatpush.msra.mxu0 0.0
      %837 = vmatpush.msra.mxu0 0.0
      %838 = vmatpush.msra.mxu0 0.0
      %839 = vmatpush.msra.mxu0 0.0
      %840 = vmatpush.msra.mxu0 0.0
      %841 = vmatpush.msra.mxu0 0.0
      %842 = vmatpush.msra.mxu0 0.0
      %843 = vmatpush.msra.mxu0 0.0
      %844 = vmatpush.msra.mxu0 0.0
      %845 = vmatpush.msra.mxu0 0.0
      %846 = vmatpush.msra.mxu0 0.0
      %847 = vmatpush.msra.mxu0 %v831
      %848 = vmatpush.msra.mxu0 %v824
      %849 = vmatmul.f32.gmra.mxu0 %v827
      %v850 = vpop.f32.mrf.mxu0
      %v851 = vadd.f32 0.0, %v850
      %852 = vmatmul.f32.gmra.mxu0 %v829
      %v853 = vpop.f32.mrf.mxu0
      %v854 = vadd.f32 0.0, %v853
      %855 = vdwg.mxu0
      %v856 = vadd.f32 %v809, %v851
      %v857 = vadd.f32 %v810, %v854
      %v858 = vtanh.pop %v856
      %v859 = vtanh.pop %v857
      %v860 = vld [vmem:[%s6] sm:$0x3f]
      %862 = vrot.lane.b32.xlu0 %v860, 116
      %v863 = vpop.permute.xlu0 %862
      %866 = vrot.lane.b32.xlu0 %v858, 127
      %v867 = vpop.permute.xlu0 %866
      %868 = vrot.lane.b32.xlu0 %v859, 127
      %v869 = vpop.permute.xlu0 %868
      %v871 = vsel %vm474, %v863, 0
      %v873 = vsel %vm479, %v869, 0
      %875 = vmatpush.msra.mxu0 0.0
      %876 = vmatpush.msra.mxu0 0.0
      %877 = vmatpush.msra.mxu0 0.0
      %878 = vmatpush.msra.mxu0 0.0
      %879 = vmatpush.msra.mxu0 0.0
      %880 = vmatpush.msra.mxu0 0.0
      %881 = vmatpush.msra.mxu0 0.0
      %882 = vmatpush.msra.mxu0 0.0
      %883 = vmatpush.msra.mxu0 0.0
      %884 = vmatpush.msra.mxu0 0.0
      %885 = vmatpush.msra.mxu0 0.0
      %886 = vmatpush.msra.mxu0 0.0
      %887 = vmatpush.msra.mxu0 0.0
      %888 = vmatpush.msra.mxu0 0.0
      %889 = vmatpush.msra.mxu0 %v873
      %890 = vmatpush.msra.mxu0 %v867
      %891 = vmatmul.f32.gmra.mxu0 %v871
      %v892 = vpop.f32.mrf.mxu0
      %v893 = vadd.f32 0.0, %v892
      %894 = vdwg.mxu0
      %v895 = vsel %vm474, %v860, 0
      %v897 = vsel %vm479, %v859, 0
      %899 = vmatpush.msra.mxu0 0.0
      %900 = vmatpush.msra.mxu0 0.0
      %901 = vmatpush.msra.mxu0 0.0
      %902 = vmatpush.msra.mxu0 0.0
      %903 = vmatpush.msra.mxu0 0.0
      %904 = vmatpush.msra.mxu0 0.0
      %905 = vmatpush.msra.mxu0 0.0
      %906 = vmatpush.msra.mxu0 0.0
      %907 = vmatpush.msra.mxu0 0.0
      %908 = vmatpush.msra.mxu0 0.0
      %909 = vmatpush.msra.mxu0 0.0
      %910 = vmatpush.msra.mxu0 0.0
      %911 = vmatpush.msra.mxu0 0.0
      %912 = vmatpush.msra.mxu0 0.0
      %913 = vmatpush.msra.mxu0 %v897
      %914 = vmatpush.msra.mxu0 %v858
      %915 = vmatmul.f32.gmra.mxu0 %v895
      %v916 = vpop.f32.mrf.mxu0
      %v917 = vadd.f32 %v893, %v916
      %918 = vdwg.mxu0
      %919 = vrot.lane.b32.xlu0 %v860, 104
      %v920 = vpop.permute.xlu0 %919
      %921 = vrot.lane.b32.xlu0 %v858, 126
      %v922 = vpop.permute.xlu0 %921
      %923 = vrot.lane.b32.xlu0 %v859, 126
      %v924 = vpop.permute.xlu0 %923
      %v926 = vsel %vm474, %v920, 0
      %v928 = vsel %vm479, %v924, 0
      %930 = vmatpush.msra.mxu0 0.0
      %931 = vmatpush.msra.mxu0 0.0
      %932 = vmatpush.msra.mxu0 0.0
      %933 = vmatpush.msra.mxu0 0.0
      %934 = vmatpush.msra.mxu0 0.0
      %935 = vmatpush.msra.mxu0 0.0
      %936 = vmatpush.msra.mxu0 0.0
      %937 = vmatpush.msra.mxu0 0.0
      %938 = vmatpush.msra.mxu0 0.0
      %939 = vmatpush.msra.mxu0 0.0
      %940 = vmatpush.msra.mxu0 0.0
      %941 = vmatpush.msra.mxu0 0.0
      %942 = vmatpush.msra.mxu0 0.0
      %943 = vmatpush.msra.mxu0 0.0
      %944 = vmatpush.msra.mxu0 %v928
      %945 = vmatpush.msra.mxu0 %v922
      %946 = vmatmul.f32.gmra.mxu0 %v926
      %v947 = vpop.f32.mrf.mxu0
      %v948 = vadd.f32 0.0, %v947
      %949 = vdwg.mxu0
      %v950 = vadd.f32 %v917, %v948
      %951 = vrot.lane.b32.xlu0 %v860, 92
      %v952 = vpop.permute.xlu0 %951
      %953 = vrot.lane.b32.xlu0 %v858, 116
      %v954 = vpop.permute.xlu0 %953
      %955 = vrot.lane.b32.xlu0 %v859, 116
      %v956 = vpop.permute.xlu0 %955
      %v958 = vsel %vm474, %v952, 0
      %v960 = vsel %vm479, %v956, 0
      %962 = vmatpush.msra.mxu0 0.0
      %963 = vmatpush.msra.mxu0 0.0
      %964 = vmatpush.msra.mxu0 0.0
      %965 = vmatpush.msra.mxu0 0.0
      %966 = vmatpush.msra.mxu0 0.0
      %967 = vmatpush.msra.mxu0 0.0
      %968 = vmatpush.msra.mxu0 0.0
      %969 = vmatpush.msra.mxu0 0.0
      %970 = vmatpush.msra.mxu0 0.0
      %971 = vmatpush.msra.mxu0 0.0
      %972 = vmatpush.msra.mxu0 0.0
      %973 = vmatpush.msra.mxu0 0.0
      %974 = vmatpush.msra.mxu0 0.0
      %975 = vmatpush.msra.mxu0 0.0
      %976 = vmatpush.msra.mxu0 %v960
      %977 = vmatpush.msra.mxu0 %v954
      %978 = vmatmul.f32.gmra.mxu0 %v958
      %v979 = vpop.f32.mrf.mxu0
      %v980 = vadd.f32 0.0, %v979
      %981 = vdwg.mxu0
      %v982 = vadd.f32 %v950, %v980
      %983 = vrot.lane.b32.xlu0 %v860, 80
      %v984 = vpop.permute.xlu0 %983
      %985 = vrot.lane.b32.xlu0 %v858, 115
      %v986 = vpop.permute.xlu0 %985
      %987 = vrot.lane.b32.xlu0 %v859, 115
      %v988 = vpop.permute.xlu0 %987
      %v990 = vsel %vm474, %v984, 0
      %v992 = vsel %vm479, %v988, 0
      %994 = vmatpush.msra.mxu0 0.0
      %995 = vmatpush.msra.mxu0 0.0
      %996 = vmatpush.msra.mxu0 0.0
      %997 = vmatpush.msra.mxu0 0.0
      %998 = vmatpush.msra.mxu0 0.0
      %999 = vmatpush.msra.mxu0 0.0
      %1000 = vmatpush.msra.mxu0 0.0
      %1001 = vmatpush.msra.mxu0 0.0
      %1002 = vmatpush.msra.mxu0 0.0
      %1003 = vmatpush.msra.mxu0 0.0
      %1004 = vmatpush.msra.mxu0 0.0
      %1005 = vmatpush.msra.mxu0 0.0
      %1006 = vmatpush.msra.mxu0 0.0
      %1007 = vmatpush.msra.mxu0 0.0
      %1008 = vmatpush.msra.mxu0 %v992
      %1009 = vmatpush.msra.mxu0 %v986
      %1010 = vmatmul.f32.gmra.mxu0 %v990
      %v1011 = vpop.f32.mrf.mxu0
      %v1012 = vadd.f32 0.0, %v1011
      %1013 = vdwg.mxu0
      %v1014 = vadd.f32 %v982, %v1012
      %1015 = vrot.lane.b32.xlu0 %v860, 68
      %v1016 = vpop.permute.xlu0 %1015
      %1017 = vrot.lane.b32.xlu0 %v858, 114
      %v1018 = vpop.permute.xlu0 %1017
      %1019 = vrot.lane.b32.xlu0 %v859, 114
      %v1020 = vpop.permute.xlu0 %1019
      %v1022 = vsel %vm474, %v1016, 0
      %v1024 = vsel %vm479, %v1020, 0
      %1026 = vmatpush.msra.mxu0 0.0
      %1027 = vmatpush.msra.mxu0 0.0
      %1028 = vmatpush.msra.mxu0 0.0
      %1029 = vmatpush.msra.mxu0 0.0
      %1030 = vmatpush.msra.mxu0 0.0
      %1031 = vmatpush.msra.mxu0 0.0
      %1032 = vmatpush.msra.mxu0 0.0
      %1033 = vmatpush.msra.mxu0 0.0
      %1034 = vmatpush.msra.mxu0 0.0
      %1035 = vmatpush.msra.mxu0 0.0
      %1036 = vmatpush.msra.mxu0 0.0
      %1037 = vmatpush.msra.mxu0 0.0
      %1038 = vmatpush.msra.mxu0 0.0
      %1039 = vmatpush.msra.mxu0 0.0
      %1040 = vmatpush.msra.mxu0 %v1024
      %1041 = vmatpush.msra.mxu0 %v1018
      %1042 = vmatmul.f32.gmra.mxu0 %v1022
      %v1043 = vpop.f32.mrf.mxu0
      %v1044 = vadd.f32 0.0, %v1043
      %1045 = vdwg.mxu0
      %v1046 = vadd.f32 %v1014, %v1044
      %1047 = vrot.lane.b32.xlu0 %v860, 56
      %v1048 = vpop.permute.xlu0 %1047
      %1049 = vrot.lane.b32.xlu0 %v858, 104
      %v1050 = vpop.permute.xlu0 %1049
      %1051 = vrot.lane.b32.xlu0 %v859, 104
      %v1052 = vpop.permute.xlu0 %1051
      %v1054 = vsel %vm474, %v1048, 0
      %v1056 = vsel %vm479, %v1052, 0
      %1058 = vmatpush.msra.mxu0 0.0
      %1059 = vmatpush.msra.mxu0 0.0
      %1060 = vmatpush.msra.mxu0 0.0
      %1061 = vmatpush.msra.mxu0 0.0
      %1062 = vmatpush.msra.mxu0 0.0
      %1063 = vmatpush.msra.mxu0 0.0
      %1064 = vmatpush.msra.mxu0 0.0
      %1065 = vmatpush.msra.mxu0 0.0
      %1066 = vmatpush.msra.mxu0 0.0
      %1067 = vmatpush.msra.mxu0 0.0
      %1068 = vmatpush.msra.mxu0 0.0
      %1069 = vmatpush.msra.mxu0 0.0
      %1070 = vmatpush.msra.mxu0 0.0
      %1071 = vmatpush.msra.mxu0 0.0
      %1072 = vmatpush.msra.mxu0 %v1056
      %1073 = vmatpush.msra.mxu0 %v1050
      %1074 = vmatmul.f32.gmra.mxu0 %v1054
      %v1075 = vpop.f32.mrf.mxu0
      %v1076 = vadd.f32 0.0, %v1075
      %1077 = vdwg.mxu0
      %v1078 = vadd.f32 %v1046, %v1076
      %1079 = vrot.lane.b32.xlu0 %v860, 44
      %v1080 = vpop.permute.xlu0 %1079
      %1081 = vrot.lane.b32.xlu0 %v858, 103
      %v1082 = vpop.permute.xlu0 %1081
      %1083 = vrot.lane.b32.xlu0 %v859, 103
      %v1084 = vpop.permute.xlu0 %1083
      %v1086 = vsel %vm474, %v1080, 0
      %v1088 = vsel %vm479, %v1084, 0
      %1090 = vmatpush.msra.mxu0 0.0
      %1091 = vmatpush.msra.mxu0 0.0
      %1092 = vmatpush.msra.mxu0 0.0
      %1093 = vmatpush.msra.mxu0 0.0
      %1094 = vmatpush.msra.mxu0 0.0
      %1095 = vmatpush.msra.mxu0 0.0
      %1096 = vmatpush.msra.mxu0 0.0
      %1097 = vmatpush.msra.mxu0 0.0
      %1098 = vmatpush.msra.mxu0 0.0
      %1099 = vmatpush.msra.mxu0 0.0
      %1100 = vmatpush.msra.mxu0 0.0
      %1101 = vmatpush.msra.mxu0 0.0
      %1102 = vmatpush.msra.mxu0 0.0
      %1103 = vmatpush.msra.mxu0 0.0
      %1104 = vmatpush.msra.mxu0 %v1088
      %1105 = vmatpush.msra.mxu0 %v1082
      %1106 = vmatmul.f32.gmra.mxu0 %v1086
      %v1107 = vpop.f32.mrf.mxu0
      %v1108 = vadd.f32 0.0, %v1107
      %1109 = vdwg.mxu0
      %v1110 = vadd.f32 %v1078, %v1108
      %1111 = vrot.lane.b32.xlu0 %v860, 32
      %v1112 = vpop.permute.xlu0 %1111
      %1113 = vrot.lane.b32.xlu0 %v858, 102
      %v1114 = vpop.permute.xlu0 %1113
      %1115 = vrot.lane.b32.xlu0 %v859, 102
      %v1116 = vpop.permute.xlu0 %1115
      %v1118 = vsel %vm474, %v1112, 0
      %v1120 = vsel %vm479, %v1116, 0
      %1122 = vmatpush.msra.mxu0 0.0
      %1123 = vmatpush.msra.mxu0 0.0
      %1124 = vmatpush.msra.mxu0 0.0
      %1125 = vmatpush.msra.mxu0 0.0
      %1126 = vmatpush.msra.mxu0 0.0
      %1127 = vmatpush.msra.mxu0 0.0
      %1128 = vmatpush.msra.mxu0 0.0
      %1129 = vmatpush.msra.mxu0 0.0
      %1130 = vmatpush.msra.mxu0 0.0
      %1131 = vmatpush.msra.mxu0 0.0
      %1132 = vmatpush.msra.mxu0 0.0
      %1133 = vmatpush.msra.mxu0 0.0
      %1134 = vmatpush.msra.mxu0 0.0
      %1135 = vmatpush.msra.mxu0 0.0
      %1136 = vmatpush.msra.mxu0 %v1120
      %1137 = vmatpush.msra.mxu0 %v1114
      %1138 = vmatmul.f32.gmra.mxu0 %v1118
      %v1139 = vpop.f32.mrf.mxu0
      %v1140 = vadd.f32 0.0, %v1139
      %1141 = vdwg.mxu0
      %v1142 = vadd.f32 %v1110, %v1140
      %v1143 = vtanh.pop %v1142
      %v1144 = vld [vmem:[%s7] sm:$0xff]
      %v1145 = vld [vmem:[%s7 + $0x8] sm:$0xf]
      %v1146 = vld [vmem:[%s8] sm:$0xff]
      %v1147 = vld [vmem:[%s8 + $0x8] sm:$0xf]
      %1149 = vset.pattern.permute.xlu0 0
      %1150 = vperm.xlu0 %1149, %v1146
      %v1151 = vpop.permute.xlu0 %1150
      %1154 = vset.pattern.permute.xlu0 0
      %1155 = vperm.xlu0 %1154, %v1147
      %v1156 = vpop.permute.xlu0 %1155
      %vm1158 = vcmask 48128
      %v1160 = vsel %vm1158, %v1144, 0
      %v1163 = vsel %vm1158, %v1145, 0
      %vm1165 = vcmask 1045504
      %v1167 = vsel %vm1165, %v1143, 0
      %1169 = vmatpush.msra.mxu0 0.0
      %1170 = vmatpush.msra.mxu0 0.0
      %1171 = vmatpush.msra.mxu0 0.0
      %1172 = vmatpush.msra.mxu0 0.0
      %1173 = vmatpush.msra.mxu0 0.0
      %1174 = vmatpush.msra.mxu0 0.0
      %1175 = vmatpush.msra.mxu0 0.0
      %1176 = vmatpush.msra.mxu0 0.0
      %1177 = vmatpush.msra.mxu0 0.0
      %1178 = vmatpush.msra.mxu0 0.0
      %1179 = vmatpush.msra.mxu0 0.0
      %1180 = vmatpush.msra.mxu0 0.0
      %1181 = vmatpush.msra.mxu0 0.0
      %1182 = vmatpush.msra.mxu0 0.0
      %1183 = vmatpush.msra.mxu0 0.0
      %1184 = vmatpush.msra.mxu0 %v1167
      %1185 = vmatmul.f32.gmra.mxu0 %v1160
      %v1186 = vpop.f32.mrf.mxu0
      %v1187 = vadd.f32 %v1151, %v1186
      %1188 = vmatmul.f32.gmra.mxu0 %v1163
      %v1189 = vpop.f32.mrf.mxu0
      %v1190 = vadd.f32 %v1156, %v1189
      %1191 = vdwg.mxu0
      %v1192 = vtanh.pop %v1187
      %v1193 = vtanh.pop %v1190
      %v1194 = vld [vmem:[%s9] sm:$0x3f]
      %v1196 = vsel %vm474, %v1194, 0
      %v1199 = vsel %vm479, %v1193, 0
      %1201 = vmatpush.msra.mxu0 0.0
      %1202 = vmatpush.msra.mxu0 0.0
      %1203 = vmatpush.msra.mxu0 0.0
      %1204 = vmatpush.msra.mxu0 0.0
      %1205 = vmatpush.msra.mxu0 0.0
      %1206 = vmatpush.msra.mxu0 0.0
      %1207 = vmatpush.msra.mxu0 0.0
      %1208 = vmatpush.msra.mxu0 0.0
      %1209 = vmatpush.msra.mxu0 0.0
      %1210 = vmatpush.msra.mxu0 0.0
      %1211 = vmatpush.msra.mxu0 0.0
      %1212 = vmatpush.msra.mxu0 0.0
      %1213 = vmatpush.msra.mxu0 0.0
      %1214 = vmatpush.msra.mxu0 0.0
      %1215 = vmatpush.msra.mxu0 %v1199
      %1216 = vmatpush.msra.mxu0 %v1192
      %1217 = vmatmul.f32.gmra.mxu0 %v1196
      %v1218 = vpop.f32.mrf.mxu0
      %v1219 = vadd.f32 0.0, %v1218
      %1220 = vdwg.mxu0
      %v1221 = vld [vmem:[%s367] sm:$0x1]
      %v1222 = vsub.f32 1.0, %v1221
      %v1224 = vperm.slane %v1222, 0
      %v1226 = vmul.f32 %v1143, %v1224
      %v1228 = vperm.slane %v1221, 0
      %v1230 = vmul.f32 %v1228, %v1219
      %v1231 = vadd.f32 %v1226, %v1230
      %v1232 = vxor.u32 %v1231, 2147483648
      %v1233 = vmul.f32 %v1232, 1.442695
      %v1234 = vpow.pop %v1233
      %v1235 = vadd.f32 %v1234, 1.0
      %v1236 = vrcp.pop %v1235
      %v1237 = vmul.f32 %v1235, %v1236
      %v1238 = vsub.f32 1.0, %v1237
      %v1239 = vmul.f32 %v1236, %v1238
      %v1240 = vadd.f32 %v1236, %v1239
      %vm1241 = vweird.f32 %v1235
      %vm1242 = vweird.f32 %v1236
      %vm1243 = vmor %vm1241, %vm1242
      %v1244 = vsel %vm1243, %v1236, %v1240
      %v1245 = vand.u32 2147483647, %v1235
      %vm1246 = vcmp.eq.f32.partialorder %v1245, 8.507059e+37
      %v1247 = vand.u32 %v1235, 2147483648
      %v1248 = vor.u32 1.1754944e-38, %v1247
      %v1249 = vsel %vm1246, %v1248, %v1244
      %v1250 = vmul.f32 1.0, %v1249
      %vm1251 = vcmask 747520
      %1252 = vst.msk [vmem:[%s371] sm:$0x7] %vm1251, %v1250
      %vm1253 = vcmask 750595
      %1254 = vst.msk [vmem:[%s371] sm:$0x38] %vm1253, %v1231
      %p1255 = scmp.lt.s32.totalorder %s21, 1
      %s1256 = scalar_select %p1255, %s21, 1
      %s1257 = smul.addr %s1256, 8
      %s1258 = scalar_lea.vmem %s10, %s1257
      // Predicated region
      $region61: #{pattern_encode_forward.5} parent=59 // pred_check
        %p1259 = pneg %p259
      $region62: #{pattern_encode_forward.5} parent=59 // pred_check_branch
        %1261 = sbr.rel (%p1259) target = $region64
      $region63: #{pattern_encode_forward.5} parent=59 // pred_region
        _
      $region64: #{pattern_encode_forward.5} parent=59 // pred_fallthru
        _
    $region60: #{pattern_encode_forward.5} parent=5 // pred_fallthru
      _
    %p1262 = scmp.le.s32.totalorder 2, %s16
    // Predicated region
    $region65: #{pattern_encode_forward.5} parent=5 // pred_check
      %p1263 = pneg %p1262
    $region66: #{pattern_encode_forward.5} parent=5 // pred_check_branch
      %1265 = sbr.rel (%p1263) target = $region68
    $region67: #{pattern_encode_forward.5} parent=5 // pred_region
      %s1266 = ssub.s32 %s16, 2
      // Predicated region
      $region69: #{pattern_encode_forward.5} parent=67 // pred_check
        %p1267 = pneg %p265
      $region70: #{pattern_encode_forward.5} parent=67 // pred_check_branch
        %1269 = sbr.rel (%p1267) target = $region72
      $region71: #{pattern_encode_forward.5} parent=67 // pred_region
        %p1270 = scmp.lt.s32.totalorder %s22, 1
        %s1271 = scalar_select %p1270, %s22, 1
        %s1272 = smul.addr %s1271, 8
        %s1273 = scalar_lea.vmem %s10, %s1272
      $region72: #{pattern_encode_forward.5} parent=67 // pred_fallthru
        _
    $region68: #{pattern_encode_forward.5} parent=5 // pred_fallthru
      _
  $region6: #{pattern_encode_forward.5} parent=0 // loop_footer
    %s20 = sadd.s32 1, %s16
  $region7: #{pattern_encode_forward.5} parent=0 // loop_footer_branch
    %15 = sbr.rel target = $region3
  $region8: #{pattern_encode_forward.5} parent=0 // loop_exit
    _

</llo_original>
